<compile_context>
chip_gen: v7x
topology: tpu7x:2x2x1
jax: 0.10.0
libtpu: 0.0.40
codegen_flags: <defaults>
</compile_context>

<pallas_src>
from itertools import permutations

import numpy as np
import jax
import jax.numpy as jnp
from jax import lax
from jax.experimental import pallas as pl
from jax.experimental.pallas import tpu as pltpu


N_STYLES = 18
W_DIM = 512


# --------------------------- encoder matmul kernel ---------------------------

def encoder_kernel(xin_ref, xout_ref, w_ref, scale_ref, b_ref, o_ref, acc_ref):
    """One (n, k) grid step of: codes = [x_in; x_out] @ (w_int8 * scale) + bias.

    The int8 weight is the HBM-bound stream; it is dequantized to f32 in VMEM
    (per-column scale applied in the epilogue, since it commutes with the
    K-sum) so the MXU sees a float matmul on every TPU generation.
    """
    k = pl.program_id(1)

    @pl.when(k == 0)
    def _init():
        acc_ref[...] = jnp.zeros_like(acc_ref)

    # Stack the two image batches inside VMEM (no XLA-side concatenate pass).
    x = jnp.concatenate([xin_ref[...], xout_ref[...]], axis=0)        # (2B, Kt) f32
    w = w_ref[...].astype(jnp.float32)                                # int8 -> f32
    acc_ref[...] += jnp.dot(x, w, preferred_element_type=jnp.float32)

    @pl.when(k == pl.num_programs(1) - 1)
    def _finalize():
        o_ref[...] = acc_ref[...] * scale_ref[...] + b_ref[...]


def _pick_k_tile(K, target=1024):
    """Largest multiple-of-256 divisor of K that is <= target (else K itself)."""
    best = None
    for kt in range(256, min(K, target) + 1, 256):
        if K % kt == 0:
            best = kt
    return best if best is not None else K


def pallas_encoder(x_in, x_out, w_int8, w_scale, bias, *, tn=1152):
    """codes(2B, N) = [x_in; x_out](2B, K) @ dequant(w_int8)(K, N) + bias(1, N)."""
    B, K = x_in.shape
    _, N = w_int8.shape
    kt = _pick_k_tile(K)
    assert N % tn == 0 and K % kt == 0
    grid = (N // tn, K // kt)      # reduction (K) axis last

    flops = 2 * (2 * B) * K * N
    bytes_accessed = (K * N                          # int8 weight (dominant)
                      + (N // tn) * 2 * B * K * 4    # activations, re-read per N step
                      + 2 * B * N * 4                # output codes
                      + 2 * N * 4)                   # scale + bias

    return pl.pallas_call(
        encoder_kernel,
        out_shape=jax.ShapeDtypeStruct((2 * B, N), jnp.float32),
        grid=grid,
        in_specs=[
            pl.BlockSpec((B, kt), lambda n, k: (0, k)),
            pl.BlockSpec((B, kt), lambda n, k: (0, k)),
            pl.BlockSpec((kt, tn), lambda n, k: (k, n)),
            pl.BlockSpec((1, tn), lambda n, k: (0, n)),
            pl.BlockSpec((1, tn), lambda n, k: (0, n)),
        ],
        out_specs=pl.BlockSpec((2 * B, tn), lambda n, k: (0, n)),
        scratch_shapes=[pltpu.VMEM((2 * B, tn), jnp.float32)],
        compiler_params=pltpu.CompilerParams(
            # No vmem_limit override: tiles are sized to fit the default scoped
            # budget on every generation (v7x only has 64 MiB physical VMEM).
            dimension_semantics=("parallel", "arbitrary"),
        ),
        cost_estimate=pl.CostEstimate(flops=flops, transcendentals=0,
                                      bytes_accessed=bytes_accessed),
    )(x_in, x_out, w_int8, w_scale, bias)


# ------------------------------ fused loss kernel ----------------------------

def make_loss_kernel(batch_size, n_perm):
    """Fused kernel: mapping-net matmul + cosine loss + exact uniform-EMD loss.

    Exact EMD for uniform marginals (ab = 1/B) is the min over permutations p
    of (1/B) * sum_i M_j[i, p(i)].  Since the squared-distance norm terms are
    permutation-invariant, only the cross dot products out[i,j].rw[c] enter
    the max over permutations:
        emd2_j = (sum_i ||out[i,j]||^2 + sum_c ||rw[c]||^2
                  - 2 * max_p sum_i out[i,j].rw[p(i)]) / B
    (The /B here is the transport-plan weight inside ot.emd2; the reference's
    explicit /(5120*B) is applied separately below — no double division.)
    """
    # TODO(synk): permutation enumeration is exact only for small batch sizes
    # (B! transport plans enter the host-built one-hot tensor); the general
    # ot.emd2 network-simplex LP has no clean Pallas equivalent.

    def loss_kernel(codes_ref, z_ref, wmap_ref, bmap_ref, oh_ref, o_ref):
        B = batch_size
        codes = codes_ref[...]                       # (2B, 18, 512) f32
        a = codes[:B]                                # in_codes  (B, 18, 512)
        b = codes[B:]                                # out_codes (B, 18, 512)

        # ---- generator.get_latent stand-in, fused in (saves a pallas_call) ---
        rw = (jnp.dot(z_ref[...], wmap_ref[...],
                      preferred_element_type=jnp.float32)
              + bmap_ref[...])                       # real_w (B, 512)

        # ---- loss_w_cos = mean(|cosine_similarity(in, out, dim=2)|) ----------
        dot_ab = jnp.sum(a * b, axis=-1)             # (B, 18)
        na2 = jnp.sum(a * a, axis=-1)                # (B, 18)
        nb2 = jnp.sum(b * b, axis=-1)                # (B, 18)
        eps2 = jnp.float32(1e-8) ** 2
        inv = (lax.rsqrt(jnp.maximum(na2, eps2))     # EUP rsqrt; per-norm clamp
               * lax.rsqrt(jnp.maximum(nb2, eps2)))  # (torch semantics)
        loss_cos = jnp.mean(jnp.abs(dot_ab * inv))

        # ---- loss_was: per-style sq-Euclid OT vs. real_w (same rw for all j) -
        s_out = jnp.sum(nb2, axis=0, keepdims=True)  # (1, 18)
        s_rw = jnp.sum(rw * rw)                      # scalar (perm-invariant)

        trans_b = (((1,), (1,)), ((), ()))           # contract last dims (MXU)
        scores = None                                # scores[p, j]
        for i in range(B):                           # O(B) static loop
            # cross_i[j, c] = out_codes[i, j] . rw[c]
            cross_i = lax.dot_general(b[i], rw, trans_b,
                                      preferred_element_type=jnp.float32)   # (18, B)
            # oh_ref[i] is (P, B) one-hot over c = perm_p(i)
            term = lax.dot_general(oh_ref[i], cross_i, trans_b,
                                   preferred_element_type=jnp.float32)      # (P, 18)
            scores = term if scores is None else scores + term

        best = jnp.max(scores, axis=0, keepdims=True)          # (1, 18) max over perms
        emd = jnp.maximum(s_out + s_rw - 2.0 * best, 0.0) / jnp.float32(B)
        ot_dist = emd / jnp.float32(5120.0 * B)                 # == ot.emd2/(5120*B)
        loss_was = 1.0 - jnp.mean(ot_dist)

        # Lane-dense (1, 128) output: lane 0 = loss_w_cos, lane 1 = loss_was.
        lane = lax.broadcasted_iota(jnp.int32, (1, 128), 1)
        o_ref[...] = jnp.where(
            lane == 0, loss_cos, jnp.where(lane == 1, loss_was, 0.0))

    return loss_kernel


def pallas_fused_loss(codes_all, sample_z, w_map, b_map, perm_oh, batch_size):
    # codes_all: (2B, 18, 512) f32; sample_z: (B, 512); w_map: (512, 512);
    # b_map: (1, 512); perm_oh: (B, B!, B) f32  ->  (1, 128) f32.
    n_perm = perm_oh.shape[1]
    return pl.pallas_call(
        make_loss_kernel(batch_size, n_perm),
        out_shape=jax.ShapeDtypeStruct((1, 128), jnp.float32),
    )(codes_all, sample_z, w_map, b_map, perm_oh)


# ---------------------------------- module -----------------------------------

class WLossPallas:
    """Synthetic Pallas re-implementation of loss/w_loss.py::WLoss.forward.

    The pretrained e4e encoder and StyleGAN mapping network are replaced by
    deterministic single linear layers (same I/O shapes: images -> (B,18,512)
    codes, z(512) -> w(512)); latent_avg is a deterministic (18, 512) tensor.
    """
    # TODO(synk): real e4e / StyleGAN decoder weights are external checkpoints;
    # stand-ins preserve shapes and dataflow only.

    def __init__(self, batch_size, in_shape, key):
        self.batch_size = batch_size
        B, C, H, W = in_shape
        feat = C * H * W
        k_enc, k_avg, k_map = jax.random.split(key, 3)

        # Encoder stand-in weight, quantized to int8 + per-column f32 scale:
        # halves HBM bytes vs bf16 on the memory-bound weight stream and avoids
        # any integer-MXU requirement (dequant happens in VMEM before the dot).
        w_f32 = 0.02 * jax.random.normal(
            k_enc, (feat, N_STYLES * W_DIM), dtype=jnp.float32)
        col_max = jnp.maximum(jnp.max(jnp.abs(w_f32), axis=0, keepdims=True),
                              jnp.float32(1e-12))
        self.w_scale = col_max / 127.0                       # (1, N) f32
        self.w_enc = jnp.round(w_f32 / self.w_scale).astype(jnp.int8)

        self.latent_avg = 0.1 * jax.random.normal(
            k_avg, (N_STYLES, W_DIM), dtype=jnp.float32)
        self.w_map = 0.05 * jax.random.normal(
            k_map, (W_DIM, W_DIM), dtype=jnp.float32)
        self.b_map = jnp.zeros((1, W_DIM), dtype=jnp.float32)

        # Host-built one-hot permutation tensor for the exact uniform-marginal
        # EMD: oh[i, p, c] = 1 if perm_p(i) == c.  self.ab = ones(B)/B from the
        # reference is implied by the uniform-marginal transport plan.
        perms = list(permutations(range(batch_size)))
        oh = np.zeros((batch_size, len(perms), batch_size), dtype=np.float32)
        for p, perm in enumerate(perms):
            for i in range(batch_size):
                oh[i, p, perm[i]] = 1.0
        self.perm_oh = jnp.asarray(oh)

    def _encode_both(self, inputs, outputs):
        # e4e(inputs) and e4e(outputs) (+ latent_avg bias) in ONE K-tiled
        # matmul over both batches: the int8 weight is streamed from HBM once.
        B = inputs.shape[0]
        x_in = inputs.reshape(B, -1)
        x_out = outputs.reshape(B, -1)
        bias = self.latent_avg.reshape(1, N_STYLES * W_DIM)
        codes = pallas_encoder(x_in, x_out, self.w_enc, self.w_scale, bias)
        return codes.reshape(2 * B, N_STYLES, W_DIM)

    def forward(self, inputs, outputs, z_key):
        B = self.batch_size
        codes_all = self._encode_both(inputs, outputs)        # (2B, 18, 512)

        sample_z = jax.random.normal(z_key, (B, W_DIM), dtype=jnp.float32)

        # Fused: mapping net + cosine loss + per-style OT cost + exact EMD.
        losses = pallas_fused_loss(codes_all, sample_z, self.w_map, self.b_map,
                                   self.perm_oh, B)           # (1, 128)
        loss_w_cos = losses[0, 0]
        loss_was = losses[0, 1]
        return loss_w_cos, loss_was


# ----------------------------------- main ------------------------------------

if __name__ == "__main__":
    key = jax.random.PRNGKey(0)
    k_params, k_in, k_out, k_z = jax.random.split(key, 4)

    batch_size = 2
    in_shape = (batch_size, 3, 16, 16)   # NCHW images

    inputs = jax.random.normal(k_in, in_shape, dtype=jnp.float32)
    outputs = jax.random.normal(k_out, in_shape, dtype=jnp.float32)

    wloss = WLossPallas(batch_size, in_shape, k_params)
    loss_w_cos, loss_was = wloss.forward(inputs, outputs, k_z)
    jax.block_until_ready((loss_w_cos, loss_was))

    print("KERNEL_OK")
</pallas_src>

<mosaic_0001>
module attributes {stable_mosaic.version = 11 : i64} {
  func.func @encoder_kernel(%arg0: i32, %arg1: i32, %arg2: memref<2x768xf32, #tpu.memory_space<vmem>>, %arg3: memref<2x768xf32, #tpu.memory_space<vmem>>, %arg4: memref<768x1152xi8, #tpu.memory_space<vmem>>, %arg5: memref<1x1152xf32, #tpu.memory_space<vmem>>, %arg6: memref<1x1152xf32, #tpu.memory_space<vmem>>, %arg7: memref<4x1152xf32, #tpu.memory_space<vmem>>, %arg8: memref<4x1152xf32, #tpu.memory_space<vmem>>) attributes {dimension_semantics = [#tpu.dimension_semantics<parallel>, #tpu.dimension_semantics<arbitrary>], iteration_bounds = array<i64: 8, 1>, scalar_prefetch = 0 : i64, scratch_operands = 1 : i64, tpu.core_type = #tpu.core_type<tc>, window_params = [{transform_indices = @transform_0, window_bounds = array<i64: 2, 768>}, {transform_indices = @transform_1, window_bounds = array<i64: 2, 768>}, {transform_indices = @transform_2, window_bounds = array<i64: 768, 1152>}, {transform_indices = @transform_3, window_bounds = array<i64: 1, 1152>}, {transform_indices = @transform_4, window_bounds = array<i64: 1, 1152>}, {transform_indices = @transform_5, window_bounds = array<i64: 4, 1152>}]} {
    %c0_i32 = arith.constant 0 : i32
    %0 = arith.cmpi eq, %arg1, %c0_i32 : i32
    %1 = arith.extui %0 : i1 to i32
    %c0_i32_0 = arith.constant 0 : i32
    %2 = arith.cmpi ne, %1, %c0_i32_0 : i32
    scf.if %2 {
      %cst_12 = arith.constant 0.000000e+00 : f32
      %15 = vector.broadcast %cst_12 : f32 to vector<4x1152xf32>
      %c0_13 = arith.constant 0 : index
      %c0_14 = arith.constant 0 : index
      %16 = vector.load %arg8[%c0_13, %c0_14] : memref<4x1152xf32, #tpu.memory_space<vmem>>, vector<4x1152xf32>
      tpu.vector_store %arg8[%c0_13, %c0_14], %15 {strides = array<i32>} : memref<4x1152xf32, #tpu.memory_space<vmem>>, vector<4x1152xf32>,
    } else {
    }
    %c0 = arith.constant 0 : index
    %c0_1 = arith.constant 0 : index
    %3 = vector.load %arg2[%c0, %c0_1] : memref<2x768xf32, #tpu.memory_space<vmem>>, vector<2x768xf32>
    %c0_2 = arith.constant 0 : index
    %c0_3 = arith.constant 0 : index
    %4 = vector.load %arg3[%c0_2, %c0_3] : memref<2x768xf32, #tpu.memory_space<vmem>>, vector<2x768xf32>
    %5 = tpu.concatenate %3, %4 in 0 : vector<2x768xf32>, vector<2x768xf32> -> vector<4x768xf32>
    %c0_4 = arith.constant 0 : index
    %c0_5 = arith.constant 0 : index
    %6 = vector.load %arg4[%c0_4, %c0_5] : memref<768x1152xi8, #tpu.memory_space<vmem>>, vector<768x1152xi8>
    %7 = arith.sitofp %6 : vector<768x1152xi8> to vector<768x1152xf32>
    %c0_6 = arith.constant 0 : index
    %c0_7 = arith.constant 0 : index
    %8 = vector.load %arg8[%c0_6, %c0_7] : memref<4x1152xf32, #tpu.memory_space<vmem>>, vector<4x1152xf32>
    %cst = arith.constant dense<0.000000e+00> : vector<4x1152xf32>
    %9 = tpu.matmul %5, %7, %cst {dimension_numbers = #tpu.dot_dimension_numbers<[1], [0], [0], [1], [0, 0, 1, 1], [], []>} : vector<4x768xf32>, vector<768x1152xf32>, vector<4x1152xf32> -> vector<4x1152xf32>
    %10 = arith.addf %8, %9 : vector<4x1152xf32>
    %c0_8 = arith.constant 0 : index
    %c0_9 = arith.constant 0 : index
    %11 = vector.load %arg8[%c0_8, %c0_9] : memref<4x1152xf32, #tpu.memory_space<vmem>>, vector<4x1152xf32>
    tpu.vector_store %arg8[%c0_8, %c0_9], %10 {strides = array<i32>} : memref<4x1152xf32, #tpu.memory_space<vmem>>, vector<4x1152xf32>,
    %c0_i32_10 = arith.constant 0 : i32
    %12 = arith.cmpi eq, %arg1, %c0_i32_10 : i32
    %13 = arith.extui %12 : i1 to i32
    %c0_i32_11 = arith.constant 0 : i32
    %14 = arith.cmpi ne, %13, %c0_i32_11 : i32
    scf.if %14 {
      %c0_12 = arith.constant 0 : index
      %c0_13 = arith.constant 0 : index
      %15 = vector.load %arg8[%c0_12, %c0_13] : memref<4x1152xf32, #tpu.memory_space<vmem>>, vector<4x1152xf32>
      %c0_14 = arith.constant 0 : index
      %c0_15 = arith.constant 0 : index
      %16 = vector.load %arg5[%c0_14, %c0_15] : memref<1x1152xf32, #tpu.memory_space<vmem>>, vector<1x1152xf32>
      %17 = vector.broadcast %16 : vector<1x1152xf32> to vector<4x1152xf32>
      %18 = arith.mulf %15, %17 : vector<4x1152xf32>
      %c0_16 = arith.constant 0 : index
      %c0_17 = arith.constant 0 : index
      %19 = vector.load %arg6[%c0_16, %c0_17] : memref<1x1152xf32, #tpu.memory_space<vmem>>, vector<1x1152xf32>
      %20 = vector.broadcast %19 : vector<1x1152xf32> to vector<4x1152xf32>
      %21 = arith.addf %18, %20 : vector<4x1152xf32>
      %c0_18 = arith.constant 0 : index
      %c0_19 = arith.constant 0 : index
      %22 = vector.load %arg7[%c0_18, %c0_19] : memref<4x1152xf32, #tpu.memory_space<vmem>>, vector<4x1152xf32>
      tpu.vector_store %arg7[%c0_18, %c0_19], %21 {strides = array<i32>} : memref<4x1152xf32, #tpu.memory_space<vmem>>, vector<4x1152xf32>,
    } else {
    }
    return
  }
  func.func @transform_0(%arg0: i32, %arg1: i32) -> (i32, i32) {
    %c0_i32 = arith.constant 0 : i32
    %c0_i32_0 = arith.constant 0 : i32
    return %c0_i32, %arg1 : i32, i32
  }
  func.func @transform_1(%arg0: i32, %arg1: i32) -> (i32, i32) {
    %c0_i32 = arith.constant 0 : i32
    %c0_i32_0 = arith.constant 0 : i32
    return %c0_i32, %arg1 : i32, i32
  }
  func.func @transform_2(%arg0: i32, %arg1: i32) -> (i32, i32) {
    %c0_i32 = arith.constant 0 : i32
    return %arg1, %arg0 : i32, i32
  }
  func.func @transform_3(%arg0: i32, %arg1: i32) -> (i32, i32) {
    %c0_i32 = arith.constant 0 : i32
    %c0_i32_0 = arith.constant 0 : i32
    return %c0_i32, %arg0 : i32, i32
  }
  func.func @transform_4(%arg0: i32, %arg1: i32) -> (i32, i32) {
    %c0_i32 = arith.constant 0 : i32
    %c0_i32_0 = arith.constant 0 : i32
    return %c0_i32, %arg0 : i32, i32
  }
  func.func @transform_5(%arg0: i32, %arg1: i32) -> (i32, i32) {
    %c0_i32 = arith.constant 0 : i32
    %c0_i32_0 = arith.constant 0 : i32
    return %c0_i32, %arg0 : i32, i32
  }
}

</mosaic_0001>

<llo_original>
// kernel: tpu_custom_call.1
$region0: #{tpu_custom_call.1}
  #allocation0 [shape = 'u32[]', space=smem, size = 0x4, offset = 0x4, fixed_abs, tag = 'smem constant byte address 0x4 - core index']
  #allocation1 [shape = 'u32[144,128]{1,0:T(1,128)}', space=vmem, size = 0x12000, scoped, tag = 'internal scratch']
  #allocation2 [shape = 'f32[4,1152]{1,0:T(4,128)}', space=vmem, size = 0x4800, scoped, tag = 'scratch operand']
  %s0 = inlined_call_operand.hbm [shape: f32[2,768], index: 0, kind: input, shape index: {}]
  %s1 = inlined_call_operand.hbm [shape: f32[2,768], index: 1, kind: input, shape index: {}]
  %s2 = inlined_call_operand.hbm [shape: s8[768,9216], index: 2, kind: input, shape index: {}]
  %s3 = inlined_call_operand.hbm [shape: f32[1,9216], index: 3, kind: input, shape index: {}]
  %s4 = inlined_call_operand.hbm [shape: f32[1,9216], index: 4, kind: input, shape index: {}]
  %s5 = inlined_call_operand.hbm [shape: f32[4,9216], index: 5, kind: output, shape index: {}]
  %s6 = sld [smem:[#allocation0]]
  $region81: #{tpu_custom_call.1} parent=0
    _
  %s8 = ssub.s32 1, %s6
  %s9 = scalar_select 0, %s8, %s6
  $region1: #{tpu_custom_call.1} parent=0
    #allocation3 [shape = 'u8[6144]{0}', space=vmem, size = 0x1800, scoped, tag = 'input window, operand 0, single buffered']
    #allocation4 [shape = 's32[2]{0}', space=sflag, size = 0x8, scoped, tag = 'scoped memory for tpu_custom_call.1']
    #allocation5 [shape = 's32[2]{0}', space=sflag, size = 0x8, scoped, tag = 'scoped memory for tpu_custom_call.1']
    #allocation6 [shape = 'u8[6144]{0}', space=vmem, size = 0x1800, scoped, tag = 'input window, operand 1, single buffered']
    #allocation7 [shape = 's32[1]{0}', space=sflag, size = 0x4, scoped, tag = 'scoped memory for tpu_custom_call.1']
    #allocation8 [shape = 'u8[1769472]{0}', space=vmem, size = 0x1b0000, scoped, tag = 'input window, operand 2']
    #allocation9 [shape = 'u8[9216]{0}', space=vmem, size = 0x2400, scoped, tag = 'input window, operand 3']
    #allocation10 [shape = 'u8[9216]{0}', space=vmem, size = 0x2400, scoped, tag = 'input window, operand 4']
    #allocation11 [shape = 'u8[36864]{0}', space=vmem, size = 0x9000, scoped, tag = 'output window, operand 0']
    %10 = vsyncpa [#allocation4], 0
    %11 = vsyncpa [#allocation7], 0
    %12 = vsyncpa [#allocation5], 0
    %s13 = scalar_lea.sflag [#allocation5], 1
    %14 = vsyncpa %s13, 0
    loop: start=0, step=1, limit=10
    $region2: #{tpu_custom_call.1} parent=1 // loop_pre_header
      _
    $region3: #{tpu_custom_call.1} parent=1 // loop_header
      %s16 = sphi 0, %s20
      %p17 = scmp.ge.s32.totalorder %s16, 10
      %s23 = sphi 0, %s35
      %s24 = sphi 0, %s31
      %s25 = sphi 0, %s23
      %s26 = sphi 0, %s24
      %s27 = sphi 0, %s25
      %s28 = sphi 0, %s26
      %s38 = sphi 0, %s40
      %s41 = sphi 0, %s38
      %s42 = sphi 0, %s41
      %s58 = sphi 0, %s42
      %s64 = sphi 0, %s66
      %s67 = sphi 0, %s64
      %s68 = sphi 0, %s67
      %s84 = sphi 0, %s68
      %s92 = sphi 0, %s94
      %s95 = sphi 0, %s92
      %s96 = sphi 0, %s95
      %s112 = sphi 0, %s96
      %s118 = sphi 0, %s120
      %s121 = sphi 0, %s118
      %s122 = sphi 0, %s121
      %s138 = sphi 0, %s122
      %s144 = sphi 0, %s146
      %s147 = sphi 0, %s144
      %s148 = sphi 0, %s147
      %s164 = sphi 0, %s148
      %s170 = sphi 0, %s172
      %s173 = sphi 0, %s170
      %s174 = sphi 0, %s173
      %s190 = sphi 0, %s174
    $region4: #{tpu_custom_call.1} parent=1 // loop_header_branch
      %19 = sbr.rel (%p17) target = $region8
    $region5: #{tpu_custom_call.1} parent=1 // loop_body
      %s21 = ssub.s32 %s16, 1
      %s22 = ssub.s32 %s16, 2
      %s29 = sadd.s32 1, %s24
      %p30 = scmp.ge.s32.totalorder %s29, 1
      %s31 = scalar_select %p30, 0, %s29
      %s32 = sadd.s32 1, %s23
      %s33 = scalar_select %p30, %s32, %s23
      %p34 = scmp.ge.s32.totalorder %s33, 8
      %s35 = scalar_select %p34, 0, %s33
      %s36 = ssub.s32 %s24, %s31
      %p37 = scmp.eq.s32.totalorder %s36, 0
      %s39 = sadd.s32 %s38, 1
      %s40 = scalar_select %p37, %s38, %s39
      %p43 = pneg %p37
      %p44 = scmp.eq.s32.totalorder %s16, 7
      %p45 = por %p43, %p44
      %p46 = scmp.ne.s32.totalorder %s38, %s41
      %p47 = scmp.eq.s32.totalorder %s16, 0
      %p48 = por %p46, %p47
      %p49 = scmp.ne.s32.totalorder %s38, %s41
      %p50 = scmp.eq.s32.totalorder %s21, 7
      %p51 = por %p49, %p50
      %p52 = scmp.ne.s32.totalorder %s41, %s42
      %p53 = scmp.eq.s32.totalorder %s21, 0
      %p54 = por %p52, %p53
      %p55 = scmp.ne.s32.totalorder %s41, %s42
      %p56 = scmp.eq.s32.totalorder %s22, 7
      %p57 = por %p55, %p56
      %p59 = scmp.ne.s32.totalorder %s42, %s58
      %p60 = scmp.eq.s32.totalorder %s22, 0
      %p61 = por %p59, %p60
      %s62 = ssub.s32 %s24, %s31
      %p63 = scmp.eq.s32.totalorder %s62, 0
      %s65 = sadd.s32 %s64, 1
      %s66 = scalar_select %p63, %s64, %s65
      %p69 = pneg %p63
      %p70 = scmp.eq.s32.totalorder %s16, 7
      %p71 = por %p69, %p70
      %p72 = scmp.ne.s32.totalorder %s64, %s67
      %p73 = scmp.eq.s32.totalorder %s16, 0
      %p74 = por %p72, %p73
      %p75 = scmp.ne.s32.totalorder %s64, %s67
      %p76 = scmp.eq.s32.totalorder %s21, 7
      %p77 = por %p75, %p76
      %p78 = scmp.ne.s32.totalorder %s67, %s68
      %p79 = scmp.eq.s32.totalorder %s21, 0
      %p80 = por %p78, %p79
      %p81 = scmp.ne.s32.totalorder %s67, %s68
      %p82 = scmp.eq.s32.totalorder %s22, 7
      %p83 = por %p81, %p82
      %p85 = scmp.ne.s32.totalorder %s68, %s84
      %p86 = scmp.eq.s32.totalorder %s22, 0
      %p87 = por %p85, %p86
      %s88 = ssub.s32 %s24, %s31
      %s89 = ssub.s32 %s23, %s35
      %s90 = sor.u32 %s88, %s89
      %p91 = scmp.eq.s32.totalorder %s90, 0
      %s93 = sadd.s32 %s92, 1
      %s94 = scalar_select %p91, %s92, %s93
      %p97 = pneg %p91
      %p98 = scmp.eq.s32.totalorder %s16, 7
      %p99 = por %p97, %p98
      %p100 = scmp.ne.s32.totalorder %s92, %s95
      %p101 = scmp.eq.s32.totalorder %s16, 0
      %p102 = por %p100, %p101
      %p103 = scmp.ne.s32.totalorder %s92, %s95
      %p104 = scmp.eq.s32.totalorder %s21, 7
      %p105 = por %p103, %p104
      %p106 = scmp.ne.s32.totalorder %s95, %s96
      %p107 = scmp.eq.s32.totalorder %s21, 0
      %p108 = por %p106, %p107
      %p109 = scmp.ne.s32.totalorder %s95, %s96
      %p110 = scmp.eq.s32.totalorder %s22, 7
      %p111 = por %p109, %p110
      %p113 = scmp.ne.s32.totalorder %s96, %s112
      %p114 = scmp.eq.s32.totalorder %s22, 0
      %p115 = por %p113, %p114
      %s116 = ssub.s32 %s23, %s35
      %p117 = scmp.eq.s32.totalorder %s116, 0
      %s119 = sadd.s32 %s118, 1
      %s120 = scalar_select %p117, %s118, %s119
      %p123 = pneg %p117
      %p124 = scmp.eq.s32.totalorder %s16, 7
      %p125 = por %p123, %p124
      %p126 = scmp.ne.s32.totalorder %s118, %s121
      %p127 = scmp.eq.s32.totalorder %s16, 0
      %p128 = por %p126, %p127
      %p129 = scmp.ne.s32.totalorder %s118, %s121
      %p130 = scmp.eq.s32.totalorder %s21, 7
      %p131 = por %p129, %p130
      %p132 = scmp.ne.s32.totalorder %s121, %s122
      %p133 = scmp.eq.s32.totalorder %s21, 0
      %p134 = por %p132, %p133
      %p135 = scmp.ne.s32.totalorder %s121, %s122
      %p136 = scmp.eq.s32.totalorder %s22, 7
      %p137 = por %p135, %p136
      %p139 = scmp.ne.s32.totalorder %s122, %s138
      %p140 = scmp.eq.s32.totalorder %s22, 0
      %p141 = por %p139, %p140
      %s142 = ssub.s32 %s23, %s35
      %p143 = scmp.eq.s32.totalorder %s142, 0
      %s145 = sadd.s32 %s144, 1
      %s146 = scalar_select %p143, %s144, %s145
      %p149 = pneg %p143
      %p150 = scmp.eq.s32.totalorder %s16, 7
      %p151 = por %p149, %p150
      %p152 = scmp.ne.s32.totalorder %s144, %s147
      %p153 = scmp.eq.s32.totalorder %s16, 0
      %p154 = por %p152, %p153
      %p155 = scmp.ne.s32.totalorder %s144, %s147
      %p156 = scmp.eq.s32.totalorder %s21, 7
      %p157 = por %p155, %p156
      %p158 = scmp.ne.s32.totalorder %s147, %s148
      %p159 = scmp.eq.s32.totalorder %s21, 0
      %p160 = por %p158, %p159
      %p161 = scmp.ne.s32.totalorder %s147, %s148
      %p162 = scmp.eq.s32.totalorder %s22, 7
      %p163 = por %p161, %p162
      %p165 = scmp.ne.s32.totalorder %s148, %s164
      %p166 = scmp.eq.s32.totalorder %s22, 0
      %p167 = por %p165, %p166
      %s168 = ssub.s32 %s23, %s35
      %p169 = scmp.eq.s32.totalorder %s168, 0
      %s171 = sadd.s32 %s170, 1
      %s172 = scalar_select %p169, %s170, %s171
      %p175 = pneg %p169
      %p176 = scmp.eq.s32.totalorder %s16, 7
      %p177 = por %p175, %p176
      %p178 = scmp.ne.s32.totalorder %s170, %s173
      %p179 = scmp.eq.s32.totalorder %s16, 0
      %p180 = por %p178, %p179
      %p181 = scmp.ne.s32.totalorder %s170, %s173
      %p182 = scmp.eq.s32.totalorder %s21, 7
      %p183 = por %p181, %p182
      %p184 = scmp.ne.s32.totalorder %s173, %s174
      %p185 = scmp.eq.s32.totalorder %s21, 0
      %p186 = por %p184, %p185
      %p187 = scmp.ne.s32.totalorder %s173, %s174
      %p188 = scmp.eq.s32.totalorder %s22, 7
      %p189 = por %p187, %p188
      %p191 = scmp.ne.s32.totalorder %s174, %s190
      %p192 = scmp.eq.s32.totalorder %s22, 0
      %p193 = por %p191, %p192
      %p194 = scmp.le.s32.totalorder 1, %s16
      %p195 = scmp.lt.s32.totalorder %s16, 9
      %p196 = pnand %p194, %p195
      %p197 = pneg %p196
      // Predicated region
      $region9: #{tpu_custom_call.1} parent=5 // pred_check
        _
      $region10: #{tpu_custom_call.1} parent=5 // pred_check_branch
        %199 = sbr.rel (%p196) target = $region12
      $region11: #{tpu_custom_call.1} parent=5 // pred_region
        %s200 = ssub.s32 %s16, 1
        // Predicated region
        $region13: #{tpu_custom_call.1} parent=11 // pred_check
          %p201 = pneg %p54
        $region14: #{tpu_custom_call.1} parent=11 // pred_check_branch
          %203 = sbr.rel (%p201) target = $region16
        $region15: #{tpu_custom_call.1} parent=11 // pred_region
          %s204 = smul.u32 6, %s26
          %s206 = ssub.s32 192, 192
          %207 = vsyncadd [#allocation4], %s206
          %s208 = smul.addr %s204, 32
          %s209 = scalar_lea.hbm %s0, %s208
          %s211 = sshll.u32 [#allocation3], 4
          %s212 = int_to_ptr.vmem [resolvable:$true] %s211
          %214 = dma.hbm_to_vmem [thread:$0]  %s209, 192, %s212, [#allocation4]
        $region16: #{tpu_custom_call.1} parent=11 // pred_fallthru
          _
        // Predicated region
        $region17: #{tpu_custom_call.1} parent=11 // pred_check
          %p215 = pneg %p80
        $region18: #{tpu_custom_call.1} parent=11 // pred_check_branch
          %217 = sbr.rel (%p215) target = $region20
        $region19: #{tpu_custom_call.1} parent=11 // pred_region
          %s218 = smul.u32 6, %s26
          %s220 = ssub.s32 192, 192
          %221 = vsyncadd [#allocation7], %s220
          %s222 = smul.addr %s218, 32
          %s223 = scalar_lea.hbm %s1, %s222
          %s225 = sshll.u32 [#allocation6], 4
          %s226 = int_to_ptr.vmem [resolvable:$true] %s225
          %228 = dma.hbm_to_vmem [thread:$0]  %s223, 192, %s226, [#allocation7]
        $region20: #{tpu_custom_call.1} parent=11 // pred_fallthru
          _
      $region12: #{tpu_custom_call.1} parent=5 // pred_fallthru
        _
      %p229 = scmp.lt.s32.totalorder %s16, 8
      // Predicated region
      $region21: #{tpu_custom_call.1} parent=5 // pred_check
        %p230 = pneg %p229
      $region22: #{tpu_custom_call.1} parent=5 // pred_check_branch
        %232 = sbr.rel (%p230) target = $region24
      $region23: #{tpu_custom_call.1} parent=5 // pred_region
        // Predicated region
        $region25: #{tpu_custom_call.1} parent=23 // pred_check
          %p233 = pneg %p102
        $region26: #{tpu_custom_call.1} parent=23 // pred_check_branch
          %235 = sbr.rel (%p233) target = $region28
        $region27: #{tpu_custom_call.1} parent=23 // pred_region
          %s236 = sand.u32 %s16, 1
          %s237 = scalar_lea.sflag [#allocation4], %s236
          %s238 = sand.u32 %s92, 1
          %s239 = smul.addr %s238, 1728
          %s240 = scalar_lea.vmem [#allocation8], %s239
          %s241 = smul.u32 24, %s24
          %s242 = smul.u32 9, %s23
          %s244 = ssub.s32 27648, 27648
          %245 = vsyncadd %s237, %s244
          %s246 = smul.addr %s241, 72
          %s247 = sadd.s32 %s242, %s246
          %s248 = smul.addr %s247, 128
          %s249 = scalar_lea.hbm %s2, %s248
          %s250 = sshll.u32 %s240, 4
          %s251 = int_to_ptr.vmem [resolvable:$true] %s250
          %256 = dma.hbm_to_vmem [thread:$0]  %s249, 27648, %s251, %s237, 9216, 1152, 72
        $region28: #{tpu_custom_call.1} parent=23 // pred_fallthru
          _
        // Predicated region
        $region29: #{tpu_custom_call.1} parent=23 // pred_check
          %p257 = pneg %p128
        $region30: #{tpu_custom_call.1} parent=23 // pred_check_branch
          %259 = sbr.rel (%p257) target = $region32
        $region31: #{tpu_custom_call.1} parent=23 // pred_region
          %s260 = sand.u32 %s16, 1
          %s261 = scalar_lea.sflag [#allocation4], %s260
          %s262 = sand.u32 %s118, 1
          %s263 = smul.addr %s262, 9
          %s264 = scalar_lea.vmem [#allocation9], %s263
          %s265 = smul.u32 9, %s23
          %s267 = ssub.s32 144, 144
          %268 = vsyncadd %s261, %s267
          %s269 = smul.addr %s265, 16
          %s270 = scalar_lea.hbm %s3, %s269
          %s272 = sshll.u32 %s264, 4
          %s273 = int_to_ptr.vmem [resolvable:$true] %s272
          %275 = dma.hbm_to_vmem [thread:$0]  %s270, 144, %s273, %s261
        $region32: #{tpu_custom_call.1} parent=23 // pred_fallthru
          _
        // Predicated region
        $region33: #{tpu_custom_call.1} parent=23 // pred_check
          %p276 = pneg %p154
        $region34: #{tpu_custom_call.1} parent=23 // pred_check_branch
          %278 = sbr.rel (%p276) target = $region36
        $region35: #{tpu_custom_call.1} parent=23 // pred_region
          %s279 = sand.u32 %s16, 1
          %s280 = scalar_lea.sflag [#allocation4], %s279
          %s281 = sand.u32 %s144, 1
          %s282 = smul.addr %s281, 9
          %s283 = scalar_lea.vmem [#allocation10], %s282
          %s284 = smul.u32 9, %s23
          %s286 = ssub.s32 144, 144
          %287 = vsyncadd %s280, %s286
          %s288 = smul.addr %s284, 16
          %s289 = scalar_lea.hbm %s4, %s288
          %s291 = sshll.u32 %s283, 4
          %s292 = int_to_ptr.vmem [resolvable:$true] %s291
          %294 = dma.hbm_to_vmem [thread:$0]  %s289, 144, %s292, %s280
        $region36: #{tpu_custom_call.1} parent=23 // pred_fallthru
          _
      $region24: #{tpu_custom_call.1} parent=5 // pred_fallthru
        _
      %p295 = scmp.le.s32.totalorder 1, %s16
      %p296 = scmp.lt.s32.totalorder %s16, 9
      %p297 = pnand %p295, %p296
      %p298 = pneg %p297
      // Predicated region
      $region37: #{tpu_custom_call.1} parent=5 // pred_check
        _
      $region38: #{tpu_custom_call.1} parent=5 // pred_check_branch
        %300 = sbr.rel (%p297) target = $region40
      $region39: #{tpu_custom_call.1} parent=5 // pred_region
        %s301 = ssub.s32 %s16, 1
        // Predicated region
        $region41: #{tpu_custom_call.1} parent=39 // pred_check
          %p302 = pneg %p54
        $region42: #{tpu_custom_call.1} parent=39 // pred_check_branch
          %304 = sbr.rel (%p302) target = $region44
        $region43: #{tpu_custom_call.1} parent=39 // pred_region
          %305 = dma.done [#allocation4], 192
        $region44: #{tpu_custom_call.1} parent=39 // pred_fallthru
          _
        // Predicated region
        $region45: #{tpu_custom_call.1} parent=39 // pred_check
          %p306 = pneg %p80
        $region46: #{tpu_custom_call.1} parent=39 // pred_check_branch
          %308 = sbr.rel (%p306) target = $region48
        $region47: #{tpu_custom_call.1} parent=39 // pred_region
          %309 = dma.done [#allocation7], 192
        $region48: #{tpu_custom_call.1} parent=39 // pred_fallthru
          _
        %s310 = sand.u32 %s21, 1
        %s311 = scalar_lea.sflag [#allocation4], %s310
        %s312 = sand.u32 %s95, 1
        %s313 = smul.addr %s312, 1728
        %s314 = scalar_lea.vmem [#allocation8], %s313
        // Predicated region
        $region49: #{tpu_custom_call.1} parent=39 // pred_check
          %p315 = pneg %p108
        $region50: #{tpu_custom_call.1} parent=39 // pred_check_branch
          %317 = sbr.rel (%p315) target = $region52
        $region51: #{tpu_custom_call.1} parent=39 // pred_region
          %318 = dma.done %s311, 27648
        $region52: #{tpu_custom_call.1} parent=39 // pred_fallthru
          _
        %s319 = sand.u32 %s21, 1
        %s320 = scalar_lea.sflag [#allocation4], %s319
        %s321 = sand.u32 %s121, 1
        %s322 = smul.addr %s321, 9
        %s323 = scalar_lea.vmem [#allocation9], %s322
        // Predicated region
        $region53: #{tpu_custom_call.1} parent=39 // pred_check
          %p324 = pneg %p134
        $region54: #{tpu_custom_call.1} parent=39 // pred_check_branch
          %326 = sbr.rel (%p324) target = $region56
        $region55: #{tpu_custom_call.1} parent=39 // pred_region
          %327 = dma.done %s320, 144
        $region56: #{tpu_custom_call.1} parent=39 // pred_fallthru
          _
        %s328 = sand.u32 %s21, 1
        %s329 = scalar_lea.sflag [#allocation4], %s328
        %s330 = sand.u32 %s147, 1
        %s331 = smul.addr %s330, 9
        %s332 = scalar_lea.vmem [#allocation10], %s331
        // Predicated region
        $region57: #{tpu_custom_call.1} parent=39 // pred_check
          %p333 = pneg %p160
        $region58: #{tpu_custom_call.1} parent=39 // pred_check_branch
          %335 = sbr.rel (%p333) target = $region60
        $region59: #{tpu_custom_call.1} parent=39 // pred_region
          %336 = dma.done %s329, 144
        $region60: #{tpu_custom_call.1} parent=39 // pred_fallthru
          _
        %p337 = pneg %p54
        %p338 = pneg %p51
        %p339 = pneg %p80
        %p340 = pneg %p77
        %s341 = sand.u32 %s21, 1
        %s342 = scalar_lea.sflag [#allocation4], %s341
        %s343 = sand.u32 %s95, 1
        %s344 = smul.addr %s343, 1728
        %s345 = scalar_lea.vmem [#allocation8], %s344
        %p346 = pneg %p108
        %p347 = pneg %p105
        %s348 = sand.u32 %s21, 1
        %s349 = scalar_lea.sflag [#allocation4], %s348
        %s350 = sand.u32 %s121, 1
        %s351 = smul.addr %s350, 9
        %s352 = scalar_lea.vmem [#allocation9], %s351
        %p353 = pneg %p134
        %p354 = pneg %p131
        %s355 = sand.u32 %s21, 1
        %s356 = scalar_lea.sflag [#allocation4], %s355
        %s357 = sand.u32 %s147, 1
        %s358 = smul.addr %s357, 9
        %s359 = scalar_lea.vmem [#allocation10], %s358
        %p360 = pneg %p160
        %p361 = pneg %p157
        %p362 = pneg %p186
        %p363 = pneg %p183
        %s364 = sand.u32 %s173, 1
        %s365 = scalar_lea.sflag [#allocation5], %s364
        %s366 = sand.u32 %s173, 1
        %s367 = smul.addr %s366, 36
        %s368 = scalar_lea.vmem [#allocation11], %s367
        %s369 = smul.u32 6, %s26
        %s370 = smul.u32 6, %s26
        %s371 = smul.u32 24, %s26
        %s372 = smul.u32 9, %s25
        %s373 = smul.u32 9, %s25
        %s374 = smul.u32 9, %s25
        %s375 = smul.u32 9, %s25
        %p376 = scmp.eq.s32.totalorder %s26, 0
        // Predicated region
        $region61: #{tpu_custom_call.1} parent=39 // pred_check
          %p377 = pneg %p376
        $region62: #{tpu_custom_call.1} parent=39 // pred_check_branch
          %379 = sbr.rel (%p377) target = $region64
        $region63: #{tpu_custom_call.1} parent=39 // pred_region
          %380 = vst [vmem:[#allocation2] sm:$0xff] 0.0
          %381 = vst [vmem:[#allocation2 + $0x8] sm:$0xff] 0.0
          %382 = vst [vmem:[#allocation2 + $0x10] sm:$0xff] 0.0
          %383 = vst [vmem:[#allocation2 + $0x18] sm:$0xff] 0.0
          %384 = vst [vmem:[#allocation2 + $0x20] sm:$0xf] 0.0
        $region64: #{tpu_custom_call.1} parent=39 // pred_fallthru
          _
        %v385 = vld [vmem:[#allocation3] sm:$0xff]
        %v386 = vld [vmem:[#allocation3 + $0x8] sm:$0xf]
        %v387 = vld [vmem:[#allocation6] sm:$0xff]
        %v388 = vld [vmem:[#allocation6 + $0x8] sm:$0xf]
        %v391 = vcombine.high %v385, %v385
        %v393 = vunpack.c.l.s4 1983009808
        %v394 = vunpack.c.0.s8 %v393
        %v395 = vlaneseq
        %v396 = vshrl.u32 %v395, 7
        %v397 = vsub.s32 %v394, %v396
        %v398 = vrot.slane %v385, %v397
        %v400 = vunpack.c.l.s4 1983009808
        %v401 = vunpack.c.0.s8 %v400
        %v402 = vlaneseq
        %v403 = vshrl.u32 %v402, 7
        %v404 = vsub.s32 %v401, %v403
        %v405 = vrot.slane %v391, %v404
        %v406 = vcombine.high %v398, %v398
        %v407 = vcombine.high %v405, %v405
        %v409 = vunpack.c.l.s4 1983009808
        %v410 = vunpack.c.0.s8 %v409
        %v411 = vlaneseq
        %v412 = vshrl.u32 %v411, 7
        %v413 = vsub.s32 %v410, %v412
        %v414 = vrot.slane %v386, %v413
        %v415 = vcombine.high %v414, %v414
        %v424 = vcombine.low %v387, %v387
        %v426 = vunpack.c.l.s4 1983009808
        %v427 = vunpack.c.0.s8 %v426
        %v428 = vlaneseq
        %v429 = vshrl.u32 %v428, 7
        %v430 = vsub.s32 %v427, %v429
        %v431 = vrot.slane %v424, %v430
        %v433 = vunpack.c.l.s4 1983009808
        %v434 = vunpack.c.0.s8 %v433
        %v435 = vlaneseq
        %v436 = vshrl.u32 %v435, 7
        %v437 = vsub.s32 %v434, %v436
        %v438 = vrot.slane %v387, %v437
        %v439 = vcombine.high %v431, %v431
        %v440 = vcombine.high %v438, %v438
        %v441 = vcombine.low %v388, %v388
        %v443 = vunpack.c.l.s4 1983009808
        %v444 = vunpack.c.0.s8 %v443
        %v445 = vlaneseq
        %v446 = vshrl.u32 %v445, 7
        %v447 = vsub.s32 %v444, %v446
        %v448 = vrot.slane %v441, %v447
        %v449 = vcombine.high %v448, %v448
        %vm456 = vcmask 1041408
        %v457 = vsel %vm456, %v398, %v431
        %v458 = vsel %vm456, %v406, %v439
        %v459 = vsel %vm456, %v405, %v438
        %v460 = vsel %vm456, %v407, %v440
        %v461 = vsel %vm456, %v414, %v448
        %v462 = vsel %vm456, %v415, %v449
        %v463 = vld [vmem:[%s314] sm:$0xff]
        %v464 = vld [vmem:[%s314 + $0x8] sm:$0xff]
        %v465 = vld [vmem:[%s314 + $0x10] sm:$0xff]
        %v466 = vld [vmem:[%s314 + $0x18] sm:$0xff]
        %v467 = vld [vmem:[%s314 + $0x20] sm:$0xff]
        %v468 = vld [vmem:[%s314 + $0x28] sm:$0xff]
        %v469 = vld [vmem:[%s314 + $0x30] sm:$0xff]
        %v470 = vld [vmem:[%s314 + $0x38] sm:$0xff]
        %v471 = vld [vmem:[%s314 + $0x40] sm:$0xff]
        %v472 = vld [vmem:[%s314 + $0x48] sm:$0xff]
        %v473 = vld [vmem:[%s314 + $0x50] sm:$0xff]
        %v474 = vld [vmem:[%s314 + $0x58] sm:$0xff]
        %v475 = vld [vmem:[%s314 + $0x60] sm:$0xff]
        %v476 = vld [vmem:[%s314 + $0x68] sm:$0xff]
        %v477 = vld [vmem:[%s314 + $0x70] sm:$0xff]
        %v478 = vld [vmem:[%s314 + $0x78] sm:$0xff]
        %v479 = vld [vmem:[%s314 + $0x80] sm:$0xff]
        %v480 = vld [vmem:[%s314 + $0x88] sm:$0xff]
        %v481 = vld [vmem:[%s314 + $0x90] sm:$0xff]
        %v482 = vld [vmem:[%s314 + $0x98] sm:$0xff]
        %v483 = vld [vmem:[%s314 + $0xa0] sm:$0xff]
        %v484 = vld [vmem:[%s314 + $0xa8] sm:$0xff]
        %v485 = vld [vmem:[%s314 + $0xb0] sm:$0xff]
        %v486 = vld [vmem:[%s314 + $0xb8] sm:$0xff]
        %v487 = vld [vmem:[%s314 + $0xc0] sm:$0xff]
        %v488 = vld [vmem:[%s314 + $0xc8] sm:$0xff]
        %v489 = vld [vmem:[%s314 + $0xd0] sm:$0xff]
        %v490 = vld [vmem:[%s314 + $0xd8] sm:$0xff]
        %v491 = vld [vmem:[%s314 + $0xe0] sm:$0xff]
        %v492 = vld [vmem:[%s314 + $0xe8] sm:$0xff]
        %v493 = vld [vmem:[%s314 + $0xf0] sm:$0xff]
        %v494 = vld [vmem:[%s314 + $0xf8] sm:$0xff]
        %v495 = vld [vmem:[%s314 + $0x100] sm:$0xff]
        %v496 = vld [vmem:[%s314 + $0x108] sm:$0xff]
        %v497 = vld [vmem:[%s314 + $0x110] sm:$0xff]
        %v498 = vld [vmem:[%s314 + $0x118] sm:$0xff]
        %v499 = vld [vmem:[%s314 + $0x120] sm:$0xff]
        %v500 = vld [vmem:[%s314 + $0x128] sm:$0xff]
        %v501 = vld [vmem:[%s314 + $0x130] sm:$0xff]
        %v502 = vld [vmem:[%s314 + $0x138] sm:$0xff]
        %v503 = vld [vmem:[%s314 + $0x140] sm:$0xff]
        %v504 = vld [vmem:[%s314 + $0x148] sm:$0xff]
        %v505 = vld [vmem:[%s314 + $0x150] sm:$0xff]
        %v506 = vld [vmem:[%s314 + $0x158] sm:$0xff]
        %v507 = vld [vmem:[%s314 + $0x160] sm:$0xff]
        %v508 = vld [vmem:[%s314 + $0x168] sm:$0xff]
        %v509 = vld [vmem:[%s314 + $0x170] sm:$0xff]
        %v510 = vld [vmem:[%s314 + $0x178] sm:$0xff]
        %v511 = vld [vmem:[%s314 + $0x180] sm:$0xff]
        %v512 = vld [vmem:[%s314 + $0x188] sm:$0xff]
        %v513 = vld [vmem:[%s314 + $0x190] sm:$0xff]
        %v514 = vld [vmem:[%s314 + $0x198] sm:$0xff]
        %v515 = vld [vmem:[%s314 + $0x1a0] sm:$0xff]
        %v516 = vld [vmem:[%s314 + $0x1a8] sm:$0xff]
        %v517 = vld [vmem:[%s314 + $0x1b0] sm:$0xff]
        %v518 = vld [vmem:[%s314 + $0x1b8] sm:$0xff]
        %v519 = vld [vmem:[%s314 + $0x1c0] sm:$0xff]
        %v520 = vld [vmem:[%s314 + $0x1c8] sm:$0xff]
        %v521 = vld [vmem:[%s314 + $0x1d0] sm:$0xff]
        %v522 = vld [vmem:[%s314 + $0x1d8] sm:$0xff]
        %v523 = vld [vmem:[%s314 + $0x1e0] sm:$0xff]
        %v524 = vld [vmem:[%s314 + $0x1e8] sm:$0xff]
        %v525 = vld [vmem:[%s314 + $0x1f0] sm:$0xff]
        %v526 = vld [vmem:[%s314 + $0x1f8] sm:$0xff]
        %v527 = vld [vmem:[%s314 + $0x200] sm:$0xff]
        %v528 = vld [vmem:[%s314 + $0x208] sm:$0xff]
        %v529 = vld [vmem:[%s314 + $0x210] sm:$0xff]
        %v530 = vld [vmem:[%s314 + $0x218] sm:$0xff]
        %v531 = vld [vmem:[%s314 + $0x220] sm:$0xff]
        %v532 = vld [vmem:[%s314 + $0x228] sm:$0xff]
        %v533 = vld [vmem:[%s314 + $0x230] sm:$0xff]
        %v534 = vld [vmem:[%s314 + $0x238] sm:$0xff]
        %v535 = vld [vmem:[%s314 + $0x240] sm:$0xff]
        %v536 = vld [vmem:[%s314 + $0x248] sm:$0xff]
        %v537 = vld [vmem:[%s314 + $0x250] sm:$0xff]
        %v538 = vld [vmem:[%s314 + $0x258] sm:$0xff]
        %v539 = vld [vmem:[%s314 + $0x260] sm:$0xff]
        %v540 = vld [vmem:[%s314 + $0x268] sm:$0xff]
        %v541 = vld [vmem:[%s314 + $0x270] sm:$0xff]
        %v542 = vld [vmem:[%s314 + $0x278] sm:$0xff]
        %v543 = vld [vmem:[%s314 + $0x280] sm:$0xff]
        %v544 = vld [vmem:[%s314 + $0x288] sm:$0xff]
        %v545 = vld [vmem:[%s314 + $0x290] sm:$0xff]
        %v546 = vld [vmem:[%s314 + $0x298] sm:$0xff]
        %v547 = vld [vmem:[%s314 + $0x2a0] sm:$0xff]
        %v548 = vld [vmem:[%s314 + $0x2a8] sm:$0xff]
        %v549 = vld [vmem:[%s314 + $0x2b0] sm:$0xff]
        %v550 = vld [vmem:[%s314 + $0x2b8] sm:$0xff]
        %v551 = vld [vmem:[%s314 + $0x2c0] sm:$0xff]
        %v552 = vld [vmem:[%s314 + $0x2c8] sm:$0xff]
        %v553 = vld [vmem:[%s314 + $0x2d0] sm:$0xff]
        %v554 = vld [vmem:[%s314 + $0x2d8] sm:$0xff]
        %v555 = vld [vmem:[%s314 + $0x2e0] sm:$0xff]
        %v556 = vld [vmem:[%s314 + $0x2e8] sm:$0xff]
        %v557 = vld [vmem:[%s314 + $0x2f0] sm:$0xff]
        %v558 = vld [vmem:[%s314 + $0x2f8] sm:$0xff]
        %v559 = vld [vmem:[%s314 + $0x300] sm:$0xff]
        %v560 = vld [vmem:[%s314 + $0x308] sm:$0xff]
        %v561 = vld [vmem:[%s314 + $0x310] sm:$0xff]
        %v562 = vld [vmem:[%s314 + $0x318] sm:$0xff]
        %v563 = vld [vmem:[%s314 + $0x320] sm:$0xff]
        %v564 = vld [vmem:[%s314 + $0x328] sm:$0xff]
        %v565 = vld [vmem:[%s314 + $0x330] sm:$0xff]
        %v566 = vld [vmem:[%s314 + $0x338] sm:$0xff]
        %v567 = vld [vmem:[%s314 + $0x340] sm:$0xff]
        %v568 = vld [vmem:[%s314 + $0x348] sm:$0xff]
        %v569 = vld [vmem:[%s314 + $0x350] sm:$0xff]
        %v570 = vld [vmem:[%s314 + $0x358] sm:$0xff]
        %v571 = vld [vmem:[%s314 + $0x360] sm:$0xff]
        %v572 = vld [vmem:[%s314 + $0x368] sm:$0xff]
        %v573 = vld [vmem:[%s314 + $0x370] sm:$0xff]
        %v574 = vld [vmem:[%s314 + $0x378] sm:$0xff]
        %v575 = vld [vmem:[%s314 + $0x380] sm:$0xff]
        %v576 = vld [vmem:[%s314 + $0x388] sm:$0xff]
        %v577 = vld [vmem:[%s314 + $0x390] sm:$0xff]
        %v578 = vld [vmem:[%s314 + $0x398] sm:$0xff]
        %v579 = vld [vmem:[%s314 + $0x3a0] sm:$0xff]
        %v580 = vld [vmem:[%s314 + $0x3a8] sm:$0xff]
        %v581 = vld [vmem:[%s314 + $0x3b0] sm:$0xff]
        %v582 = vld [vmem:[%s314 + $0x3b8] sm:$0xff]
        %v583 = vld [vmem:[%s314 + $0x3c0] sm:$0xff]
        %v584 = vld [vmem:[%s314 + $0x3c8] sm:$0xff]
        %v585 = vld [vmem:[%s314 + $0x3d0] sm:$0xff]
        %v586 = vld [vmem:[%s314 + $0x3d8] sm:$0xff]
        %v587 = vld [vmem:[%s314 + $0x3e0] sm:$0xff]
        %v588 = vld [vmem:[%s314 + $0x3e8] sm:$0xff]
        %v589 = vld [vmem:[%s314 + $0x3f0] sm:$0xff]
        %v590 = vld [vmem:[%s314 + $0x3f8] sm:$0xff]
        %v591 = vld [vmem:[%s314 + $0x400] sm:$0xff]
        %v592 = vld [vmem:[%s314 + $0x408] sm:$0xff]
        %v593 = vld [vmem:[%s314 + $0x410] sm:$0xff]
        %v594 = vld [vmem:[%s314 + $0x418] sm:$0xff]
        %v595 = vld [vmem:[%s314 + $0x420] sm:$0xff]
        %v596 = vld [vmem:[%s314 + $0x428] sm:$0xff]
        %v597 = vld [vmem:[%s314 + $0x430] sm:$0xff]
        %v598 = vld [vmem:[%s314 + $0x438] sm:$0xff]
        %v599 = vld [vmem:[%s314 + $0x440] sm:$0xff]
        %v600 = vld [vmem:[%s314 + $0x448] sm:$0xff]
        %v601 = vld [vmem:[%s314 + $0x450] sm:$0xff]
        %v602 = vld [vmem:[%s314 + $0x458] sm:$0xff]
        %v603 = vld [vmem:[%s314 + $0x460] sm:$0xff]
        %v604 = vld [vmem:[%s314 + $0x468] sm:$0xff]
        %v605 = vld [vmem:[%s314 + $0x470] sm:$0xff]
        %v606 = vld [vmem:[%s314 + $0x478] sm:$0xff]
        %v607 = vld [vmem:[%s314 + $0x480] sm:$0xff]
        %v608 = vld [vmem:[%s314 + $0x488] sm:$0xff]
        %v609 = vld [vmem:[%s314 + $0x490] sm:$0xff]
        %v610 = vld [vmem:[%s314 + $0x498] sm:$0xff]
        %v611 = vld [vmem:[%s314 + $0x4a0] sm:$0xff]
        %v612 = vld [vmem:[%s314 + $0x4a8] sm:$0xff]
        %v613 = vld [vmem:[%s314 + $0x4b0] sm:$0xff]
        %v614 = vld [vmem:[%s314 + $0x4b8] sm:$0xff]
        %v615 = vld [vmem:[%s314 + $0x4c0] sm:$0xff]
        %v616 = vld [vmem:[%s314 + $0x4c8] sm:$0xff]
        %v617 = vld [vmem:[%s314 + $0x4d0] sm:$0xff]
        %v618 = vld [vmem:[%s314 + $0x4d8] sm:$0xff]
        %v619 = vld [vmem:[%s314 + $0x4e0] sm:$0xff]
        %v620 = vld [vmem:[%s314 + $0x4e8] sm:$0xff]
        %v621 = vld [vmem:[%s314 + $0x4f0] sm:$0xff]
        %v622 = vld [vmem:[%s314 + $0x4f8] sm:$0xff]
        %v623 = vld [vmem:[%s314 + $0x500] sm:$0xff]
        %v624 = vld [vmem:[%s314 + $0x508] sm:$0xff]
        %v625 = vld [vmem:[%s314 + $0x510] sm:$0xff]
        %v626 = vld [vmem:[%s314 + $0x518] sm:$0xff]
        %v627 = vld [vmem:[%s314 + $0x520] sm:$0xff]
        %v628 = vld [vmem:[%s314 + $0x528] sm:$0xff]
        %v629 = vld [vmem:[%s314 + $0x530] sm:$0xff]
        %v630 = vld [vmem:[%s314 + $0x538] sm:$0xff]
        %v631 = vld [vmem:[%s314 + $0x540] sm:$0xff]
        %v632 = vld [vmem:[%s314 + $0x548] sm:$0xff]
        %v633 = vld [vmem:[%s314 + $0x550] sm:$0xff]
        %v634 = vld [vmem:[%s314 + $0x558] sm:$0xff]
        %v635 = vld [vmem:[%s314 + $0x560] sm:$0xff]
        %v636 = vld [vmem:[%s314 + $0x568] sm:$0xff]
        %v637 = vld [vmem:[%s314 + $0x570] sm:$0xff]
        %v638 = vld [vmem:[%s314 + $0x578] sm:$0xff]
        %v639 = vld [vmem:[%s314 + $0x580] sm:$0xff]
        %v640 = vld [vmem:[%s314 + $0x588] sm:$0xff]
        %v641 = vld [vmem:[%s314 + $0x590] sm:$0xff]
        %v642 = vld [vmem:[%s314 + $0x598] sm:$0xff]
        %v643 = vld [vmem:[%s314 + $0x5a0] sm:$0xff]
        %v644 = vld [vmem:[%s314 + $0x5a8] sm:$0xff]
        %v645 = vld [vmem:[%s314 + $0x5b0] sm:$0xff]
        %v646 = vld [vmem:[%s314 + $0x5b8] sm:$0xff]
        %v647 = vld [vmem:[%s314 + $0x5c0] sm:$0xff]
        %v648 = vld [vmem:[%s314 + $0x5c8] sm:$0xff]
        %v649 = vld [vmem:[%s314 + $0x5d0] sm:$0xff]
        %v650 = vld [vmem:[%s314 + $0x5d8] sm:$0xff]
        %v651 = vld [vmem:[%s314 + $0x5e0] sm:$0xff]
        %v652 = vld [vmem:[%s314 + $0x5e8] sm:$0xff]
        %v653 = vld [vmem:[%s314 + $0x5f0] sm:$0xff]
        %v654 = vld [vmem:[%s314 + $0x5f8] sm:$0xff]
        %v655 = vld [vmem:[%s314 + $0x600] sm:$0xff]
        %v656 = vld [vmem:[%s314 + $0x608] sm:$0xff]
        %v657 = vld [vmem:[%s314 + $0x610] sm:$0xff]
        %v658 = vld [vmem:[%s314 + $0x618] sm:$0xff]
        %v659 = vld [vmem:[%s314 + $0x620] sm:$0xff]
        %v660 = vld [vmem:[%s314 + $0x628] sm:$0xff]
        %v661 = vld [vmem:[%s314 + $0x630] sm:$0xff]
        %v662 = vld [vmem:[%s314 + $0x638] sm:$0xff]
        %v663 = vld [vmem:[%s314 + $0x640] sm:$0xff]
        %v664 = vld [vmem:[%s314 + $0x648] sm:$0xff]
        %v665 = vld [vmem:[%s314 + $0x650] sm:$0xff]
        %v666 = vld [vmem:[%s314 + $0x658] sm:$0xff]
        %v667 = vld [vmem:[%s314 + $0x660] sm:$0xff]
        %v668 = vld [vmem:[%s314 + $0x668] sm:$0xff]
        %v669 = vld [vmem:[%s314 + $0x670] sm:$0xff]
        %v670 = vld [vmem:[%s314 + $0x678] sm:$0xff]
        %v671 = vld [vmem:[%s314 + $0x680] sm:$0xff]
        %v672 = vld [vmem:[%s314 + $0x688] sm:$0xff]
        %v673 = vld [vmem:[%s314 + $0x690] sm:$0xff]
        %v674 = vld [vmem:[%s314 + $0x698] sm:$0xff]
        %v675 = vld [vmem:[%s314 + $0x6a0] sm:$0xff]
        %v676 = vld [vmem:[%s314 + $0x6a8] sm:$0xff]
        %v677 = vld [vmem:[%s314 + $0x6b0] sm:$0xff]
        %v678 = vld [vmem:[%s314 + $0x6b8] sm:$0xff]
        %v679 = vunpack.c.0.s8 %v463
        %v680 = vunpack.c.0.s8 %v464
        %v681 = vunpack.c.0.s8 %v465
        %v682 = vunpack.c.0.s8 %v466
        %v683 = vunpack.c.0.s8 %v467
        %v684 = vunpack.c.0.s8 %v468
        %v685 = vunpack.c.0.s8 %v469
        %v686 = vunpack.c.0.s8 %v470
        %v687 = vunpack.c.0.s8 %v471
        %v688 = vunpack.c.1.s8 %v463
        %v689 = vunpack.c.1.s8 %v464
        %v690 = vunpack.c.1.s8 %v465
        %v691 = vunpack.c.1.s8 %v466
        %v692 = vunpack.c.1.s8 %v467
        %v693 = vunpack.c.1.s8 %v468
        %v694 = vunpack.c.1.s8 %v469
        %v695 = vunpack.c.1.s8 %v470
        %v696 = vunpack.c.1.s8 %v471
        %v697 = vunpack.c.2.s8 %v463
        %v698 = vunpack.c.2.s8 %v464
        %v699 = vunpack.c.2.s8 %v465
        %v700 = vunpack.c.2.s8 %v466
        %v701 = vunpack.c.2.s8 %v467
        %v702 = vunpack.c.2.s8 %v468
        %v703 = vunpack.c.2.s8 %v469
        %v704 = vunpack.c.2.s8 %v470
        %v705 = vunpack.c.2.s8 %v471
        %v706 = vunpack.c.3.s8 %v463
        %v707 = vunpack.c.3.s8 %v464
        %v708 = vunpack.c.3.s8 %v465
        %v709 = vunpack.c.3.s8 %v466
        %v710 = vunpack.c.3.s8 %v467
        %v711 = vunpack.c.3.s8 %v468
        %v712 = vunpack.c.3.s8 %v469
        %v713 = vunpack.c.3.s8 %v470
        %v714 = vunpack.c.3.s8 %v471
        %v715 = vunpack.c.0.s8 %v472
        %v716 = vunpack.c.0.s8 %v473
        %v717 = vunpack.c.0.s8 %v474
        %v718 = vunpack.c.0.s8 %v475
        %v719 = vunpack.c.0.s8 %v476
        %v720 = vunpack.c.0.s8 %v477
        %v721 = vunpack.c.0.s8 %v478
        %v722 = vunpack.c.0.s8 %v479
        %v723 = vunpack.c.0.s8 %v480
        %v724 = vunpack.c.1.s8 %v472
        %v725 = vunpack.c.1.s8 %v473
        %v726 = vunpack.c.1.s8 %v474
        %v727 = vunpack.c.1.s8 %v475
        %v728 = vunpack.c.1.s8 %v476
        %v729 = vunpack.c.1.s8 %v477
        %v730 = vunpack.c.1.s8 %v478
        %v731 = vunpack.c.1.s8 %v479
        %v732 = vunpack.c.1.s8 %v480
        %v733 = vunpack.c.2.s8 %v472
        %v734 = vunpack.c.2.s8 %v473
        %v735 = vunpack.c.2.s8 %v474
        %v736 = vunpack.c.2.s8 %v475
        %v737 = vunpack.c.2.s8 %v476
        %v738 = vunpack.c.2.s8 %v477
        %v739 = vunpack.c.2.s8 %v478
        %v740 = vunpack.c.2.s8 %v479
        %v741 = vunpack.c.2.s8 %v480
        %v742 = vunpack.c.3.s8 %v472
        %v743 = vunpack.c.3.s8 %v473
        %v744 = vunpack.c.3.s8 %v474
        %v745 = vunpack.c.3.s8 %v475
        %v746 = vunpack.c.3.s8 %v476
        %v747 = vunpack.c.3.s8 %v477
        %v748 = vunpack.c.3.s8 %v478
        %v749 = vunpack.c.3.s8 %v479
        %v750 = vunpack.c.3.s8 %v480
        %v751 = vunpack.c.0.s8 %v481
        %v752 = vunpack.c.0.s8 %v482
        %v753 = vunpack.c.0.s8 %v483
        %v754 = vunpack.c.0.s8 %v484
        %v755 = vunpack.c.0.s8 %v485
        %v756 = vunpack.c.0.s8 %v486
        %v757 = vunpack.c.0.s8 %v487
        %v758 = vunpack.c.0.s8 %v488
        %v759 = vunpack.c.0.s8 %v489
        %v760 = vunpack.c.1.s8 %v481
        %v761 = vunpack.c.1.s8 %v482
        %v762 = vunpack.c.1.s8 %v483
        %v763 = vunpack.c.1.s8 %v484
        %v764 = vunpack.c.1.s8 %v485
        %v765 = vunpack.c.1.s8 %v486
        %v766 = vunpack.c.1.s8 %v487
        %v767 = vunpack.c.1.s8 %v488
        %v768 = vunpack.c.1.s8 %v489
        %v769 = vunpack.c.2.s8 %v481
        %v770 = vunpack.c.2.s8 %v482
        %v771 = vunpack.c.2.s8 %v483
        %v772 = vunpack.c.2.s8 %v484
        %v773 = vunpack.c.2.s8 %v485
        %v774 = vunpack.c.2.s8 %v486
        %v775 = vunpack.c.2.s8 %v487
        %v776 = vunpack.c.2.s8 %v488
        %v777 = vunpack.c.2.s8 %v489
        %v778 = vunpack.c.3.s8 %v481
        %v779 = vunpack.c.3.s8 %v482
        %v780 = vunpack.c.3.s8 %v483
        %v781 = vunpack.c.3.s8 %v484
        %v782 = vunpack.c.3.s8 %v485
        %v783 = vunpack.c.3.s8 %v486
        %v784 = vunpack.c.3.s8 %v487
        %v785 = vunpack.c.3.s8 %v488
        %v786 = vunpack.c.3.s8 %v489
        %v787 = vunpack.c.0.s8 %v490
        %v788 = vunpack.c.0.s8 %v491
        %v789 = vunpack.c.0.s8 %v492
        %v790 = vunpack.c.0.s8 %v493
        %v791 = vunpack.c.0.s8 %v494
        %v792 = vunpack.c.0.s8 %v495
        %v793 = vunpack.c.0.s8 %v496
        %v794 = vunpack.c.0.s8 %v497
        %v795 = vunpack.c.0.s8 %v498
        %v796 = vunpack.c.1.s8 %v490
        %v797 = vunpack.c.1.s8 %v491
        %v798 = vunpack.c.1.s8 %v492
        %v799 = vunpack.c.1.s8 %v493
        %v800 = vunpack.c.1.s8 %v494
        %v801 = vunpack.c.1.s8 %v495
        %v802 = vunpack.c.1.s8 %v496
        %v803 = vunpack.c.1.s8 %v497
        %v804 = vunpack.c.1.s8 %v498
        %v805 = vunpack.c.2.s8 %v490
        %v806 = vunpack.c.2.s8 %v491
        %v807 = vunpack.c.2.s8 %v492
        %v808 = vunpack.c.2.s8 %v493
        %v809 = vunpack.c.2.s8 %v494
        %v810 = vunpack.c.2.s8 %v495
        %v811 = vunpack.c.2.s8 %v496
        %v812 = vunpack.c.2.s8 %v497
        %v813 = vunpack.c.2.s8 %v498
        %v814 = vunpack.c.3.s8 %v490
        %v815 = vunpack.c.3.s8 %v491
        %v816 = vunpack.c.3.s8 %v492
        %v817 = vunpack.c.3.s8 %v493
        %v818 = vunpack.c.3.s8 %v494
        %v819 = vunpack.c.3.s8 %v495
        %v820 = vunpack.c.3.s8 %v496
        %v821 = vunpack.c.3.s8 %v497
        %v822 = vunpack.c.3.s8 %v498
        %v823 = vunpack.c.0.s8 %v499
        %v824 = vunpack.c.0.s8 %v500
        %v825 = vunpack.c.0.s8 %v501
        %v826 = vunpack.c.0.s8 %v502
        %v827 = vunpack.c.0.s8 %v503
        %v828 = vunpack.c.0.s8 %v504
        %v829 = vunpack.c.0.s8 %v505
        %v830 = vunpack.c.0.s8 %v506
        %v831 = vunpack.c.0.s8 %v507
        %v832 = vunpack.c.1.s8 %v499
        %v833 = vunpack.c.1.s8 %v500
        %v834 = vunpack.c.1.s8 %v501
        %v835 = vunpack.c.1.s8 %v502
        %v836 = vunpack.c.1.s8 %v503
        %v837 = vunpack.c.1.s8 %v504
        %v838 = vunpack.c.1.s8 %v505
        %v839 = vunpack.c.1.s8 %v506
        %v840 = vunpack.c.1.s8 %v507
        %v841 = vunpack.c.2.s8 %v499
        %v842 = vunpack.c.2.s8 %v500
        %v843 = vunpack.c.2.s8 %v501
        %v844 = vunpack.c.2.s8 %v502
        %v845 = vunpack.c.2.s8 %v503
        %v846 = vunpack.c.2.s8 %v504
        %v847 = vunpack.c.2.s8 %v505
        %v848 = vunpack.c.2.s8 %v506
        %v849 = vunpack.c.2.s8 %v507
        %v850 = vunpack.c.3.s8 %v499
        %v851 = vunpack.c.3.s8 %v500
        %v852 = vunpack.c.3.s8 %v501
        %v853 = vunpack.c.3.s8 %v502
        %v854 = vunpack.c.3.s8 %v503
        %v855 = vunpack.c.3.s8 %v504
        %v856 = vunpack.c.3.s8 %v505
        %v857 = vunpack.c.3.s8 %v506
        %v858 = vunpack.c.3.s8 %v507
        %v859 = vunpack.c.0.s8 %v508
        %v860 = vunpack.c.0.s8 %v509
        %v861 = vunpack.c.0.s8 %v510
        %v862 = vunpack.c.0.s8 %v511
        %v863 = vunpack.c.0.s8 %v512
        %v864 = vunpack.c.0.s8 %v513
        %v865 = vunpack.c.0.s8 %v514
        %v866 = vunpack.c.0.s8 %v515
        %v867 = vunpack.c.0.s8 %v516
        %v868 = vunpack.c.1.s8 %v508
        %v869 = vunpack.c.1.s8 %v509
        %v870 = vunpack.c.1.s8 %v510
        %v871 = vunpack.c.1.s8 %v511
        %v872 = vunpack.c.1.s8 %v512
        %v873 = vunpack.c.1.s8 %v513
        %v874 = vunpack.c.1.s8 %v514
        %v875 = vunpack.c.1.s8 %v515
        %v876 = vunpack.c.1.s8 %v516
        %v877 = vunpack.c.2.s8 %v508
        %v878 = vunpack.c.2.s8 %v509
        %v879 = vunpack.c.2.s8 %v510
        %v880 = vunpack.c.2.s8 %v511
        %v881 = vunpack.c.2.s8 %v512
        %v882 = vunpack.c.2.s8 %v513
        %v883 = vunpack.c.2.s8 %v514
        %v884 = vunpack.c.2.s8 %v515
        %v885 = vunpack.c.2.s8 %v516
        %v886 = vunpack.c.3.s8 %v508
        %v887 = vunpack.c.3.s8 %v509
        %v888 = vunpack.c.3.s8 %v510
        %v889 = vunpack.c.3.s8 %v511
        %v890 = vunpack.c.3.s8 %v512
        %v891 = vunpack.c.3.s8 %v513
        %v892 = vunpack.c.3.s8 %v514
        %v893 = vunpack.c.3.s8 %v515
        %v894 = vunpack.c.3.s8 %v516
        %v895 = vunpack.c.0.s8 %v517
        %v896 = vunpack.c.0.s8 %v518
        %v897 = vunpack.c.0.s8 %v519
        %v898 = vunpack.c.0.s8 %v520
        %v899 = vunpack.c.0.s8 %v521
        %v900 = vunpack.c.0.s8 %v522
        %v901 = vunpack.c.0.s8 %v523
        %v902 = vunpack.c.0.s8 %v524
        %v903 = vunpack.c.0.s8 %v525
        %v904 = vunpack.c.1.s8 %v517
        %v905 = vunpack.c.1.s8 %v518
        %v906 = vunpack.c.1.s8 %v519
        %v907 = vunpack.c.1.s8 %v520
        %v908 = vunpack.c.1.s8 %v521
        %v909 = vunpack.c.1.s8 %v522
        %v910 = vunpack.c.1.s8 %v523
        %v911 = vunpack.c.1.s8 %v524
        %v912 = vunpack.c.1.s8 %v525
        %v913 = vunpack.c.2.s8 %v517
        %v914 = vunpack.c.2.s8 %v518
        %v915 = vunpack.c.2.s8 %v519
        %v916 = vunpack.c.2.s8 %v520
        %v917 = vunpack.c.2.s8 %v521
        %v918 = vunpack.c.2.s8 %v522
        %v919 = vunpack.c.2.s8 %v523
        %v920 = vunpack.c.2.s8 %v524
        %v921 = vunpack.c.2.s8 %v525
        %v922 = vunpack.c.3.s8 %v517
        %v923 = vunpack.c.3.s8 %v518
        %v924 = vunpack.c.3.s8 %v519
        %v925 = vunpack.c.3.s8 %v520
        %v926 = vunpack.c.3.s8 %v521
        %v927 = vunpack.c.3.s8 %v522
        %v928 = vunpack.c.3.s8 %v523
        %v929 = vunpack.c.3.s8 %v524
        %v930 = vunpack.c.3.s8 %v525
        %v931 = vunpack.c.0.s8 %v526
        %v932 = vunpack.c.0.s8 %v527
        %v933 = vunpack.c.0.s8 %v528
        %v934 = vunpack.c.0.s8 %v529
        %v935 = vunpack.c.0.s8 %v530
        %v936 = vunpack.c.0.s8 %v531
        %v937 = vunpack.c.0.s8 %v532
        %v938 = vunpack.c.0.s8 %v533
        %v939 = vunpack.c.0.s8 %v534
        %v940 = vunpack.c.1.s8 %v526
        %v941 = vunpack.c.1.s8 %v527
        %v942 = vunpack.c.1.s8 %v528
        %v943 = vunpack.c.1.s8 %v529
        %v944 = vunpack.c.1.s8 %v530
        %v945 = vunpack.c.1.s8 %v531
        %v946 = vunpack.c.1.s8 %v532
        %v947 = vunpack.c.1.s8 %v533
        %v948 = vunpack.c.1.s8 %v534
        %v949 = vunpack.c.2.s8 %v526
        %v950 = vunpack.c.2.s8 %v527
        %v951 = vunpack.c.2.s8 %v528
        %v952 = vunpack.c.2.s8 %v529
        %v953 = vunpack.c.2.s8 %v530
        %v954 = vunpack.c.2.s8 %v531
        %v955 = vunpack.c.2.s8 %v532
        %v956 = vunpack.c.2.s8 %v533
        %v957 = vunpack.c.2.s8 %v534
        %v958 = vunpack.c.3.s8 %v526
        %v959 = vunpack.c.3.s8 %v527
        %v960 = vunpack.c.3.s8 %v528
        %v961 = vunpack.c.3.s8 %v529
        %v962 = vunpack.c.3.s8 %v530
        %v963 = vunpack.c.3.s8 %v531
        %v964 = vunpack.c.3.s8 %v532
        %v965 = vunpack.c.3.s8 %v533
        %v966 = vunpack.c.3.s8 %v534
        %v967 = vunpack.c.0.s8 %v535
        %v968 = vunpack.c.0.s8 %v536
        %v969 = vunpack.c.0.s8 %v537
        %v970 = vunpack.c.0.s8 %v538
        %v971 = vunpack.c.0.s8 %v539
        %v972 = vunpack.c.0.s8 %v540
        %v973 = vunpack.c.0.s8 %v541
        %v974 = vunpack.c.0.s8 %v542
        %v975 = vunpack.c.0.s8 %v543
        %v976 = vunpack.c.1.s8 %v535
        %v977 = vunpack.c.1.s8 %v536
        %v978 = vunpack.c.1.s8 %v537
        %v979 = vunpack.c.1.s8 %v538
        %v980 = vunpack.c.1.s8 %v539
        %v981 = vunpack.c.1.s8 %v540
        %v982 = vunpack.c.1.s8 %v541
        %v983 = vunpack.c.1.s8 %v542
        %v984 = vunpack.c.1.s8 %v543
        %v985 = vunpack.c.2.s8 %v535
        %v986 = vunpack.c.2.s8 %v536
        %v987 = vunpack.c.2.s8 %v537
        %v988 = vunpack.c.2.s8 %v538
        %v989 = vunpack.c.2.s8 %v539
        %v990 = vunpack.c.2.s8 %v540
        %v991 = vunpack.c.2.s8 %v541
        %v992 = vunpack.c.2.s8 %v542
        %v993 = vunpack.c.2.s8 %v543
        %v994 = vunpack.c.3.s8 %v535
        %v995 = vunpack.c.3.s8 %v536
        %v996 = vunpack.c.3.s8 %v537
        %v997 = vunpack.c.3.s8 %v538
        %v998 = vunpack.c.3.s8 %v539
        %v999 = vunpack.c.3.s8 %v540
        %v1000 = vunpack.c.3.s8 %v541
        %v1001 = vunpack.c.3.s8 %v542
        %v1002 = vunpack.c.3.s8 %v543
        %v1003 = vunpack.c.0.s8 %v544
        %v1004 = vunpack.c.0.s8 %v545
        %v1005 = vunpack.c.0.s8 %v546
        %v1006 = vunpack.c.0.s8 %v547
        %v1007 = vunpack.c.0.s8 %v548
        %v1008 = vunpack.c.0.s8 %v549
        %v1009 = vunpack.c.0.s8 %v550
        %v1010 = vunpack.c.0.s8 %v551
        %v1011 = vunpack.c.0.s8 %v552
        %v1012 = vunpack.c.1.s8 %v544
        %v1013 = vunpack.c.1.s8 %v545
        %v1014 = vunpack.c.1.s8 %v546
        %v1015 = vunpack.c.1.s8 %v547
        %v1016 = vunpack.c.1.s8 %v548
        %v1017 = vunpack.c.1.s8 %v549
        %v1018 = vunpack.c.1.s8 %v550
        %v1019 = vunpack.c.1.s8 %v551
        %v1020 = vunpack.c.1.s8 %v552
        %v1021 = vunpack.c.2.s8 %v544
        %v1022 = vunpack.c.2.s8 %v545
        %v1023 = vunpack.c.2.s8 %v546
        %v1024 = vunpack.c.2.s8 %v547
        %v1025 = vunpack.c.2.s8 %v548
        %v1026 = vunpack.c.2.s8 %v549
        %v1027 = vunpack.c.2.s8 %v550
        %v1028 = vunpack.c.2.s8 %v551
        %v1029 = vunpack.c.2.s8 %v552
        %v1030 = vunpack.c.3.s8 %v544
        %v1031 = vunpack.c.3.s8 %v545
        %v1032 = vunpack.c.3.s8 %v546
        %v1033 = vunpack.c.3.s8 %v547
        %v1034 = vunpack.c.3.s8 %v548
        %v1035 = vunpack.c.3.s8 %v549
        %v1036 = vunpack.c.3.s8 %v550
        %v1037 = vunpack.c.3.s8 %v551
        %v1038 = vunpack.c.3.s8 %v552
        %v1039 = vunpack.c.0.s8 %v553
        %v1040 = vunpack.c.0.s8 %v554
        %v1041 = vunpack.c.0.s8 %v555
        %v1042 = vunpack.c.0.s8 %v556
        %v1043 = vunpack.c.0.s8 %v557
        %v1044 = vunpack.c.0.s8 %v558
        %v1045 = vunpack.c.0.s8 %v559
        %v1046 = vunpack.c.0.s8 %v560
        %v1047 = vunpack.c.0.s8 %v561
        %v1048 = vunpack.c.1.s8 %v553
        %v1049 = vunpack.c.1.s8 %v554
        %v1050 = vunpack.c.1.s8 %v555
        %v1051 = vunpack.c.1.s8 %v556
        %v1052 = vunpack.c.1.s8 %v557
        %v1053 = vunpack.c.1.s8 %v558
        %v1054 = vunpack.c.1.s8 %v559
        %v1055 = vunpack.c.1.s8 %v560
        %v1056 = vunpack.c.1.s8 %v561
        %v1057 = vunpack.c.2.s8 %v553
        %v1058 = vunpack.c.2.s8 %v554
        %v1059 = vunpack.c.2.s8 %v555
        %v1060 = vunpack.c.2.s8 %v556
        %v1061 = vunpack.c.2.s8 %v557
        %v1062 = vunpack.c.2.s8 %v558
        %v1063 = vunpack.c.2.s8 %v559
        %v1064 = vunpack.c.2.s8 %v560
        %v1065 = vunpack.c.2.s8 %v561
        %v1066 = vunpack.c.3.s8 %v553
        %v1067 = vunpack.c.3.s8 %v554
        %v1068 = vunpack.c.3.s8 %v555
        %v1069 = vunpack.c.3.s8 %v556
        %v1070 = vunpack.c.3.s8 %v557
        %v1071 = vunpack.c.3.s8 %v558
        %v1072 = vunpack.c.3.s8 %v559
        %v1073 = vunpack.c.3.s8 %v560
        %v1074 = vunpack.c.3.s8 %v561
        %v1075 = vunpack.c.0.s8 %v562
        %v1076 = vunpack.c.0.s8 %v563
        %v1077 = vunpack.c.0.s8 %v564
        %v1078 = vunpack.c.0.s8 %v565
        %v1079 = vunpack.c.0.s8 %v566
        %v1080 = vunpack.c.0.s8 %v567
        %v1081 = vunpack.c.0.s8 %v568
        %v1082 = vunpack.c.0.s8 %v569
        %v1083 = vunpack.c.0.s8 %v570
        %v1084 = vunpack.c.1.s8 %v562
        %v1085 = vunpack.c.1.s8 %v563
        %v1086 = vunpack.c.1.s8 %v564
        %v1087 = vunpack.c.1.s8 %v565
        %v1088 = vunpack.c.1.s8 %v566
        %v1089 = vunpack.c.1.s8 %v567
        %v1090 = vunpack.c.1.s8 %v568
        %v1091 = vunpack.c.1.s8 %v569
        %v1092 = vunpack.c.1.s8 %v570
        %v1093 = vunpack.c.2.s8 %v562
        %v1094 = vunpack.c.2.s8 %v563
        %v1095 = vunpack.c.2.s8 %v564
        %v1096 = vunpack.c.2.s8 %v565
        %v1097 = vunpack.c.2.s8 %v566
        %v1098 = vunpack.c.2.s8 %v567
        %v1099 = vunpack.c.2.s8 %v568
        %v1100 = vunpack.c.2.s8 %v569
        %v1101 = vunpack.c.2.s8 %v570
        %v1102 = vunpack.c.3.s8 %v562
        %v1103 = vunpack.c.3.s8 %v563
        %v1104 = vunpack.c.3.s8 %v564
        %v1105 = vunpack.c.3.s8 %v565
        %v1106 = vunpack.c.3.s8 %v566
        %v1107 = vunpack.c.3.s8 %v567
        %v1108 = vunpack.c.3.s8 %v568
        %v1109 = vunpack.c.3.s8 %v569
        %v1110 = vunpack.c.3.s8 %v570
        %v1111 = vunpack.c.0.s8 %v571
        %v1112 = vunpack.c.0.s8 %v572
        %v1113 = vunpack.c.0.s8 %v573
        %v1114 = vunpack.c.0.s8 %v574
        %v1115 = vunpack.c.0.s8 %v575
        %v1116 = vunpack.c.0.s8 %v576
        %v1117 = vunpack.c.0.s8 %v577
        %v1118 = vunpack.c.0.s8 %v578
        %v1119 = vunpack.c.0.s8 %v579
        %v1120 = vunpack.c.1.s8 %v571
        %v1121 = vunpack.c.1.s8 %v572
        %v1122 = vunpack.c.1.s8 %v573
        %v1123 = vunpack.c.1.s8 %v574
        %v1124 = vunpack.c.1.s8 %v575
        %v1125 = vunpack.c.1.s8 %v576
        %v1126 = vunpack.c.1.s8 %v577
        %v1127 = vunpack.c.1.s8 %v578
        %v1128 = vunpack.c.1.s8 %v579
        %v1129 = vunpack.c.2.s8 %v571
        %v1130 = vunpack.c.2.s8 %v572
        %v1131 = vunpack.c.2.s8 %v573
        %v1132 = vunpack.c.2.s8 %v574
        %v1133 = vunpack.c.2.s8 %v575
        %v1134 = vunpack.c.2.s8 %v576
        %v1135 = vunpack.c.2.s8 %v577
        %v1136 = vunpack.c.2.s8 %v578
        %v1137 = vunpack.c.2.s8 %v579
        %v1138 = vunpack.c.3.s8 %v571
        %v1139 = vunpack.c.3.s8 %v572
        %v1140 = vunpack.c.3.s8 %v573
        %v1141 = vunpack.c.3.s8 %v574
        %v1142 = vunpack.c.3.s8 %v575
        %v1143 = vunpack.c.3.s8 %v576
        %v1144 = vunpack.c.3.s8 %v577
        %v1145 = vunpack.c.3.s8 %v578
        %v1146 = vunpack.c.3.s8 %v579
        %v1147 = vunpack.c.0.s8 %v580
        %v1148 = vunpack.c.0.s8 %v581
        %v1149 = vunpack.c.0.s8 %v582
        %v1150 = vunpack.c.0.s8 %v583
        %v1151 = vunpack.c.0.s8 %v584
        %v1152 = vunpack.c.0.s8 %v585
        %v1153 = vunpack.c.0.s8 %v586
        %v1154 = vunpack.c.0.s8 %v587
        %v1155 = vunpack.c.0.s8 %v588
        %v1156 = vunpack.c.1.s8 %v580
        %v1157 = vunpack.c.1.s8 %v581
        %v1158 = vunpack.c.1.s8 %v582
        %v1159 = vunpack.c.1.s8 %v583
        %v1160 = vunpack.c.1.s8 %v584
        %v1161 = vunpack.c.1.s8 %v585
        %v1162 = vunpack.c.1.s8 %v586
        %v1163 = vunpack.c.1.s8 %v587
        %v1164 = vunpack.c.1.s8 %v588
        %v1165 = vunpack.c.2.s8 %v580
        %v1166 = vunpack.c.2.s8 %v581
        %v1167 = vunpack.c.2.s8 %v582
        %v1168 = vunpack.c.2.s8 %v583
        %v1169 = vunpack.c.2.s8 %v584
        %v1170 = vunpack.c.2.s8 %v585
        %v1171 = vunpack.c.2.s8 %v586
        %v1172 = vunpack.c.2.s8 %v587
        %v1173 = vunpack.c.2.s8 %v588
        %v1174 = vunpack.c.3.s8 %v580
        %v1175 = vunpack.c.3.s8 %v581
        %v1176 = vunpack.c.3.s8 %v582
        %v1177 = vunpack.c.3.s8 %v583
        %v1178 = vunpack.c.3.s8 %v584
        %v1179 = vunpack.c.3.s8 %v585
        %v1180 = vunpack.c.3.s8 %v586
        %v1181 = vunpack.c.3.s8 %v587
        %v1182 = vunpack.c.3.s8 %v588
        %v1183 = vunpack.c.0.s8 %v589
        %v1184 = vunpack.c.0.s8 %v590
        %v1185 = vunpack.c.0.s8 %v591
        %v1186 = vunpack.c.0.s8 %v592
        %v1187 = vunpack.c.0.s8 %v593
        %v1188 = vunpack.c.0.s8 %v594
        %v1189 = vunpack.c.0.s8 %v595
        %v1190 = vunpack.c.0.s8 %v596
        %v1191 = vunpack.c.0.s8 %v597
        %v1192 = vunpack.c.1.s8 %v589
        %v1193 = vunpack.c.1.s8 %v590
        %v1194 = vunpack.c.1.s8 %v591
        %v1195 = vunpack.c.1.s8 %v592
        %v1196 = vunpack.c.1.s8 %v593
        %v1197 = vunpack.c.1.s8 %v594
        %v1198 = vunpack.c.1.s8 %v595
        %v1199 = vunpack.c.1.s8 %v596
        %v1200 = vunpack.c.1.s8 %v597
        %v1201 = vunpack.c.2.s8 %v589
        %v1202 = vunpack.c.2.s8 %v590
        %v1203 = vunpack.c.2.s8 %v591
        %v1204 = vunpack.c.2.s8 %v592
        %v1205 = vunpack.c.2.s8 %v593
        %v1206 = vunpack.c.2.s8 %v594
        %v1207 = vunpack.c.2.s8 %v595
        %v1208 = vunpack.c.2.s8 %v596
        %v1209 = vunpack.c.2.s8 %v597
        %v1210 = vunpack.c.3.s8 %v589
        %v1211 = vunpack.c.3.s8 %v590
        %v1212 = vunpack.c.3.s8 %v591
        %v1213 = vunpack.c.3.s8 %v592
        %v1214 = vunpack.c.3.s8 %v593
        %v1215 = vunpack.c.3.s8 %v594
        %v1216 = vunpack.c.3.s8 %v595
        %v1217 = vunpack.c.3.s8 %v596
        %v1218 = vunpack.c.3.s8 %v597
        %v1219 = vunpack.c.0.s8 %v598
        %v1220 = vunpack.c.0.s8 %v599
        %v1221 = vunpack.c.0.s8 %v600
        %v1222 = vunpack.c.0.s8 %v601
        %v1223 = vunpack.c.0.s8 %v602
        %v1224 = vunpack.c.0.s8 %v603
        %v1225 = vunpack.c.0.s8 %v604
        %v1226 = vunpack.c.0.s8 %v605
        %v1227 = vunpack.c.0.s8 %v606
        %v1228 = vunpack.c.1.s8 %v598
        %v1229 = vunpack.c.1.s8 %v599
        %v1230 = vunpack.c.1.s8 %v600
        %v1231 = vunpack.c.1.s8 %v601
        %v1232 = vunpack.c.1.s8 %v602
        %v1233 = vunpack.c.1.s8 %v603
        %v1234 = vunpack.c.1.s8 %v604
        %v1235 = vunpack.c.1.s8 %v605
        %v1236 = vunpack.c.1.s8 %v606
        %v1237 = vunpack.c.2.s8 %v598
        %v1238 = vunpack.c.2.s8 %v599
        %v1239 = vunpack.c.2.s8 %v600
        %v1240 = vunpack.c.2.s8 %v601
        %v1241 = vunpack.c.2.s8 %v602
        %v1242 = vunpack.c.2.s8 %v603
        %v1243 = vunpack.c.2.s8 %v604
        %v1244 = vunpack.c.2.s8 %v605
        %v1245 = vunpack.c.2.s8 %v606
        %v1246 = vunpack.c.3.s8 %v598
        %v1247 = vunpack.c.3.s8 %v599
        %v1248 = vunpack.c.3.s8 %v600
        %v1249 = vunpack.c.3.s8 %v601
        %v1250 = vunpack.c.3.s8 %v602
        %v1251 = vunpack.c.3.s8 %v603
        %v1252 = vunpack.c.3.s8 %v604
        %v1253 = vunpack.c.3.s8 %v605
        %v1254 = vunpack.c.3.s8 %v606
        %v1255 = vunpack.c.0.s8 %v607
        %v1256 = vunpack.c.0.s8 %v608
        %v1257 = vunpack.c.0.s8 %v609
        %v1258 = vunpack.c.0.s8 %v610
        %v1259 = vunpack.c.0.s8 %v611
        %v1260 = vunpack.c.0.s8 %v612
        %v1261 = vunpack.c.0.s8 %v613
        %v1262 = vunpack.c.0.s8 %v614
        %v1263 = vunpack.c.0.s8 %v615
        %v1264 = vunpack.c.1.s8 %v607
        %v1265 = vunpack.c.1.s8 %v608
        %v1266 = vunpack.c.1.s8 %v609
        %v1267 = vunpack.c.1.s8 %v610
        %v1268 = vunpack.c.1.s8 %v611
        %v1269 = vunpack.c.1.s8 %v612
        %v1270 = vunpack.c.1.s8 %v613
        %v1271 = vunpack.c.1.s8 %v614
        %v1272 = vunpack.c.1.s8 %v615
        %v1273 = vunpack.c.2.s8 %v607
        %v1274 = vunpack.c.2.s8 %v608
        %v1275 = vunpack.c.2.s8 %v609
        %v1276 = vunpack.c.2.s8 %v610
        %v1277 = vunpack.c.2.s8 %v611
        %v1278 = vunpack.c.2.s8 %v612
        %v1279 = vunpack.c.2.s8 %v613
        %v1280 = vunpack.c.2.s8 %v614
        %v1281 = vunpack.c.2.s8 %v615
        %v1282 = vunpack.c.3.s8 %v607
        %v1283 = vunpack.c.3.s8 %v608
        %v1284 = vunpack.c.3.s8 %v609
        %v1285 = vunpack.c.3.s8 %v610
        %v1286 = vunpack.c.3.s8 %v611
        %v1287 = vunpack.c.3.s8 %v612
        %v1288 = vunpack.c.3.s8 %v613
        %v1289 = vunpack.c.3.s8 %v614
        %v1290 = vunpack.c.3.s8 %v615
        %v1291 = vunpack.c.0.s8 %v616
        %v1292 = vunpack.c.0.s8 %v617
        %v1293 = vunpack.c.0.s8 %v618
        %v1294 = vunpack.c.0.s8 %v619
        %v1295 = vunpack.c.0.s8 %v620
        %v1296 = vunpack.c.0.s8 %v621
        %v1297 = vunpack.c.0.s8 %v622
        %v1298 = vunpack.c.0.s8 %v623
        %v1299 = vunpack.c.0.s8 %v624
        %v1300 = vunpack.c.1.s8 %v616
        %v1301 = vunpack.c.1.s8 %v617
        %v1302 = vunpack.c.1.s8 %v618
        %v1303 = vunpack.c.1.s8 %v619
        %v1304 = vunpack.c.1.s8 %v620
        %v1305 = vunpack.c.1.s8 %v621
        %v1306 = vunpack.c.1.s8 %v622
        %v1307 = vunpack.c.1.s8 %v623
        %v1308 = vunpack.c.1.s8 %v624
        %v1309 = vunpack.c.2.s8 %v616
        %v1310 = vunpack.c.2.s8 %v617
        %v1311 = vunpack.c.2.s8 %v618
        %v1312 = vunpack.c.2.s8 %v619
        %v1313 = vunpack.c.2.s8 %v620
        %v1314 = vunpack.c.2.s8 %v621
        %v1315 = vunpack.c.2.s8 %v622
        %v1316 = vunpack.c.2.s8 %v623
        %v1317 = vunpack.c.2.s8 %v624
        %v1318 = vunpack.c.3.s8 %v616
        %v1319 = vunpack.c.3.s8 %v617
        %v1320 = vunpack.c.3.s8 %v618
        %v1321 = vunpack.c.3.s8 %v619
        %v1322 = vunpack.c.3.s8 %v620
        %v1323 = vunpack.c.3.s8 %v621
        %v1324 = vunpack.c.3.s8 %v622
        %v1325 = vunpack.c.3.s8 %v623
        %v1326 = vunpack.c.3.s8 %v624
        %v1327 = vunpack.c.0.s8 %v625
        %v1328 = vunpack.c.0.s8 %v626
        %v1329 = vunpack.c.0.s8 %v627
        %v1330 = vunpack.c.0.s8 %v628
        %v1331 = vunpack.c.0.s8 %v629
        %v1332 = vunpack.c.0.s8 %v630
        %v1333 = vunpack.c.0.s8 %v631
        %v1334 = vunpack.c.0.s8 %v632
        %v1335 = vunpack.c.0.s8 %v633
        %v1336 = vunpack.c.1.s8 %v625
        %v1337 = vunpack.c.1.s8 %v626
        %v1338 = vunpack.c.1.s8 %v627
        %v1339 = vunpack.c.1.s8 %v628
        %v1340 = vunpack.c.1.s8 %v629
        %v1341 = vunpack.c.1.s8 %v630
        %v1342 = vunpack.c.1.s8 %v631
        %v1343 = vunpack.c.1.s8 %v632
        %v1344 = vunpack.c.1.s8 %v633
        %v1345 = vunpack.c.2.s8 %v625
        %v1346 = vunpack.c.2.s8 %v626
        %v1347 = vunpack.c.2.s8 %v627
        %v1348 = vunpack.c.2.s8 %v628
        %v1349 = vunpack.c.2.s8 %v629
        %v1350 = vunpack.c.2.s8 %v630
        %v1351 = vunpack.c.2.s8 %v631
        %v1352 = vunpack.c.2.s8 %v632
        %v1353 = vunpack.c.2.s8 %v633
        %v1354 = vunpack.c.3.s8 %v625
        %v1355 = vunpack.c.3.s8 %v626
        %v1356 = vunpack.c.3.s8 %v627
        %v1357 = vunpack.c.3.s8 %v628
        %v1358 = vunpack.c.3.s8 %v629
        %v1359 = vunpack.c.3.s8 %v630
        %v1360 = vunpack.c.3.s8 %v631
        %v1361 = vunpack.c.3.s8 %v632
        %v1362 = vunpack.c.3.s8 %v633
        %v1363 = vunpack.c.0.s8 %v634
        %v1364 = vunpack.c.0.s8 %v635
        %v1365 = vunpack.c.0.s8 %v636
        %v1366 = vunpack.c.0.s8 %v637
        %v1367 = vunpack.c.0.s8 %v638
        %v1368 = vunpack.c.0.s8 %v639
        %v1369 = vunpack.c.0.s8 %v640
        %v1370 = vunpack.c.0.s8 %v641
        %v1371 = vunpack.c.0.s8 %v642
        %v1372 = vunpack.c.1.s8 %v634
        %v1373 = vunpack.c.1.s8 %v635
        %v1374 = vunpack.c.1.s8 %v636
        %v1375 = vunpack.c.1.s8 %v637
        %v1376 = vunpack.c.1.s8 %v638
        %v1377 = vunpack.c.1.s8 %v639
        %v1378 = vunpack.c.1.s8 %v640
        %v1379 = vunpack.c.1.s8 %v641
        %v1380 = vunpack.c.1.s8 %v642
        %v1381 = vunpack.c.2.s8 %v634
        %v1382 = vunpack.c.2.s8 %v635
        %v1383 = vunpack.c.2.s8 %v636
        %v1384 = vunpack.c.2.s8 %v637
        %v1385 = vunpack.c.2.s8 %v638
        %v1386 = vunpack.c.2.s8 %v639
        %v1387 = vunpack.c.2.s8 %v640
        %v1388 = vunpack.c.2.s8 %v641
        %v1389 = vunpack.c.2.s8 %v642
        %v1390 = vunpack.c.3.s8 %v634
        %v1391 = vunpack.c.3.s8 %v635
        %v1392 = vunpack.c.3.s8 %v636
        %v1393 = vunpack.c.3.s8 %v637
        %v1394 = vunpack.c.3.s8 %v638
        %v1395 = vunpack.c.3.s8 %v639
        %v1396 = vunpack.c.3.s8 %v640
        %v1397 = vunpack.c.3.s8 %v641
        %v1398 = vunpack.c.3.s8 %v642
        %v1399 = vunpack.c.0.s8 %v643
        %v1400 = vunpack.c.0.s8 %v644
        %v1401 = vunpack.c.0.s8 %v645
        %v1402 = vunpack.c.0.s8 %v646
        %v1403 = vunpack.c.0.s8 %v647
        %v1404 = vunpack.c.0.s8 %v648
        %v1405 = vunpack.c.0.s8 %v649
        %v1406 = vunpack.c.0.s8 %v650
        %v1407 = vunpack.c.0.s8 %v651
        %v1408 = vunpack.c.1.s8 %v643
        %v1409 = vunpack.c.1.s8 %v644
        %v1410 = vunpack.c.1.s8 %v645
        %v1411 = vunpack.c.1.s8 %v646
        %v1412 = vunpack.c.1.s8 %v647
        %v1413 = vunpack.c.1.s8 %v648
        %v1414 = vunpack.c.1.s8 %v649
        %v1415 = vunpack.c.1.s8 %v650
        %v1416 = vunpack.c.1.s8 %v651
        %v1417 = vunpack.c.2.s8 %v643
        %v1418 = vunpack.c.2.s8 %v644
        %v1419 = vunpack.c.2.s8 %v645
        %v1420 = vunpack.c.2.s8 %v646
        %v1421 = vunpack.c.2.s8 %v647
        %v1422 = vunpack.c.2.s8 %v648
        %v1423 = vunpack.c.2.s8 %v649
        %v1424 = vunpack.c.2.s8 %v650
        %v1425 = vunpack.c.2.s8 %v651
        %v1426 = vunpack.c.3.s8 %v643
        %v1427 = vunpack.c.3.s8 %v644
        %v1428 = vunpack.c.3.s8 %v645
        %v1429 = vunpack.c.3.s8 %v646
        %v1430 = vunpack.c.3.s8 %v647
        %v1431 = vunpack.c.3.s8 %v648
        %v1432 = vunpack.c.3.s8 %v649
        %v1433 = vunpack.c.3.s8 %v650
        %v1434 = vunpack.c.3.s8 %v651
        %v1435 = vunpack.c.0.s8 %v652
        %v1436 = vunpack.c.0.s8 %v653
        %v1437 = vunpack.c.0.s8 %v654
        %v1438 = vunpack.c.0.s8 %v655
        %v1439 = vunpack.c.0.s8 %v656
        %v1440 = vunpack.c.0.s8 %v657
        %v1441 = vunpack.c.0.s8 %v658
        %v1442 = vunpack.c.0.s8 %v659
        %v1443 = vunpack.c.0.s8 %v660
        %v1444 = vunpack.c.1.s8 %v652
        %v1445 = vunpack.c.1.s8 %v653
        %v1446 = vunpack.c.1.s8 %v654
        %v1447 = vunpack.c.1.s8 %v655
        %v1448 = vunpack.c.1.s8 %v656
        %v1449 = vunpack.c.1.s8 %v657
        %v1450 = vunpack.c.1.s8 %v658
        %v1451 = vunpack.c.1.s8 %v659
        %v1452 = vunpack.c.1.s8 %v660
        %v1453 = vunpack.c.2.s8 %v652
        %v1454 = vunpack.c.2.s8 %v653
        %v1455 = vunpack.c.2.s8 %v654
        %v1456 = vunpack.c.2.s8 %v655
        %v1457 = vunpack.c.2.s8 %v656
        %v1458 = vunpack.c.2.s8 %v657
        %v1459 = vunpack.c.2.s8 %v658
        %v1460 = vunpack.c.2.s8 %v659
        %v1461 = vunpack.c.2.s8 %v660
        %v1462 = vunpack.c.3.s8 %v652
        %v1463 = vunpack.c.3.s8 %v653
        %v1464 = vunpack.c.3.s8 %v654
        %v1465 = vunpack.c.3.s8 %v655
        %v1466 = vunpack.c.3.s8 %v656
        %v1467 = vunpack.c.3.s8 %v657
        %v1468 = vunpack.c.3.s8 %v658
        %v1469 = vunpack.c.3.s8 %v659
        %v1470 = vunpack.c.3.s8 %v660
        %v1471 = vunpack.c.0.s8 %v661
        %v1472 = vunpack.c.0.s8 %v662
        %v1473 = vunpack.c.0.s8 %v663
        %v1474 = vunpack.c.0.s8 %v664
        %v1475 = vunpack.c.0.s8 %v665
        %v1476 = vunpack.c.0.s8 %v666
        %v1477 = vunpack.c.0.s8 %v667
        %v1478 = vunpack.c.0.s8 %v668
        %v1479 = vunpack.c.0.s8 %v669
        %v1480 = vunpack.c.1.s8 %v661
        %v1481 = vunpack.c.1.s8 %v662
        %v1482 = vunpack.c.1.s8 %v663
        %v1483 = vunpack.c.1.s8 %v664
        %v1484 = vunpack.c.1.s8 %v665
        %v1485 = vunpack.c.1.s8 %v666
        %v1486 = vunpack.c.1.s8 %v667
        %v1487 = vunpack.c.1.s8 %v668
        %v1488 = vunpack.c.1.s8 %v669
        %v1489 = vunpack.c.2.s8 %v661
        %v1490 = vunpack.c.2.s8 %v662
        %v1491 = vunpack.c.2.s8 %v663
        %v1492 = vunpack.c.2.s8 %v664
        %v1493 = vunpack.c.2.s8 %v665
        %v1494 = vunpack.c.2.s8 %v666
        %v1495 = vunpack.c.2.s8 %v667
        %v1496 = vunpack.c.2.s8 %v668
        %v1497 = vunpack.c.2.s8 %v669
        %v1498 = vunpack.c.3.s8 %v661
        %v1499 = vunpack.c.3.s8 %v662
        %v1500 = vunpack.c.3.s8 %v663
        %v1501 = vunpack.c.3.s8 %v664
        %v1502 = vunpack.c.3.s8 %v665
        %v1503 = vunpack.c.3.s8 %v666
        %v1504 = vunpack.c.3.s8 %v667
        %v1505 = vunpack.c.3.s8 %v668
        %v1506 = vunpack.c.3.s8 %v669
        %v1507 = vunpack.c.0.s8 %v670
        %v1508 = vunpack.c.0.s8 %v671
        %v1509 = vunpack.c.0.s8 %v672
        %v1510 = vunpack.c.0.s8 %v673
        %v1511 = vunpack.c.0.s8 %v674
        %v1512 = vunpack.c.0.s8 %v675
        %v1513 = vunpack.c.0.s8 %v676
        %v1514 = vunpack.c.0.s8 %v677
        %v1515 = vunpack.c.0.s8 %v678
        %v1516 = vunpack.c.1.s8 %v670
        %v1517 = vunpack.c.1.s8 %v671
        %v1518 = vunpack.c.1.s8 %v672
        %v1519 = vunpack.c.1.s8 %v673
        %v1520 = vunpack.c.1.s8 %v674
        %v1521 = vunpack.c.1.s8 %v675
        %v1522 = vunpack.c.1.s8 %v676
        %v1523 = vunpack.c.1.s8 %v677
        %v1524 = vunpack.c.1.s8 %v678
        %v1525 = vunpack.c.2.s8 %v670
        %v1526 = vunpack.c.2.s8 %v671
        %v1527 = vunpack.c.2.s8 %v672
        %v1528 = vunpack.c.2.s8 %v673
        %v1529 = vunpack.c.2.s8 %v674
        %v1530 = vunpack.c.2.s8 %v675
        %v1531 = vunpack.c.2.s8 %v676
        %v1532 = vunpack.c.2.s8 %v677
        %v1533 = vunpack.c.2.s8 %v678
        %v1534 = vunpack.c.3.s8 %v670
        %v1535 = vunpack.c.3.s8 %v671
        %v1536 = vunpack.c.3.s8 %v672
        %v1537 = vunpack.c.3.s8 %v673
        %v1538 = vunpack.c.3.s8 %v674
        %v1539 = vunpack.c.3.s8 %v675
        %v1540 = vunpack.c.3.s8 %v676
        %v1541 = vunpack.c.3.s8 %v677
        %v1542 = vunpack.c.3.s8 %v678
        %v1543 = vcvt.s32.f32 %v679
        %v1544 = vcvt.s32.f32 %v680
        %v1545 = vcvt.s32.f32 %v681
        %v1546 = vcvt.s32.f32 %v682
        %v1547 = vcvt.s32.f32 %v683
        %v1548 = vcvt.s32.f32 %v684
        %v1549 = vcvt.s32.f32 %v685
        %v1550 = vcvt.s32.f32 %v686
        %v1551 = vcvt.s32.f32 %v687
        %v1552 = vcvt.s32.f32 %v688
        %v1553 = vcvt.s32.f32 %v689
        %v1554 = vcvt.s32.f32 %v690
        %v1555 = vcvt.s32.f32 %v691
        %v1556 = vcvt.s32.f32 %v692
        %v1557 = vcvt.s32.f32 %v693
        %v1558 = vcvt.s32.f32 %v694
        %v1559 = vcvt.s32.f32 %v695
        %v1560 = vcvt.s32.f32 %v696
        %v1561 = vcvt.s32.f32 %v697
        %v1562 = vcvt.s32.f32 %v698
        %v1563 = vcvt.s32.f32 %v699
        %v1564 = vcvt.s32.f32 %v700
        %v1565 = vcvt.s32.f32 %v701
        %v1566 = vcvt.s32.f32 %v702
        %v1567 = vcvt.s32.f32 %v703
        %v1568 = vcvt.s32.f32 %v704
        %v1569 = vcvt.s32.f32 %v705
        %v1570 = vcvt.s32.f32 %v706
        %v1571 = vcvt.s32.f32 %v707
        %v1572 = vcvt.s32.f32 %v708
        %v1573 = vcvt.s32.f32 %v709
        %v1574 = vcvt.s32.f32 %v710
        %v1575 = vcvt.s32.f32 %v711
        %v1576 = vcvt.s32.f32 %v712
        %v1577 = vcvt.s32.f32 %v713
        %v1578 = vcvt.s32.f32 %v714
        %v1579 = vcvt.s32.f32 %v715
        %v1580 = vcvt.s32.f32 %v716
        %v1581 = vcvt.s32.f32 %v717
        %v1582 = vcvt.s32.f32 %v718
        %v1583 = vcvt.s32.f32 %v719
        %v1584 = vcvt.s32.f32 %v720
        %v1585 = vcvt.s32.f32 %v721
        %v1586 = vcvt.s32.f32 %v722
        %v1587 = vcvt.s32.f32 %v723
        %v1588 = vcvt.s32.f32 %v724
        %v1589 = vcvt.s32.f32 %v725
        %v1590 = vcvt.s32.f32 %v726
        %v1591 = vcvt.s32.f32 %v727
        %v1592 = vcvt.s32.f32 %v728
        %v1593 = vcvt.s32.f32 %v729
        %v1594 = vcvt.s32.f32 %v730
        %v1595 = vcvt.s32.f32 %v731
        %v1596 = vcvt.s32.f32 %v732
        %v1597 = vcvt.s32.f32 %v733
        %v1598 = vcvt.s32.f32 %v734
        %v1599 = vcvt.s32.f32 %v735
        %v1600 = vcvt.s32.f32 %v736
        %v1601 = vcvt.s32.f32 %v737
        %v1602 = vcvt.s32.f32 %v738
        %v1603 = vcvt.s32.f32 %v739
        %v1604 = vcvt.s32.f32 %v740
        %v1605 = vcvt.s32.f32 %v741
        %v1606 = vcvt.s32.f32 %v742
        %v1607 = vcvt.s32.f32 %v743
        %v1608 = vcvt.s32.f32 %v744
        %v1609 = vcvt.s32.f32 %v745
        %v1610 = vcvt.s32.f32 %v746
        %v1611 = vcvt.s32.f32 %v747
        %v1612 = vcvt.s32.f32 %v748
        %v1613 = vcvt.s32.f32 %v749
        %v1614 = vcvt.s32.f32 %v750
        %v1615 = vcvt.s32.f32 %v751
        %v1616 = vcvt.s32.f32 %v752
        %v1617 = vcvt.s32.f32 %v753
        %v1618 = vcvt.s32.f32 %v754
        %v1619 = vcvt.s32.f32 %v755
        %v1620 = vcvt.s32.f32 %v756
        %v1621 = vcvt.s32.f32 %v757
        %v1622 = vcvt.s32.f32 %v758
        %v1623 = vcvt.s32.f32 %v759
        %v1624 = vcvt.s32.f32 %v760
        %v1625 = vcvt.s32.f32 %v761
        %v1626 = vcvt.s32.f32 %v762
        %v1627 = vcvt.s32.f32 %v763
        %v1628 = vcvt.s32.f32 %v764
        %v1629 = vcvt.s32.f32 %v765
        %v1630 = vcvt.s32.f32 %v766
        %v1631 = vcvt.s32.f32 %v767
        %v1632 = vcvt.s32.f32 %v768
        %v1633 = vcvt.s32.f32 %v769
        %v1634 = vcvt.s32.f32 %v770
        %v1635 = vcvt.s32.f32 %v771
        %v1636 = vcvt.s32.f32 %v772
        %v1637 = vcvt.s32.f32 %v773
        %v1638 = vcvt.s32.f32 %v774
        %v1639 = vcvt.s32.f32 %v775
        %v1640 = vcvt.s32.f32 %v776
        %v1641 = vcvt.s32.f32 %v777
        %v1642 = vcvt.s32.f32 %v778
        %v1643 = vcvt.s32.f32 %v779
        %v1644 = vcvt.s32.f32 %v780
        %v1645 = vcvt.s32.f32 %v781
        %v1646 = vcvt.s32.f32 %v782
        %v1647 = vcvt.s32.f32 %v783
        %v1648 = vcvt.s32.f32 %v784
        %v1649 = vcvt.s32.f32 %v785
        %v1650 = vcvt.s32.f32 %v786
        %v1651 = vcvt.s32.f32 %v787
        %v1652 = vcvt.s32.f32 %v788
        %v1653 = vcvt.s32.f32 %v789
        %v1654 = vcvt.s32.f32 %v790
        %v1655 = vcvt.s32.f32 %v791
        %v1656 = vcvt.s32.f32 %v792
        %v1657 = vcvt.s32.f32 %v793
        %v1658 = vcvt.s32.f32 %v794
        %v1659 = vcvt.s32.f32 %v795
        %v1660 = vcvt.s32.f32 %v796
        %v1661 = vcvt.s32.f32 %v797
        %v1662 = vcvt.s32.f32 %v798
        %v1663 = vcvt.s32.f32 %v799
        %v1664 = vcvt.s32.f32 %v800
        %v1665 = vcvt.s32.f32 %v801
        %v1666 = vcvt.s32.f32 %v802
        %v1667 = vcvt.s32.f32 %v803
        %v1668 = vcvt.s32.f32 %v804
        %v1669 = vcvt.s32.f32 %v805
        %v1670 = vcvt.s32.f32 %v806
        %v1671 = vcvt.s32.f32 %v807
        %v1672 = vcvt.s32.f32 %v808
        %v1673 = vcvt.s32.f32 %v809
        %v1674 = vcvt.s32.f32 %v810
        %v1675 = vcvt.s32.f32 %v811
        %v1676 = vcvt.s32.f32 %v812
        %v1677 = vcvt.s32.f32 %v813
        %v1678 = vcvt.s32.f32 %v814
        %v1679 = vcvt.s32.f32 %v815
        %v1680 = vcvt.s32.f32 %v816
        %v1681 = vcvt.s32.f32 %v817
        %v1682 = vcvt.s32.f32 %v818
        %v1683 = vcvt.s32.f32 %v819
        %v1684 = vcvt.s32.f32 %v820
        %v1685 = vcvt.s32.f32 %v821
        %v1686 = vcvt.s32.f32 %v822
        %v1687 = vcvt.s32.f32 %v823
        %v1688 = vcvt.s32.f32 %v824
        %v1689 = vcvt.s32.f32 %v825
        %v1690 = vcvt.s32.f32 %v826
        %v1691 = vcvt.s32.f32 %v827
        %v1692 = vcvt.s32.f32 %v828
        %v1693 = vcvt.s32.f32 %v829
        %v1694 = vcvt.s32.f32 %v830
        %v1695 = vcvt.s32.f32 %v831
        %v1696 = vcvt.s32.f32 %v832
        %v1697 = vcvt.s32.f32 %v833
        %v1698 = vcvt.s32.f32 %v834
        %v1699 = vcvt.s32.f32 %v835
        %v1700 = vcvt.s32.f32 %v836
        %v1701 = vcvt.s32.f32 %v837
        %v1702 = vcvt.s32.f32 %v838
        %v1703 = vcvt.s32.f32 %v839
        %v1704 = vcvt.s32.f32 %v840
        %v1705 = vcvt.s32.f32 %v841
        %v1706 = vcvt.s32.f32 %v842
        %v1707 = vcvt.s32.f32 %v843
        %v1708 = vcvt.s32.f32 %v844
        %v1709 = vcvt.s32.f32 %v845
        %v1710 = vcvt.s32.f32 %v846
        %v1711 = vcvt.s32.f32 %v847
        %v1712 = vcvt.s32.f32 %v848
        %v1713 = vcvt.s32.f32 %v849
        %v1714 = vcvt.s32.f32 %v850
        %v1715 = vcvt.s32.f32 %v851
        %v1716 = vcvt.s32.f32 %v852
        %v1717 = vcvt.s32.f32 %v853
        %v1718 = vcvt.s32.f32 %v854
        %v1719 = vcvt.s32.f32 %v855
        %v1720 = vcvt.s32.f32 %v856
        %v1721 = vcvt.s32.f32 %v857
        %v1722 = vcvt.s32.f32 %v858
        %v1723 = vcvt.s32.f32 %v859
        %v1724 = vcvt.s32.f32 %v860
        %v1725 = vcvt.s32.f32 %v861
        %v1726 = vcvt.s32.f32 %v862
        %v1727 = vcvt.s32.f32 %v863
        %v1728 = vcvt.s32.f32 %v864
        %v1729 = vcvt.s32.f32 %v865
        %v1730 = vcvt.s32.f32 %v866
        %v1731 = vcvt.s32.f32 %v867
        %v1732 = vcvt.s32.f32 %v868
        %v1733 = vcvt.s32.f32 %v869
        %v1734 = vcvt.s32.f32 %v870
        %v1735 = vcvt.s32.f32 %v871
        %v1736 = vcvt.s32.f32 %v872
        %v1737 = vcvt.s32.f32 %v873
        %v1738 = vcvt.s32.f32 %v874
        %v1739 = vcvt.s32.f32 %v875
        %v1740 = vcvt.s32.f32 %v876
        %v1741 = vcvt.s32.f32 %v877
        %v1742 = vcvt.s32.f32 %v878
        %v1743 = vcvt.s32.f32 %v879
        %v1744 = vcvt.s32.f32 %v880
        %v1745 = vcvt.s32.f32 %v881
        %v1746 = vcvt.s32.f32 %v882
        %v1747 = vcvt.s32.f32 %v883
        %v1748 = vcvt.s32.f32 %v884
        %v1749 = vcvt.s32.f32 %v885
        %v1750 = vcvt.s32.f32 %v886
        %v1751 = vcvt.s32.f32 %v887
        %v1752 = vcvt.s32.f32 %v888
        %v1753 = vcvt.s32.f32 %v889
        %v1754 = vcvt.s32.f32 %v890
        %v1755 = vcvt.s32.f32 %v891
        %v1756 = vcvt.s32.f32 %v892
        %v1757 = vcvt.s32.f32 %v893
        %v1758 = vcvt.s32.f32 %v894
        %v1759 = vcvt.s32.f32 %v895
        %v1760 = vcvt.s32.f32 %v896
        %v1761 = vcvt.s32.f32 %v897
        %v1762 = vcvt.s32.f32 %v898
        %v1763 = vcvt.s32.f32 %v899
        %v1764 = vcvt.s32.f32 %v900
        %v1765 = vcvt.s32.f32 %v901
        %v1766 = vcvt.s32.f32 %v902
        %v1767 = vcvt.s32.f32 %v903
        %v1768 = vcvt.s32.f32 %v904
        %v1769 = vcvt.s32.f32 %v905
        %v1770 = vcvt.s32.f32 %v906
        %v1771 = vcvt.s32.f32 %v907
        %v1772 = vcvt.s32.f32 %v908
        %v1773 = vcvt.s32.f32 %v909
        %v1774 = vcvt.s32.f32 %v910
        %v1775 = vcvt.s32.f32 %v911
        %v1776 = vcvt.s32.f32 %v912
        %v1777 = vcvt.s32.f32 %v913
        %v1778 = vcvt.s32.f32 %v914
        %v1779 = vcvt.s32.f32 %v915
        %v1780 = vcvt.s32.f32 %v916
        %v1781 = vcvt.s32.f32 %v917
        %v1782 = vcvt.s32.f32 %v918
        %v1783 = vcvt.s32.f32 %v919
        %v1784 = vcvt.s32.f32 %v920
        %v1785 = vcvt.s32.f32 %v921
        %v1786 = vcvt.s32.f32 %v922
        %v1787 = vcvt.s32.f32 %v923
        %v1788 = vcvt.s32.f32 %v924
        %v1789 = vcvt.s32.f32 %v925
        %v1790 = vcvt.s32.f32 %v926
        %v1791 = vcvt.s32.f32 %v927
        %v1792 = vcvt.s32.f32 %v928
        %v1793 = vcvt.s32.f32 %v929
        %v1794 = vcvt.s32.f32 %v930
        %v1795 = vcvt.s32.f32 %v931
        %v1796 = vcvt.s32.f32 %v932
        %v1797 = vcvt.s32.f32 %v933
        %v1798 = vcvt.s32.f32 %v934
        %v1799 = vcvt.s32.f32 %v935
        %v1800 = vcvt.s32.f32 %v936
        %v1801 = vcvt.s32.f32 %v937
        %v1802 = vcvt.s32.f32 %v938
        %v1803 = vcvt.s32.f32 %v939
        %v1804 = vcvt.s32.f32 %v940
        %v1805 = vcvt.s32.f32 %v941
        %v1806 = vcvt.s32.f32 %v942
        %v1807 = vcvt.s32.f32 %v943
        %v1808 = vcvt.s32.f32 %v944
        %v1809 = vcvt.s32.f32 %v945
        %v1810 = vcvt.s32.f32 %v946
        %v1811 = vcvt.s32.f32 %v947
        %v1812 = vcvt.s32.f32 %v948
        %v1813 = vcvt.s32.f32 %v949
        %v1814 = vcvt.s32.f32 %v950
        %v1815 = vcvt.s32.f32 %v951
        %v1816 = vcvt.s32.f32 %v952
        %v1817 = vcvt.s32.f32 %v953
        %v1818 = vcvt.s32.f32 %v954
        %v1819 = vcvt.s32.f32 %v955
        %v1820 = vcvt.s32.f32 %v956
        %v1821 = vcvt.s32.f32 %v957
        %v1822 = vcvt.s32.f32 %v958
        %v1823 = vcvt.s32.f32 %v959
        %v1824 = vcvt.s32.f32 %v960
        %v1825 = vcvt.s32.f32 %v961
        %v1826 = vcvt.s32.f32 %v962
        %v1827 = vcvt.s32.f32 %v963
        %v1828 = vcvt.s32.f32 %v964
        %v1829 = vcvt.s32.f32 %v965
        %v1830 = vcvt.s32.f32 %v966
        %v1831 = vcvt.s32.f32 %v967
        %v1832 = vcvt.s32.f32 %v968
        %v1833 = vcvt.s32.f32 %v969
        %v1834 = vcvt.s32.f32 %v970
        %v1835 = vcvt.s32.f32 %v971
        %v1836 = vcvt.s32.f32 %v972
        %v1837 = vcvt.s32.f32 %v973
        %v1838 = vcvt.s32.f32 %v974
        %v1839 = vcvt.s32.f32 %v975
        %v1840 = vcvt.s32.f32 %v976
        %v1841 = vcvt.s32.f32 %v977
        %v1842 = vcvt.s32.f32 %v978
        %v1843 = vcvt.s32.f32 %v979
        %v1844 = vcvt.s32.f32 %v980
        %v1845 = vcvt.s32.f32 %v981
        %v1846 = vcvt.s32.f32 %v982
        %v1847 = vcvt.s32.f32 %v983
        %v1848 = vcvt.s32.f32 %v984
        %v1849 = vcvt.s32.f32 %v985
        %v1850 = vcvt.s32.f32 %v986
        %v1851 = vcvt.s32.f32 %v987
        %v1852 = vcvt.s32.f32 %v988
        %v1853 = vcvt.s32.f32 %v989
        %v1854 = vcvt.s32.f32 %v990
        %v1855 = vcvt.s32.f32 %v991
        %v1856 = vcvt.s32.f32 %v992
        %v1857 = vcvt.s32.f32 %v993
        %v1858 = vcvt.s32.f32 %v994
        %v1859 = vcvt.s32.f32 %v995
        %v1860 = vcvt.s32.f32 %v996
        %v1861 = vcvt.s32.f32 %v997
        %v1862 = vcvt.s32.f32 %v998
        %v1863 = vcvt.s32.f32 %v999
        %v1864 = vcvt.s32.f32 %v1000
        %v1865 = vcvt.s32.f32 %v1001
        %v1866 = vcvt.s32.f32 %v1002
        %v1867 = vcvt.s32.f32 %v1003
        %v1868 = vcvt.s32.f32 %v1004
        %v1869 = vcvt.s32.f32 %v1005
        %v1870 = vcvt.s32.f32 %v1006
        %v1871 = vcvt.s32.f32 %v1007
        %v1872 = vcvt.s32.f32 %v1008
        %v1873 = vcvt.s32.f32 %v1009
        %v1874 = vcvt.s32.f32 %v1010
        %v1875 = vcvt.s32.f32 %v1011
        %v1876 = vcvt.s32.f32 %v1012
        %v1877 = vcvt.s32.f32 %v1013
        %v1878 = vcvt.s32.f32 %v1014
        %v1879 = vcvt.s32.f32 %v1015
        %v1880 = vcvt.s32.f32 %v1016
        %v1881 = vcvt.s32.f32 %v1017
        %v1882 = vcvt.s32.f32 %v1018
        %v1883 = vcvt.s32.f32 %v1019
        %v1884 = vcvt.s32.f32 %v1020
        %v1885 = vcvt.s32.f32 %v1021
        %v1886 = vcvt.s32.f32 %v1022
        %v1887 = vcvt.s32.f32 %v1023
        %v1888 = vcvt.s32.f32 %v1024
        %v1889 = vcvt.s32.f32 %v1025
        %v1890 = vcvt.s32.f32 %v1026
        %v1891 = vcvt.s32.f32 %v1027
        %v1892 = vcvt.s32.f32 %v1028
        %v1893 = vcvt.s32.f32 %v1029
        %v1894 = vcvt.s32.f32 %v1030
        %v1895 = vcvt.s32.f32 %v1031
        %v1896 = vcvt.s32.f32 %v1032
        %v1897 = vcvt.s32.f32 %v1033
        %v1898 = vcvt.s32.f32 %v1034
        %v1899 = vcvt.s32.f32 %v1035
        %v1900 = vcvt.s32.f32 %v1036
        %v1901 = vcvt.s32.f32 %v1037
        %v1902 = vcvt.s32.f32 %v1038
        %v1903 = vcvt.s32.f32 %v1039
        %v1904 = vcvt.s32.f32 %v1040
        %v1905 = vcvt.s32.f32 %v1041
        %v1906 = vcvt.s32.f32 %v1042
        %v1907 = vcvt.s32.f32 %v1043
        %v1908 = vcvt.s32.f32 %v1044
        %v1909 = vcvt.s32.f32 %v1045
        %v1910 = vcvt.s32.f32 %v1046
        %v1911 = vcvt.s32.f32 %v1047
        %v1912 = vcvt.s32.f32 %v1048
        %v1913 = vcvt.s32.f32 %v1049
        %v1914 = vcvt.s32.f32 %v1050
        %v1915 = vcvt.s32.f32 %v1051
        %v1916 = vcvt.s32.f32 %v1052
        %v1917 = vcvt.s32.f32 %v1053
        %v1918 = vcvt.s32.f32 %v1054
        %v1919 = vcvt.s32.f32 %v1055
        %v1920 = vcvt.s32.f32 %v1056
        %v1921 = vcvt.s32.f32 %v1057
        %v1922 = vcvt.s32.f32 %v1058
        %v1923 = vcvt.s32.f32 %v1059
        %v1924 = vcvt.s32.f32 %v1060
        %v1925 = vcvt.s32.f32 %v1061
        %v1926 = vcvt.s32.f32 %v1062
        %v1927 = vcvt.s32.f32 %v1063
        %v1928 = vcvt.s32.f32 %v1064
        %v1929 = vcvt.s32.f32 %v1065
        %v1930 = vcvt.s32.f32 %v1066
        %v1931 = vcvt.s32.f32 %v1067
        %v1932 = vcvt.s32.f32 %v1068
        %v1933 = vcvt.s32.f32 %v1069
        %v1934 = vcvt.s32.f32 %v1070
        %v1935 = vcvt.s32.f32 %v1071
        %v1936 = vcvt.s32.f32 %v1072
        %v1937 = vcvt.s32.f32 %v1073
        %v1938 = vcvt.s32.f32 %v1074
        %v1939 = vcvt.s32.f32 %v1075
        %v1940 = vcvt.s32.f32 %v1076
        %v1941 = vcvt.s32.f32 %v1077
        %v1942 = vcvt.s32.f32 %v1078
        %v1943 = vcvt.s32.f32 %v1079
        %v1944 = vcvt.s32.f32 %v1080
        %v1945 = vcvt.s32.f32 %v1081
        %v1946 = vcvt.s32.f32 %v1082
        %v1947 = vcvt.s32.f32 %v1083
        %v1948 = vcvt.s32.f32 %v1084
        %v1949 = vcvt.s32.f32 %v1085
        %v1950 = vcvt.s32.f32 %v1086
        %v1951 = vcvt.s32.f32 %v1087
        %v1952 = vcvt.s32.f32 %v1088
        %v1953 = vcvt.s32.f32 %v1089
        %v1954 = vcvt.s32.f32 %v1090
        %v1955 = vcvt.s32.f32 %v1091
        %v1956 = vcvt.s32.f32 %v1092
        %v1957 = vcvt.s32.f32 %v1093
        %v1958 = vcvt.s32.f32 %v1094
        %v1959 = vcvt.s32.f32 %v1095
        %v1960 = vcvt.s32.f32 %v1096
        %v1961 = vcvt.s32.f32 %v1097
        %v1962 = vcvt.s32.f32 %v1098
        %v1963 = vcvt.s32.f32 %v1099
        %v1964 = vcvt.s32.f32 %v1100
        %v1965 = vcvt.s32.f32 %v1101
        %v1966 = vcvt.s32.f32 %v1102
        %v1967 = vcvt.s32.f32 %v1103
        %v1968 = vcvt.s32.f32 %v1104
        %v1969 = vcvt.s32.f32 %v1105
        %v1970 = vcvt.s32.f32 %v1106
        %v1971 = vcvt.s32.f32 %v1107
        %v1972 = vcvt.s32.f32 %v1108
        %v1973 = vcvt.s32.f32 %v1109
        %v1974 = vcvt.s32.f32 %v1110
        %v1975 = vcvt.s32.f32 %v1111
        %v1976 = vcvt.s32.f32 %v1112
        %v1977 = vcvt.s32.f32 %v1113
        %v1978 = vcvt.s32.f32 %v1114
        %v1979 = vcvt.s32.f32 %v1115
        %v1980 = vcvt.s32.f32 %v1116
        %v1981 = vcvt.s32.f32 %v1117
        %v1982 = vcvt.s32.f32 %v1118
        %v1983 = vcvt.s32.f32 %v1119
        %v1984 = vcvt.s32.f32 %v1120
        %v1985 = vcvt.s32.f32 %v1121
        %v1986 = vcvt.s32.f32 %v1122
        %v1987 = vcvt.s32.f32 %v1123
        %v1988 = vcvt.s32.f32 %v1124
        %v1989 = vcvt.s32.f32 %v1125
        %v1990 = vcvt.s32.f32 %v1126
        %v1991 = vcvt.s32.f32 %v1127
        %v1992 = vcvt.s32.f32 %v1128
        %v1993 = vcvt.s32.f32 %v1129
        %v1994 = vcvt.s32.f32 %v1130
        %v1995 = vcvt.s32.f32 %v1131
        %v1996 = vcvt.s32.f32 %v1132
        %v1997 = vcvt.s32.f32 %v1133
        %v1998 = vcvt.s32.f32 %v1134
        %v1999 = vcvt.s32.f32 %v1135
        %v2000 = vcvt.s32.f32 %v1136
        %v2001 = vcvt.s32.f32 %v1137
        %v2002 = vcvt.s32.f32 %v1138
        %v2003 = vcvt.s32.f32 %v1139
        %v2004 = vcvt.s32.f32 %v1140
        %v2005 = vcvt.s32.f32 %v1141
        %v2006 = vcvt.s32.f32 %v1142
        %v2007 = vcvt.s32.f32 %v1143
        %v2008 = vcvt.s32.f32 %v1144
        %v2009 = vcvt.s32.f32 %v1145
        %v2010 = vcvt.s32.f32 %v1146
        %v2011 = vcvt.s32.f32 %v1147
        %v2012 = vcvt.s32.f32 %v1148
        %v2013 = vcvt.s32.f32 %v1149
        %v2014 = vcvt.s32.f32 %v1150
        %v2015 = vcvt.s32.f32 %v1151
        %v2016 = vcvt.s32.f32 %v1152
        %v2017 = vcvt.s32.f32 %v1153
        %v2018 = vcvt.s32.f32 %v1154
        %v2019 = vcvt.s32.f32 %v1155
        %v2020 = vcvt.s32.f32 %v1156
        %v2021 = vcvt.s32.f32 %v1157
        %v2022 = vcvt.s32.f32 %v1158
        %v2023 = vcvt.s32.f32 %v1159
        %v2024 = vcvt.s32.f32 %v1160
        %v2025 = vcvt.s32.f32 %v1161
        %v2026 = vcvt.s32.f32 %v1162
        %v2027 = vcvt.s32.f32 %v1163
        %v2028 = vcvt.s32.f32 %v1164
        %v2029 = vcvt.s32.f32 %v1165
        %v2030 = vcvt.s32.f32 %v1166
        %v2031 = vcvt.s32.f32 %v1167
        %v2032 = vcvt.s32.f32 %v1168
        %v2033 = vcvt.s32.f32 %v1169
        %v2034 = vcvt.s32.f32 %v1170
        %v2035 = vcvt.s32.f32 %v1171
        %v2036 = vcvt.s32.f32 %v1172
        %v2037 = vcvt.s32.f32 %v1173
        %v2038 = vcvt.s32.f32 %v1174
        %v2039 = vcvt.s32.f32 %v1175
        %v2040 = vcvt.s32.f32 %v1176
        %v2041 = vcvt.s32.f32 %v1177
        %v2042 = vcvt.s32.f32 %v1178
        %v2043 = vcvt.s32.f32 %v1179
        %v2044 = vcvt.s32.f32 %v1180
        %v2045 = vcvt.s32.f32 %v1181
        %v2046 = vcvt.s32.f32 %v1182
        %v2047 = vcvt.s32.f32 %v1183
        %v2048 = vcvt.s32.f32 %v1184
        %v2049 = vcvt.s32.f32 %v1185
        %v2050 = vcvt.s32.f32 %v1186
        %v2051 = vcvt.s32.f32 %v1187
        %v2052 = vcvt.s32.f32 %v1188
        %v2053 = vcvt.s32.f32 %v1189
        %v2054 = vcvt.s32.f32 %v1190
        %v2055 = vcvt.s32.f32 %v1191
        %v2056 = vcvt.s32.f32 %v1192
        %v2057 = vcvt.s32.f32 %v1193
        %v2058 = vcvt.s32.f32 %v1194
        %v2059 = vcvt.s32.f32 %v1195
        %v2060 = vcvt.s32.f32 %v1196
        %v2061 = vcvt.s32.f32 %v1197
        %v2062 = vcvt.s32.f32 %v1198
        %v2063 = vcvt.s32.f32 %v1199
        %v2064 = vcvt.s32.f32 %v1200
        %v2065 = vcvt.s32.f32 %v1201
        %v2066 = vcvt.s32.f32 %v1202
        %v2067 = vcvt.s32.f32 %v1203
        %v2068 = vcvt.s32.f32 %v1204
        %v2069 = vcvt.s32.f32 %v1205
        %v2070 = vcvt.s32.f32 %v1206
        %v2071 = vcvt.s32.f32 %v1207
        %v2072 = vcvt.s32.f32 %v1208
        %v2073 = vcvt.s32.f32 %v1209
        %v2074 = vcvt.s32.f32 %v1210
        %v2075 = vcvt.s32.f32 %v1211
        %v2076 = vcvt.s32.f32 %v1212
        %v2077 = vcvt.s32.f32 %v1213
        %v2078 = vcvt.s32.f32 %v1214
        %v2079 = vcvt.s32.f32 %v1215
        %v2080 = vcvt.s32.f32 %v1216
        %v2081 = vcvt.s32.f32 %v1217
        %v2082 = vcvt.s32.f32 %v1218
        %v2083 = vcvt.s32.f32 %v1219
        %v2084 = vcvt.s32.f32 %v1220
        %v2085 = vcvt.s32.f32 %v1221
        %v2086 = vcvt.s32.f32 %v1222
        %v2087 = vcvt.s32.f32 %v1223
        %v2088 = vcvt.s32.f32 %v1224
        %v2089 = vcvt.s32.f32 %v1225
        %v2090 = vcvt.s32.f32 %v1226
        %v2091 = vcvt.s32.f32 %v1227
        %v2092 = vcvt.s32.f32 %v1228
        %v2093 = vcvt.s32.f32 %v1229
        %v2094 = vcvt.s32.f32 %v1230
        %v2095 = vcvt.s32.f32 %v1231
        %v2096 = vcvt.s32.f32 %v1232
        %v2097 = vcvt.s32.f32 %v1233
        %v2098 = vcvt.s32.f32 %v1234
        %v2099 = vcvt.s32.f32 %v1235
        %v2100 = vcvt.s32.f32 %v1236
        %v2101 = vcvt.s32.f32 %v1237
        %v2102 = vcvt.s32.f32 %v1238
        %v2103 = vcvt.s32.f32 %v1239
        %v2104 = vcvt.s32.f32 %v1240
        %v2105 = vcvt.s32.f32 %v1241
        %v2106 = vcvt.s32.f32 %v1242
        %v2107 = vcvt.s32.f32 %v1243
        %v2108 = vcvt.s32.f32 %v1244
        %v2109 = vcvt.s32.f32 %v1245
        %v2110 = vcvt.s32.f32 %v1246
        %v2111 = vcvt.s32.f32 %v1247
        %v2112 = vcvt.s32.f32 %v1248
        %v2113 = vcvt.s32.f32 %v1249
        %v2114 = vcvt.s32.f32 %v1250
        %v2115 = vcvt.s32.f32 %v1251
        %v2116 = vcvt.s32.f32 %v1252
        %v2117 = vcvt.s32.f32 %v1253
        %v2118 = vcvt.s32.f32 %v1254
        %v2119 = vcvt.s32.f32 %v1255
        %v2120 = vcvt.s32.f32 %v1256
        %v2121 = vcvt.s32.f32 %v1257
        %v2122 = vcvt.s32.f32 %v1258
        %v2123 = vcvt.s32.f32 %v1259
        %v2124 = vcvt.s32.f32 %v1260
        %v2125 = vcvt.s32.f32 %v1261
        %v2126 = vcvt.s32.f32 %v1262
        %v2127 = vcvt.s32.f32 %v1263
        %v2128 = vcvt.s32.f32 %v1264
        %v2129 = vcvt.s32.f32 %v1265
        %v2130 = vcvt.s32.f32 %v1266
        %v2131 = vcvt.s32.f32 %v1267
        %v2132 = vcvt.s32.f32 %v1268
        %v2133 = vcvt.s32.f32 %v1269
        %v2134 = vcvt.s32.f32 %v1270
        %v2135 = vcvt.s32.f32 %v1271
        %v2136 = vcvt.s32.f32 %v1272
        %v2137 = vcvt.s32.f32 %v1273
        %v2138 = vcvt.s32.f32 %v1274
        %v2139 = vcvt.s32.f32 %v1275
        %v2140 = vcvt.s32.f32 %v1276
        %v2141 = vcvt.s32.f32 %v1277
        %v2142 = vcvt.s32.f32 %v1278
        %v2143 = vcvt.s32.f32 %v1279
        %v2144 = vcvt.s32.f32 %v1280
        %v2145 = vcvt.s32.f32 %v1281
        %v2146 = vcvt.s32.f32 %v1282
        %v2147 = vcvt.s32.f32 %v1283
        %v2148 = vcvt.s32.f32 %v1284
        %v2149 = vcvt.s32.f32 %v1285
        %v2150 = vcvt.s32.f32 %v1286
        %v2151 = vcvt.s32.f32 %v1287
        %v2152 = vcvt.s32.f32 %v1288
        %v2153 = vcvt.s32.f32 %v1289
        %v2154 = vcvt.s32.f32 %v1290
        %v2155 = vcvt.s32.f32 %v1291
        %v2156 = vcvt.s32.f32 %v1292
        %v2157 = vcvt.s32.f32 %v1293
        %v2158 = vcvt.s32.f32 %v1294
        %v2159 = vcvt.s32.f32 %v1295
        %v2160 = vcvt.s32.f32 %v1296
        %v2161 = vcvt.s32.f32 %v1297
        %v2162 = vcvt.s32.f32 %v1298
        %v2163 = vcvt.s32.f32 %v1299
        %v2164 = vcvt.s32.f32 %v1300
        %v2165 = vcvt.s32.f32 %v1301
        %v2166 = vcvt.s32.f32 %v1302
        %v2167 = vcvt.s32.f32 %v1303
        %v2168 = vcvt.s32.f32 %v1304
        %v2169 = vcvt.s32.f32 %v1305
        %v2170 = vcvt.s32.f32 %v1306
        %v2171 = vcvt.s32.f32 %v1307
        %v2172 = vcvt.s32.f32 %v1308
        %v2173 = vcvt.s32.f32 %v1309
        %v2174 = vcvt.s32.f32 %v1310
        %v2175 = vcvt.s32.f32 %v1311
        %v2176 = vcvt.s32.f32 %v1312
        %v2177 = vcvt.s32.f32 %v1313
        %v2178 = vcvt.s32.f32 %v1314
        %v2179 = vcvt.s32.f32 %v1315
        %v2180 = vcvt.s32.f32 %v1316
        %v2181 = vcvt.s32.f32 %v1317
        %v2182 = vcvt.s32.f32 %v1318
        %v2183 = vcvt.s32.f32 %v1319
        %v2184 = vcvt.s32.f32 %v1320
        %v2185 = vcvt.s32.f32 %v1321
        %v2186 = vcvt.s32.f32 %v1322
        %v2187 = vcvt.s32.f32 %v1323
        %v2188 = vcvt.s32.f32 %v1324
        %v2189 = vcvt.s32.f32 %v1325
        %v2190 = vcvt.s32.f32 %v1326
        %v2191 = vcvt.s32.f32 %v1327
        %v2192 = vcvt.s32.f32 %v1328
        %v2193 = vcvt.s32.f32 %v1329
        %v2194 = vcvt.s32.f32 %v1330
        %v2195 = vcvt.s32.f32 %v1331
        %v2196 = vcvt.s32.f32 %v1332
        %v2197 = vcvt.s32.f32 %v1333
        %v2198 = vcvt.s32.f32 %v1334
        %v2199 = vcvt.s32.f32 %v1335
        %v2200 = vcvt.s32.f32 %v1336
        %v2201 = vcvt.s32.f32 %v1337
        %v2202 = vcvt.s32.f32 %v1338
        %v2203 = vcvt.s32.f32 %v1339
        %v2204 = vcvt.s32.f32 %v1340
        %v2205 = vcvt.s32.f32 %v1341
        %v2206 = vcvt.s32.f32 %v1342
        %v2207 = vcvt.s32.f32 %v1343
        %v2208 = vcvt.s32.f32 %v1344
        %v2209 = vcvt.s32.f32 %v1345
        %v2210 = vcvt.s32.f32 %v1346
        %v2211 = vcvt.s32.f32 %v1347
        %v2212 = vcvt.s32.f32 %v1348
        %v2213 = vcvt.s32.f32 %v1349
        %v2214 = vcvt.s32.f32 %v1350
        %v2215 = vcvt.s32.f32 %v1351
        %v2216 = vcvt.s32.f32 %v1352
        %v2217 = vcvt.s32.f32 %v1353
        %v2218 = vcvt.s32.f32 %v1354
        %v2219 = vcvt.s32.f32 %v1355
        %v2220 = vcvt.s32.f32 %v1356
        %v2221 = vcvt.s32.f32 %v1357
        %v2222 = vcvt.s32.f32 %v1358
        %v2223 = vcvt.s32.f32 %v1359
        %v2224 = vcvt.s32.f32 %v1360
        %v2225 = vcvt.s32.f32 %v1361
        %v2226 = vcvt.s32.f32 %v1362
        %v2227 = vcvt.s32.f32 %v1363
        %v2228 = vcvt.s32.f32 %v1364
        %v2229 = vcvt.s32.f32 %v1365
        %v2230 = vcvt.s32.f32 %v1366
        %v2231 = vcvt.s32.f32 %v1367
        %v2232 = vcvt.s32.f32 %v1368
        %v2233 = vcvt.s32.f32 %v1369
        %v2234 = vcvt.s32.f32 %v1370
        %v2235 = vcvt.s32.f32 %v1371
        %v2236 = vcvt.s32.f32 %v1372
        %v2237 = vcvt.s32.f32 %v1373
        %v2238 = vcvt.s32.f32 %v1374
        %v2239 = vcvt.s32.f32 %v1375
        %v2240 = vcvt.s32.f32 %v1376
        %v2241 = vcvt.s32.f32 %v1377
        %v2242 = vcvt.s32.f32 %v1378
        %v2243 = vcvt.s32.f32 %v1379
        %v2244 = vcvt.s32.f32 %v1380
        %v2245 = vcvt.s32.f32 %v1381
        %v2246 = vcvt.s32.f32 %v1382
        %v2247 = vcvt.s32.f32 %v1383
        %v2248 = vcvt.s32.f32 %v1384
        %v2249 = vcvt.s32.f32 %v1385
        %v2250 = vcvt.s32.f32 %v1386
        %v2251 = vcvt.s32.f32 %v1387
        %v2252 = vcvt.s32.f32 %v1388
        %v2253 = vcvt.s32.f32 %v1389
        %v2254 = vcvt.s32.f32 %v1390
        %v2255 = vcvt.s32.f32 %v1391
        %v2256 = vcvt.s32.f32 %v1392
        %v2257 = vcvt.s32.f32 %v1393
        %v2258 = vcvt.s32.f32 %v1394
        %v2259 = vcvt.s32.f32 %v1395
        %v2260 = vcvt.s32.f32 %v1396
        %v2261 = vcvt.s32.f32 %v1397
        %v2262 = vcvt.s32.f32 %v1398
        %v2263 = vcvt.s32.f32 %v1399
        %v2264 = vcvt.s32.f32 %v1400
        %v2265 = vcvt.s32.f32 %v1401
        %v2266 = vcvt.s32.f32 %v1402
        %v2267 = vcvt.s32.f32 %v1403
        %v2268 = vcvt.s32.f32 %v1404
        %v2269 = vcvt.s32.f32 %v1405
        %v2270 = vcvt.s32.f32 %v1406
        %v2271 = vcvt.s32.f32 %v1407
        %v2272 = vcvt.s32.f32 %v1408
        %v2273 = vcvt.s32.f32 %v1409
        %v2274 = vcvt.s32.f32 %v1410
        %v2275 = vcvt.s32.f32 %v1411
        %v2276 = vcvt.s32.f32 %v1412
        %v2277 = vcvt.s32.f32 %v1413
        %v2278 = vcvt.s32.f32 %v1414
        %v2279 = vcvt.s32.f32 %v1415
        %v2280 = vcvt.s32.f32 %v1416
        %v2281 = vcvt.s32.f32 %v1417
        %v2282 = vcvt.s32.f32 %v1418
        %v2283 = vcvt.s32.f32 %v1419
        %v2284 = vcvt.s32.f32 %v1420
        %v2285 = vcvt.s32.f32 %v1421
        %v2286 = vcvt.s32.f32 %v1422
        %v2287 = vcvt.s32.f32 %v1423
        %v2288 = vcvt.s32.f32 %v1424
        %v2289 = vcvt.s32.f32 %v1425
        %v2290 = vcvt.s32.f32 %v1426
        %v2291 = vcvt.s32.f32 %v1427
        %v2292 = vcvt.s32.f32 %v1428
        %v2293 = vcvt.s32.f32 %v1429
        %v2294 = vcvt.s32.f32 %v1430
        %v2295 = vcvt.s32.f32 %v1431
        %v2296 = vcvt.s32.f32 %v1432
        %v2297 = vcvt.s32.f32 %v1433
        %v2298 = vcvt.s32.f32 %v1434
        %v2299 = vcvt.s32.f32 %v1435
        %v2300 = vcvt.s32.f32 %v1436
        %v2301 = vcvt.s32.f32 %v1437
        %v2302 = vcvt.s32.f32 %v1438
        %v2303 = vcvt.s32.f32 %v1439
        %v2304 = vcvt.s32.f32 %v1440
        %v2305 = vcvt.s32.f32 %v1441
        %v2306 = vcvt.s32.f32 %v1442
        %v2307 = vcvt.s32.f32 %v1443
        %v2308 = vcvt.s32.f32 %v1444
        %v2309 = vcvt.s32.f32 %v1445
        %v2310 = vcvt.s32.f32 %v1446
        %v2311 = vcvt.s32.f32 %v1447
        %v2312 = vcvt.s32.f32 %v1448
        %v2313 = vcvt.s32.f32 %v1449
        %v2314 = vcvt.s32.f32 %v1450
        %v2315 = vcvt.s32.f32 %v1451
        %v2316 = vcvt.s32.f32 %v1452
        %v2317 = vcvt.s32.f32 %v1453
        %v2318 = vcvt.s32.f32 %v1454
        %v2319 = vcvt.s32.f32 %v1455
        %v2320 = vcvt.s32.f32 %v1456
        %v2321 = vcvt.s32.f32 %v1457
        %v2322 = vcvt.s32.f32 %v1458
        %v2323 = vcvt.s32.f32 %v1459
        %v2324 = vcvt.s32.f32 %v1460
        %v2325 = vcvt.s32.f32 %v1461
        %v2326 = vcvt.s32.f32 %v1462
        %v2327 = vcvt.s32.f32 %v1463
        %v2328 = vcvt.s32.f32 %v1464
        %v2329 = vcvt.s32.f32 %v1465
        %v2330 = vcvt.s32.f32 %v1466
        %v2331 = vcvt.s32.f32 %v1467
        %v2332 = vcvt.s32.f32 %v1468
        %v2333 = vcvt.s32.f32 %v1469
        %v2334 = vcvt.s32.f32 %v1470
        %v2335 = vcvt.s32.f32 %v1471
        %v2336 = vcvt.s32.f32 %v1472
        %v2337 = vcvt.s32.f32 %v1473
        %v2338 = vcvt.s32.f32 %v1474
        %v2339 = vcvt.s32.f32 %v1475
        %v2340 = vcvt.s32.f32 %v1476
        %v2341 = vcvt.s32.f32 %v1477
        %v2342 = vcvt.s32.f32 %v1478
        %v2343 = vcvt.s32.f32 %v1479
        %v2344 = vcvt.s32.f32 %v1480
        %v2345 = vcvt.s32.f32 %v1481
        %v2346 = vcvt.s32.f32 %v1482
        %v2347 = vcvt.s32.f32 %v1483
        %v2348 = vcvt.s32.f32 %v1484
        %v2349 = vcvt.s32.f32 %v1485
        %v2350 = vcvt.s32.f32 %v1486
        %v2351 = vcvt.s32.f32 %v1487
        %v2352 = vcvt.s32.f32 %v1488
        %v2353 = vcvt.s32.f32 %v1489
        %v2354 = vcvt.s32.f32 %v1490
        %v2355 = vcvt.s32.f32 %v1491
        %v2356 = vcvt.s32.f32 %v1492
        %v2357 = vcvt.s32.f32 %v1493
        %v2358 = vcvt.s32.f32 %v1494
        %v2359 = vcvt.s32.f32 %v1495
        %v2360 = vcvt.s32.f32 %v1496
        %v2361 = vcvt.s32.f32 %v1497
        %v2362 = vcvt.s32.f32 %v1498
        %v2363 = vcvt.s32.f32 %v1499
        %v2364 = vcvt.s32.f32 %v1500
        %v2365 = vcvt.s32.f32 %v1501
        %v2366 = vcvt.s32.f32 %v1502
        %v2367 = vcvt.s32.f32 %v1503
        %v2368 = vcvt.s32.f32 %v1504
        %v2369 = vcvt.s32.f32 %v1505
        %v2370 = vcvt.s32.f32 %v1506
        %v2371 = vcvt.s32.f32 %v1507
        %v2372 = vcvt.s32.f32 %v1508
        %v2373 = vcvt.s32.f32 %v1509
        %v2374 = vcvt.s32.f32 %v1510
        %v2375 = vcvt.s32.f32 %v1511
        %v2376 = vcvt.s32.f32 %v1512
        %v2377 = vcvt.s32.f32 %v1513
        %v2378 = vcvt.s32.f32 %v1514
        %v2379 = vcvt.s32.f32 %v1515
        %v2380 = vcvt.s32.f32 %v1516
        %v2381 = vcvt.s32.f32 %v1517
        %v2382 = vcvt.s32.f32 %v1518
        %v2383 = vcvt.s32.f32 %v1519
        %v2384 = vcvt.s32.f32 %v1520
        %v2385 = vcvt.s32.f32 %v1521
        %v2386 = vcvt.s32.f32 %v1522
        %v2387 = vcvt.s32.f32 %v1523
        %v2388 = vcvt.s32.f32 %v1524
        %v2389 = vcvt.s32.f32 %v1525
        %v2390 = vcvt.s32.f32 %v1526
        %v2391 = vcvt.s32.f32 %v1527
        %v2392 = vcvt.s32.f32 %v1528
        %v2393 = vcvt.s32.f32 %v1529
        %v2394 = vcvt.s32.f32 %v1530
        %v2395 = vcvt.s32.f32 %v1531
        %v2396 = vcvt.s32.f32 %v1532
        %v2397 = vcvt.s32.f32 %v1533
        %v2398 = vcvt.s32.f32 %v1534
        %v2399 = vcvt.s32.f32 %v1535
        %v2400 = vcvt.s32.f32 %v1536
        %v2401 = vcvt.s32.f32 %v1537
        %v2402 = vcvt.s32.f32 %v1538
        %v2403 = vcvt.s32.f32 %v1539
        %v2404 = vcvt.s32.f32 %v1540
        %v2405 = vcvt.s32.f32 %v1541
        %v2406 = vcvt.s32.f32 %v1542
        %v2407 = vld [vmem:[#allocation2] sm:$0xff]
        %v2408 = vld [vmem:[#allocation2 + $0x8] sm:$0xff]
        %v2409 = vld [vmem:[#allocation2 + $0x10] sm:$0xff]
        %v2410 = vld [vmem:[#allocation2 + $0x18] sm:$0xff]
        %v2411 = vld [vmem:[#allocation2 + $0x20] sm:$0xf]
        %2412 = vmatprep.subr.mxu0 %v1544
        %2413 = vmatpush1.msra.mxu0 %v1543
        %2414 = vmatprep.subr.mxu0 %v1553
        %2415 = vmatpush1.msra.mxu0 %v1552
        %2416 = vmatprep.subr.mxu0 %v1562
        %2417 = vmatpush1.msra.mxu0 %v1561
        %2418 = vmatprep.subr.mxu0 %v1571
        %2419 = vmatpush1.msra.mxu0 %v1570
        %2420 = vmatprep.subr.mxu0 %v1580
        %2421 = vmatpush1.msra.mxu0 %v1579
        %2422 = vmatprep.subr.mxu0 %v1589
        %2423 = vmatpush1.msra.mxu0 %v1588
        %2424 = vmatprep.subr.mxu0 %v1598
        %2425 = vmatpush1.msra.mxu0 %v1597
        %2426 = vmatprep.subr.mxu0 %v1607
        %2427 = vmatpush1.msra.mxu0 %v1606
        %2428 = vmatprep.subr.mxu0 %v1616
        %2429 = vmatpush1.msra.mxu0 %v1615
        %2430 = vmatprep.subr.mxu0 %v1625
        %2431 = vmatpush1.msra.mxu0 %v1624
        %2432 = vmatprep.subr.mxu0 %v1634
        %2433 = vmatpush1.msra.mxu0 %v1633
        %2434 = vmatprep.subr.mxu0 %v1643
        %2435 = vmatpush1.msra.mxu0 %v1642
        %2436 = vmatprep.subr.mxu0 %v1652
        %2437 = vmatpush1.msra.mxu0 %v1651
        %2438 = vmatprep.subr.mxu0 %v1661
        %2439 = vmatpush1.msra.mxu0 %v1660
        %2440 = vmatprep.subr.mxu0 %v1670
        %2441 = vmatpush1.msra.mxu0 %v1669
        %2442 = vmatprep.subr.mxu0 %v1679
        %2443 = vmatpush1.msra.mxu0 %v1678
        %2444 = vmatprep.subr.mxu0 %v1688
        %2445 = vmatpush1.msra.mxu0 %v1687
        %2446 = vmatprep.subr.mxu0 %v1697
        %2447 = vmatpush1.msra.mxu0 %v1696
        %2448 = vmatprep.subr.mxu0 %v1706
        %2449 = vmatpush1.msra.mxu0 %v1705
        %2450 = vmatprep.subr.mxu0 %v1715
        %2451 = vmatpush1.msra.mxu0 %v1714
        %2452 = vmatprep.subr.mxu0 %v1724
        %2453 = vmatpush1.msra.mxu0 %v1723
        %2454 = vmatprep.subr.mxu0 %v1733
        %2455 = vmatpush1.msra.mxu0 %v1732
        %2456 = vmatprep.subr.mxu0 %v1742
        %2457 = vmatpush1.msra.mxu0 %v1741
        %2458 = vmatprep.subr.mxu0 %v1751
        %2459 = vmatpush1.msra.mxu0 %v1750
        %2460 = vmatprep.subr.mxu0 %v1760
        %2461 = vmatpush1.msra.mxu0 %v1759
        %2462 = vmatprep.subr.mxu0 %v1769
        %2463 = vmatpush1.msra.mxu0 %v1768
        %2464 = vmatprep.subr.mxu0 %v1778
        %2465 = vmatpush1.msra.mxu0 %v1777
        %2466 = vmatprep.subr.mxu0 %v1787
        %2467 = vmatpush1.msra.mxu0 %v1786
        %2468 = vmatprep.subr.mxu0 %v1796
        %2469 = vmatpush1.msra.mxu0 %v1795
        %2470 = vmatprep.subr.mxu0 %v1805
        %2471 = vmatpush1.msra.mxu0 %v1804
        %2472 = vmatprep.subr.mxu0 %v1814
        %2473 = vmatpush1.msra.mxu0 %v1813
        %2474 = vmatprep.subr.mxu0 %v1823
        %2475 = vmatpush1.msra.mxu0 %v1822
        %2476 = vmatprep.mubr.f32.mxu0 %v458
        %2477 = vmatmul.mubr.f32.gmra.mrb[0].mxu0 %v457
        %v2478 = vpop.f32.mrb[0].mxu0
        %v2479 = vadd.f32 0.0, %v2478
        %v2480 = vpop.f32.mrb[0].mxu0
        %v2481 = vadd.f32 0.0, %v2480
        %2482 = vdwg.mxu0
        %2483 = vmatprep.subr.mxu0 %v1832
        %2484 = vmatpush1.msra.mxu0 %v1831
        %2485 = vmatprep.subr.mxu0 %v1841
        %2486 = vmatpush1.msra.mxu0 %v1840
        %2487 = vmatprep.subr.mxu0 %v1850
        %2488 = vmatpush1.msra.mxu0 %v1849
        %2489 = vmatprep.subr.mxu0 %v1859
        %2490 = vmatpush1.msra.mxu0 %v1858
        %2491 = vmatprep.subr.mxu0 %v1868
        %2492 = vmatpush1.msra.mxu0 %v1867
        %2493 = vmatprep.subr.mxu0 %v1877
        %2494 = vmatpush1.msra.mxu0 %v1876
        %2495 = vmatprep.subr.mxu0 %v1886
        %2496 = vmatpush1.msra.mxu0 %v1885
        %2497 = vmatprep.subr.mxu0 %v1895
        %2498 = vmatpush1.msra.mxu0 %v1894
        %2499 = vmatprep.subr.mxu0 %v1904
        %2500 = vmatpush1.msra.mxu0 %v1903
        %2501 = vmatprep.subr.mxu0 %v1913
        %2502 = vmatpush1.msra.mxu0 %v1912
        %2503 = vmatprep.subr.mxu0 %v1922
        %2504 = vmatpush1.msra.mxu0 %v1921
        %2505 = vmatprep.subr.mxu0 %v1931
        %2506 = vmatpush1.msra.mxu0 %v1930
        %2507 = vmatprep.subr.mxu0 %v1940
        %2508 = vmatpush1.msra.mxu0 %v1939
        %2509 = vmatprep.subr.mxu0 %v1949
        %2510 = vmatpush1.msra.mxu0 %v1948
        %2511 = vmatprep.subr.mxu0 %v1958
        %2512 = vmatpush1.msra.mxu0 %v1957
        %2513 = vmatprep.subr.mxu0 %v1967
        %2514 = vmatpush1.msra.mxu0 %v1966
        %2515 = vmatprep.subr.mxu0 %v1976
        %2516 = vmatpush1.msra.mxu0 %v1975
        %2517 = vmatprep.subr.mxu0 %v1985
        %2518 = vmatpush1.msra.mxu0 %v1984
        %2519 = vmatprep.subr.mxu0 %v1994
        %2520 = vmatpush1.msra.mxu0 %v1993
        %2521 = vmatprep.subr.mxu0 %v2003
        %2522 = vmatpush1.msra.mxu0 %v2002
        %2523 = vmatprep.subr.mxu0 %v2012
        %2524 = vmatpush1.msra.mxu0 %v2011
        %2525 = vmatprep.subr.mxu0 %v2021
        %2526 = vmatpush1.msra.mxu0 %v2020
        %2527 = vmatprep.subr.mxu0 %v2030
        %2528 = vmatpush1.msra.mxu0 %v2029
        %2529 = vmatprep.subr.mxu0 %v2039
        %2530 = vmatpush1.msra.mxu0 %v2038
        %2531 = vmatprep.subr.mxu0 %v2048
        %2532 = vmatpush1.msra.mxu0 %v2047
        %2533 = vmatprep.subr.mxu0 %v2057
        %2534 = vmatpush1.msra.mxu0 %v2056
        %2535 = vmatprep.subr.mxu0 %v2066
        %2536 = vmatpush1.msra.mxu0 %v2065
        %2537 = vmatprep.subr.mxu0 %v2075
        %2538 = vmatpush1.msra.mxu0 %v2074
        %2539 = vmatprep.subr.mxu0 %v2084
        %2540 = vmatpush1.msra.mxu0 %v2083
        %2541 = vmatprep.subr.mxu0 %v2093
        %2542 = vmatpush1.msra.mxu0 %v2092
        %2543 = vmatprep.subr.mxu0 %v2102
        %2544 = vmatpush1.msra.mxu0 %v2101
        %2545 = vmatprep.subr.mxu0 %v2111
        %2546 = vmatpush1.msra.mxu0 %v2110
        %2547 = vmatprep.mubr.f32.mxu0 %v460
        %2548 = vmatmul.mubr.f32.gmra.mrb[0].mxu0 %v459
        %v2549 = vpop.f32.mrb[0].mxu0
        %v2550 = vadd.f32 %v2479, %v2549
        %v2551 = vpop.f32.mrb[0].mxu0
        %v2552 = vadd.f32 %v2481, %v2551
        %2553 = vdwg.mxu0
        %2554 = vmatprep.subr.mxu0 %v2120
        %2555 = vmatpush1.msra.mxu0 %v2119
        %2556 = vmatprep.subr.mxu0 %v2129
        %2557 = vmatpush1.msra.mxu0 %v2128
        %2558 = vmatprep.subr.mxu0 %v2138
        %2559 = vmatpush1.msra.mxu0 %v2137
        %2560 = vmatprep.subr.mxu0 %v2147
        %2561 = vmatpush1.msra.mxu0 %v2146
        %2562 = vmatprep.subr.mxu0 %v2156
        %2563 = vmatpush1.msra.mxu0 %v2155
        %2564 = vmatprep.subr.mxu0 %v2165
        %2565 = vmatpush1.msra.mxu0 %v2164
        %2566 = vmatprep.subr.mxu0 %v2174
        %2567 = vmatpush1.msra.mxu0 %v2173
        %2568 = vmatprep.subr.mxu0 %v2183
        %2569 = vmatpush1.msra.mxu0 %v2182
        %2570 = vmatprep.subr.mxu0 %v2192
        %2571 = vmatpush1.msra.mxu0 %v2191
        %2572 = vmatprep.subr.mxu0 %v2201
        %2573 = vmatpush1.msra.mxu0 %v2200
        %2574 = vmatprep.subr.mxu0 %v2210
        %2575 = vmatpush1.msra.mxu0 %v2209
        %2576 = vmatprep.subr.mxu0 %v2219
        %2577 = vmatpush1.msra.mxu0 %v2218
        %2578 = vmatprep.subr.mxu0 %v2228
        %2579 = vmatpush1.msra.mxu0 %v2227
        %2580 = vmatprep.subr.mxu0 %v2237
        %2581 = vmatpush1.msra.mxu0 %v2236
        %2582 = vmatprep.subr.mxu0 %v2246
        %2583 = vmatpush1.msra.mxu0 %v2245
        %2584 = vmatprep.subr.mxu0 %v2255
        %2585 = vmatpush1.msra.mxu0 %v2254
        %2586 = vmatprep.subr.mxu0 %v2264
        %2587 = vmatpush1.msra.mxu0 %v2263
        %2588 = vmatprep.subr.mxu0 %v2273
        %2589 = vmatpush1.msra.mxu0 %v2272
        %2590 = vmatprep.subr.mxu0 %v2282
        %2591 = vmatpush1.msra.mxu0 %v2281
        %2592 = vmatprep.subr.mxu0 %v2291
        %2593 = vmatpush1.msra.mxu0 %v2290
        %2594 = vmatprep.subr.mxu0 %v2300
        %2595 = vmatpush1.msra.mxu0 %v2299
        %2596 = vmatprep.subr.mxu0 %v2309
        %2597 = vmatpush1.msra.mxu0 %v2308
        %2598 = vmatprep.subr.mxu0 %v2318
        %2599 = vmatpush1.msra.mxu0 %v2317
        %2600 = vmatprep.subr.mxu0 %v2327
        %2601 = vmatpush1.msra.mxu0 %v2326
        %2602 = vmatprep.subr.mxu0 %v2336
        %2603 = vmatpush1.msra.mxu0 %v2335
        %2604 = vmatprep.subr.mxu0 %v2345
        %2605 = vmatpush1.msra.mxu0 %v2344
        %2606 = vmatprep.subr.mxu0 %v2354
        %2607 = vmatpush1.msra.mxu0 %v2353
        %2608 = vmatprep.subr.mxu0 %v2363
        %2609 = vmatpush1.msra.mxu0 %v2362
        %2610 = vmatprep.subr.mxu0 %v2372
        %2611 = vmatpush1.msra.mxu0 %v2371
        %2612 = vmatprep.subr.mxu0 %v2381
        %2613 = vmatpush1.msra.mxu0 %v2380
        %2614 = vmatprep.subr.mxu0 %v2390
        %2615 = vmatpush1.msra.mxu0 %v2389
        %2616 = vmatprep.subr.mxu0 %v2399
        %2617 = vmatpush1.msra.mxu0 %v2398
        %2618 = vmatprep.mubr.f32.mxu0 %v462
        %2619 = vmatmul.mubr.f32.gmra.mrb[0].mxu0 %v461
        %v2620 = vpop.f32.mrb[0].mxu0
        %v2621 = vadd.f32 %v2550, %v2620
        %v2622 = vpop.f32.mrb[0].mxu0
        %v2623 = vadd.f32 %v2552, %v2622
        %2624 = vdwg.mxu0
        %2625 = vmatprep.subr.mxu0 %v1546
        %2626 = vmatpush1.msra.mxu0 %v1545
        %2627 = vmatprep.subr.mxu0 %v1555
        %2628 = vmatpush1.msra.mxu0 %v1554
        %2629 = vmatprep.subr.mxu0 %v1564
        %2630 = vmatpush1.msra.mxu0 %v1563
        %2631 = vmatprep.subr.mxu0 %v1573
        %2632 = vmatpush1.msra.mxu0 %v1572
        %2633 = vmatprep.subr.mxu0 %v1582
        %2634 = vmatpush1.msra.mxu0 %v1581
        %2635 = vmatprep.subr.mxu0 %v1591
        %2636 = vmatpush1.msra.mxu0 %v1590
        %2637 = vmatprep.subr.mxu0 %v1600
        %2638 = vmatpush1.msra.mxu0 %v1599
        %2639 = vmatprep.subr.mxu0 %v1609
        %2640 = vmatpush1.msra.mxu0 %v1608
        %2641 = vmatprep.subr.mxu0 %v1618
        %2642 = vmatpush1.msra.mxu0 %v1617
        %2643 = vmatprep.subr.mxu0 %v1627
        %2644 = vmatpush1.msra.mxu0 %v1626
        %2645 = vmatprep.subr.mxu0 %v1636
        %2646 = vmatpush1.msra.mxu0 %v1635
        %2647 = vmatprep.subr.mxu0 %v1645
        %2648 = vmatpush1.msra.mxu0 %v1644
        %2649 = vmatprep.subr.mxu0 %v1654
        %2650 = vmatpush1.msra.mxu0 %v1653
        %2651 = vmatprep.subr.mxu0 %v1663
        %2652 = vmatpush1.msra.mxu0 %v1662
        %2653 = vmatprep.subr.mxu0 %v1672
        %2654 = vmatpush1.msra.mxu0 %v1671
        %2655 = vmatprep.subr.mxu0 %v1681
        %2656 = vmatpush1.msra.mxu0 %v1680
        %2657 = vmatprep.subr.mxu0 %v1690
        %2658 = vmatpush1.msra.mxu0 %v1689
        %2659 = vmatprep.subr.mxu0 %v1699
        %2660 = vmatpush1.msra.mxu0 %v1698
        %2661 = vmatprep.subr.mxu0 %v1708
        %2662 = vmatpush1.msra.mxu0 %v1707
        %2663 = vmatprep.subr.mxu0 %v1717
        %2664 = vmatpush1.msra.mxu0 %v1716
        %2665 = vmatprep.subr.mxu0 %v1726
        %2666 = vmatpush1.msra.mxu0 %v1725
        %2667 = vmatprep.subr.mxu0 %v1735
        %2668 = vmatpush1.msra.mxu0 %v1734
        %2669 = vmatprep.subr.mxu0 %v1744
        %2670 = vmatpush1.msra.mxu0 %v1743
        %2671 = vmatprep.subr.mxu0 %v1753
        %2672 = vmatpush1.msra.mxu0 %v1752
        %2673 = vmatprep.subr.mxu0 %v1762
        %2674 = vmatpush1.msra.mxu0 %v1761
        %2675 = vmatprep.subr.mxu0 %v1771
        %2676 = vmatpush1.msra.mxu0 %v1770
        %2677 = vmatprep.subr.mxu0 %v1780
        %2678 = vmatpush1.msra.mxu0 %v1779
        %2679 = vmatprep.subr.mxu0 %v1789
        %2680 = vmatpush1.msra.mxu0 %v1788
        %2681 = vmatprep.subr.mxu0 %v1798
        %2682 = vmatpush1.msra.mxu0 %v1797
        %2683 = vmatprep.subr.mxu0 %v1807
        %2684 = vmatpush1.msra.mxu0 %v1806
        %2685 = vmatprep.subr.mxu0 %v1816
        %2686 = vmatpush1.msra.mxu0 %v1815
        %2687 = vmatprep.subr.mxu0 %v1825
        %2688 = vmatpush1.msra.mxu0 %v1824
        %2689 = vmatprep.mubr.f32.mxu0 %v458
        %2690 = vmatmul.mubr.f32.gmra.mrb[0].mxu0 %v457
        %v2691 = vpop.f32.mrb[0].mxu0
        %v2692 = vadd.f32 0.0, %v2691
        %v2693 = vpop.f32.mrb[0].mxu0
        %v2694 = vadd.f32 0.0, %v2693
        %2695 = vdwg.mxu0
        %2696 = vmatprep.subr.mxu0 %v1834
        %2697 = vmatpush1.msra.mxu0 %v1833
        %2698 = vmatprep.subr.mxu0 %v1843
        %2699 = vmatpush1.msra.mxu0 %v1842
        %2700 = vmatprep.subr.mxu0 %v1852
        %2701 = vmatpush1.msra.mxu0 %v1851
        %2702 = vmatprep.subr.mxu0 %v1861
        %2703 = vmatpush1.msra.mxu0 %v1860
        %2704 = vmatprep.subr.mxu0 %v1870
        %2705 = vmatpush1.msra.mxu0 %v1869
        %2706 = vmatprep.subr.mxu0 %v1879
        %2707 = vmatpush1.msra.mxu0 %v1878
        %2708 = vmatprep.subr.mxu0 %v1888
        %2709 = vmatpush1.msra.mxu0 %v1887
        %2710 = vmatprep.subr.mxu0 %v1897
        %2711 = vmatpush1.msra.mxu0 %v1896
        %2712 = vmatprep.subr.mxu0 %v1906
        %2713 = vmatpush1.msra.mxu0 %v1905
        %2714 = vmatprep.subr.mxu0 %v1915
        %2715 = vmatpush1.msra.mxu0 %v1914
        %2716 = vmatprep.subr.mxu0 %v1924
        %2717 = vmatpush1.msra.mxu0 %v1923
        %2718 = vmatprep.subr.mxu0 %v1933
        %2719 = vmatpush1.msra.mxu0 %v1932
        %2720 = vmatprep.subr.mxu0 %v1942
        %2721 = vmatpush1.msra.mxu0 %v1941
        %2722 = vmatprep.subr.mxu0 %v1951
        %2723 = vmatpush1.msra.mxu0 %v1950
        %2724 = vmatprep.subr.mxu0 %v1960
        %2725 = vmatpush1.msra.mxu0 %v1959
        %2726 = vmatprep.subr.mxu0 %v1969
        %2727 = vmatpush1.msra.mxu0 %v1968
        %2728 = vmatprep.subr.mxu0 %v1978
        %2729 = vmatpush1.msra.mxu0 %v1977
        %2730 = vmatprep.subr.mxu0 %v1987
        %2731 = vmatpush1.msra.mxu0 %v1986
        %2732 = vmatprep.subr.mxu0 %v1996
        %2733 = vmatpush1.msra.mxu0 %v1995
        %2734 = vmatprep.subr.mxu0 %v2005
        %2735 = vmatpush1.msra.mxu0 %v2004
        %2736 = vmatprep.subr.mxu0 %v2014
        %2737 = vmatpush1.msra.mxu0 %v2013
        %2738 = vmatprep.subr.mxu0 %v2023
        %2739 = vmatpush1.msra.mxu0 %v2022
        %2740 = vmatprep.subr.mxu0 %v2032
        %2741 = vmatpush1.msra.mxu0 %v2031
        %2742 = vmatprep.subr.mxu0 %v2041
        %2743 = vmatpush1.msra.mxu0 %v2040
        %2744 = vmatprep.subr.mxu0 %v2050
        %2745 = vmatpush1.msra.mxu0 %v2049
        %2746 = vmatprep.subr.mxu0 %v2059
        %2747 = vmatpush1.msra.mxu0 %v2058
        %2748 = vmatprep.subr.mxu0 %v2068
        %2749 = vmatpush1.msra.mxu0 %v2067
        %2750 = vmatprep.subr.mxu0 %v2077
        %2751 = vmatpush1.msra.mxu0 %v2076
        %2752 = vmatprep.subr.mxu0 %v2086
        %2753 = vmatpush1.msra.mxu0 %v2085
        %2754 = vmatprep.subr.mxu0 %v2095
        %2755 = vmatpush1.msra.mxu0 %v2094
        %2756 = vmatprep.subr.mxu0 %v2104
        %2757 = vmatpush1.msra.mxu0 %v2103
        %2758 = vmatprep.subr.mxu0 %v2113
        %2759 = vmatpush1.msra.mxu0 %v2112
        %2760 = vmatprep.mubr.f32.mxu0 %v460
        %2761 = vmatmul.mubr.f32.gmra.mrb[0].mxu0 %v459
        %v2762 = vpop.f32.mrb[0].mxu0
        %v2763 = vadd.f32 %v2692, %v2762
        %v2764 = vpop.f32.mrb[0].mxu0
        %v2765 = vadd.f32 %v2694, %v2764
        %2766 = vdwg.mxu0
        %2767 = vmatprep.subr.mxu0 %v2122
        %2768 = vmatpush1.msra.mxu0 %v2121
        %2769 = vmatprep.subr.mxu0 %v2131
        %2770 = vmatpush1.msra.mxu0 %v2130
        %2771 = vmatprep.subr.mxu0 %v2140
        %2772 = vmatpush1.msra.mxu0 %v2139
        %2773 = vmatprep.subr.mxu0 %v2149
        %2774 = vmatpush1.msra.mxu0 %v2148
        %2775 = vmatprep.subr.mxu0 %v2158
        %2776 = vmatpush1.msra.mxu0 %v2157
        %2777 = vmatprep.subr.mxu0 %v2167
        %2778 = vmatpush1.msra.mxu0 %v2166
        %2779 = vmatprep.subr.mxu0 %v2176
        %2780 = vmatpush1.msra.mxu0 %v2175
        %2781 = vmatprep.subr.mxu0 %v2185
        %2782 = vmatpush1.msra.mxu0 %v2184
        %2783 = vmatprep.subr.mxu0 %v2194
        %2784 = vmatpush1.msra.mxu0 %v2193
        %2785 = vmatprep.subr.mxu0 %v2203
        %2786 = vmatpush1.msra.mxu0 %v2202
        %2787 = vmatprep.subr.mxu0 %v2212
        %2788 = vmatpush1.msra.mxu0 %v2211
        %2789 = vmatprep.subr.mxu0 %v2221
        %2790 = vmatpush1.msra.mxu0 %v2220
        %2791 = vmatprep.subr.mxu0 %v2230
        %2792 = vmatpush1.msra.mxu0 %v2229
        %2793 = vmatprep.subr.mxu0 %v2239
        %2794 = vmatpush1.msra.mxu0 %v2238
        %2795 = vmatprep.subr.mxu0 %v2248
        %2796 = vmatpush1.msra.mxu0 %v2247
        %2797 = vmatprep.subr.mxu0 %v2257
        %2798 = vmatpush1.msra.mxu0 %v2256
        %2799 = vmatprep.subr.mxu0 %v2266
        %2800 = vmatpush1.msra.mxu0 %v2265
        %2801 = vmatprep.subr.mxu0 %v2275
        %2802 = vmatpush1.msra.mxu0 %v2274
        %2803 = vmatprep.subr.mxu0 %v2284
        %2804 = vmatpush1.msra.mxu0 %v2283
        %2805 = vmatprep.subr.mxu0 %v2293
        %2806 = vmatpush1.msra.mxu0 %v2292
        %2807 = vmatprep.subr.mxu0 %v2302
        %2808 = vmatpush1.msra.mxu0 %v2301
        %2809 = vmatprep.subr.mxu0 %v2311
        %2810 = vmatpush1.msra.mxu0 %v2310
        %2811 = vmatprep.subr.mxu0 %v2320
        %2812 = vmatpush1.msra.mxu0 %v2319
        %2813 = vmatprep.subr.mxu0 %v2329
        %2814 = vmatpush1.msra.mxu0 %v2328
        %2815 = vmatprep.subr.mxu0 %v2338
        %2816 = vmatpush1.msra.mxu0 %v2337
        %2817 = vmatprep.subr.mxu0 %v2347
        %2818 = vmatpush1.msra.mxu0 %v2346
        %2819 = vmatprep.subr.mxu0 %v2356
        %2820 = vmatpush1.msra.mxu0 %v2355
        %2821 = vmatprep.subr.mxu0 %v2365
        %2822 = vmatpush1.msra.mxu0 %v2364
        %2823 = vmatprep.subr.mxu0 %v2374
        %2824 = vmatpush1.msra.mxu0 %v2373
        %2825 = vmatprep.subr.mxu0 %v2383
        %2826 = vmatpush1.msra.mxu0 %v2382
        %2827 = vmatprep.subr.mxu0 %v2392
        %2828 = vmatpush1.msra.mxu0 %v2391
        %2829 = vmatprep.subr.mxu0 %v2401
        %2830 = vmatpush1.msra.mxu0 %v2400
        %2831 = vmatprep.mubr.f32.mxu0 %v462
        %2832 = vmatmul.mubr.f32.gmra.mrb[0].mxu0 %v461
        %v2833 = vpop.f32.mrb[0].mxu0
        %v2834 = vadd.f32 %v2763, %v2833
        %v2835 = vpop.f32.mrb[0].mxu0
        %v2836 = vadd.f32 %v2765, %v2835
        %2837 = vdwg.mxu0
        %2838 = vmatprep.subr.mxu0 %v1548
        %2839 = vmatpush1.msra.mxu0 %v1547
        %2840 = vmatprep.subr.mxu0 %v1557
        %2841 = vmatpush1.msra.mxu0 %v1556
        %2842 = vmatprep.subr.mxu0 %v1566
        %2843 = vmatpush1.msra.mxu0 %v1565
        %2844 = vmatprep.subr.mxu0 %v1575
        %2845 = vmatpush1.msra.mxu0 %v1574
        %2846 = vmatprep.subr.mxu0 %v1584
        %2847 = vmatpush1.msra.mxu0 %v1583
        %2848 = vmatprep.subr.mxu0 %v1593
        %2849 = vmatpush1.msra.mxu0 %v1592
        %2850 = vmatprep.subr.mxu0 %v1602
        %2851 = vmatpush1.msra.mxu0 %v1601
        %2852 = vmatprep.subr.mxu0 %v1611
        %2853 = vmatpush1.msra.mxu0 %v1610
        %2854 = vmatprep.subr.mxu0 %v1620
        %2855 = vmatpush1.msra.mxu0 %v1619
        %2856 = vmatprep.subr.mxu0 %v1629
        %2857 = vmatpush1.msra.mxu0 %v1628
        %2858 = vmatprep.subr.mxu0 %v1638
        %2859 = vmatpush1.msra.mxu0 %v1637
        %2860 = vmatprep.subr.mxu0 %v1647
        %2861 = vmatpush1.msra.mxu0 %v1646
        %2862 = vmatprep.subr.mxu0 %v1656
        %2863 = vmatpush1.msra.mxu0 %v1655
        %2864 = vmatprep.subr.mxu0 %v1665
        %2865 = vmatpush1.msra.mxu0 %v1664
        %2866 = vmatprep.subr.mxu0 %v1674
        %2867 = vmatpush1.msra.mxu0 %v1673
        %2868 = vmatprep.subr.mxu0 %v1683
        %2869 = vmatpush1.msra.mxu0 %v1682
        %2870 = vmatprep.subr.mxu0 %v1692
        %2871 = vmatpush1.msra.mxu0 %v1691
        %2872 = vmatprep.subr.mxu0 %v1701
        %2873 = vmatpush1.msra.mxu0 %v1700
        %2874 = vmatprep.subr.mxu0 %v1710
        %2875 = vmatpush1.msra.mxu0 %v1709
        %2876 = vmatprep.subr.mxu0 %v1719
        %2877 = vmatpush1.msra.mxu0 %v1718
        %2878 = vmatprep.subr.mxu0 %v1728
        %2879 = vmatpush1.msra.mxu0 %v1727
        %2880 = vmatprep.subr.mxu0 %v1737
        %2881 = vmatpush1.msra.mxu0 %v1736
        %2882 = vmatprep.subr.mxu0 %v1746
        %2883 = vmatpush1.msra.mxu0 %v1745
        %2884 = vmatprep.subr.mxu0 %v1755
        %2885 = vmatpush1.msra.mxu0 %v1754
        %2886 = vmatprep.subr.mxu0 %v1764
        %2887 = vmatpush1.msra.mxu0 %v1763
        %2888 = vmatprep.subr.mxu0 %v1773
        %2889 = vmatpush1.msra.mxu0 %v1772
        %2890 = vmatprep.subr.mxu0 %v1782
        %2891 = vmatpush1.msra.mxu0 %v1781
        %2892 = vmatprep.subr.mxu0 %v1791
        %2893 = vmatpush1.msra.mxu0 %v1790
        %2894 = vmatprep.subr.mxu0 %v1800
        %2895 = vmatpush1.msra.mxu0 %v1799
        %2896 = vmatprep.subr.mxu0 %v1809
        %2897 = vmatpush1.msra.mxu0 %v1808
        %2898 = vmatprep.subr.mxu0 %v1818
        %2899 = vmatpush1.msra.mxu0 %v1817
        %2900 = vmatprep.subr.mxu0 %v1827
        %2901 = vmatpush1.msra.mxu0 %v1826
        %2902 = vmatprep.mubr.f32.mxu0 %v458
        %2903 = vmatmul.mubr.f32.gmra.mrb[0].mxu0 %v457
        %v2904 = vpop.f32.mrb[0].mxu0
        %v2905 = vadd.f32 0.0, %v2904
        %v2906 = vpop.f32.mrb[0].mxu0
        %v2907 = vadd.f32 0.0, %v2906
        %2908 = vdwg.mxu0
        %2909 = vmatprep.subr.mxu0 %v1836
        %2910 = vmatpush1.msra.mxu0 %v1835
        %2911 = vmatprep.subr.mxu0 %v1845
        %2912 = vmatpush1.msra.mxu0 %v1844
        %2913 = vmatprep.subr.mxu0 %v1854
        %2914 = vmatpush1.msra.mxu0 %v1853
        %2915 = vmatprep.subr.mxu0 %v1863
        %2916 = vmatpush1.msra.mxu0 %v1862
        %2917 = vmatprep.subr.mxu0 %v1872
        %2918 = vmatpush1.msra.mxu0 %v1871
        %2919 = vmatprep.subr.mxu0 %v1881
        %2920 = vmatpush1.msra.mxu0 %v1880
        %2921 = vmatprep.subr.mxu0 %v1890
        %2922 = vmatpush1.msra.mxu0 %v1889
        %2923 = vmatprep.subr.mxu0 %v1899
        %2924 = vmatpush1.msra.mxu0 %v1898
        %2925 = vmatprep.subr.mxu0 %v1908
        %2926 = vmatpush1.msra.mxu0 %v1907
        %2927 = vmatprep.subr.mxu0 %v1917
        %2928 = vmatpush1.msra.mxu0 %v1916
        %2929 = vmatprep.subr.mxu0 %v1926
        %2930 = vmatpush1.msra.mxu0 %v1925
        %2931 = vmatprep.subr.mxu0 %v1935
        %2932 = vmatpush1.msra.mxu0 %v1934
        %2933 = vmatprep.subr.mxu0 %v1944
        %2934 = vmatpush1.msra.mxu0 %v1943
        %2935 = vmatprep.subr.mxu0 %v1953
        %2936 = vmatpush1.msra.mxu0 %v1952
        %2937 = vmatprep.subr.mxu0 %v1962
        %2938 = vmatpush1.msra.mxu0 %v1961
        %2939 = vmatprep.subr.mxu0 %v1971
        %2940 = vmatpush1.msra.mxu0 %v1970
        %2941 = vmatprep.subr.mxu0 %v1980
        %2942 = vmatpush1.msra.mxu0 %v1979
        %2943 = vmatprep.subr.mxu0 %v1989
        %2944 = vmatpush1.msra.mxu0 %v1988
        %2945 = vmatprep.subr.mxu0 %v1998
        %2946 = vmatpush1.msra.mxu0 %v1997
        %2947 = vmatprep.subr.mxu0 %v2007
        %2948 = vmatpush1.msra.mxu0 %v2006
        %2949 = vmatprep.subr.mxu0 %v2016
        %2950 = vmatpush1.msra.mxu0 %v2015
        %2951 = vmatprep.subr.mxu0 %v2025
        %2952 = vmatpush1.msra.mxu0 %v2024
        %2953 = vmatprep.subr.mxu0 %v2034
        %2954 = vmatpush1.msra.mxu0 %v2033
        %2955 = vmatprep.subr.mxu0 %v2043
        %2956 = vmatpush1.msra.mxu0 %v2042
        %2957 = vmatprep.subr.mxu0 %v2052
        %2958 = vmatpush1.msra.mxu0 %v2051
        %2959 = vmatprep.subr.mxu0 %v2061
        %2960 = vmatpush1.msra.mxu0 %v2060
        %2961 = vmatprep.subr.mxu0 %v2070
        %2962 = vmatpush1.msra.mxu0 %v2069
        %2963 = vmatprep.subr.mxu0 %v2079
        %2964 = vmatpush1.msra.mxu0 %v2078
        %2965 = vmatprep.subr.mxu0 %v2088
        %2966 = vmatpush1.msra.mxu0 %v2087
        %2967 = vmatprep.subr.mxu0 %v2097
        %2968 = vmatpush1.msra.mxu0 %v2096
        %2969 = vmatprep.subr.mxu0 %v2106
        %2970 = vmatpush1.msra.mxu0 %v2105
        %2971 = vmatprep.subr.mxu0 %v2115
        %2972 = vmatpush1.msra.mxu0 %v2114
        %2973 = vmatprep.mubr.f32.mxu0 %v460
        %2974 = vmatmul.mubr.f32.gmra.mrb[0].mxu0 %v459
        %v2975 = vpop.f32.mrb[0].mxu0
        %v2976 = vadd.f32 %v2905, %v2975
        %v2977 = vpop.f32.mrb[0].mxu0
        %v2978 = vadd.f32 %v2907, %v2977
        %2979 = vdwg.mxu0
        %2980 = vmatprep.subr.mxu0 %v2124
        %2981 = vmatpush1.msra.mxu0 %v2123
        %2982 = vmatprep.subr.mxu0 %v2133
        %2983 = vmatpush1.msra.mxu0 %v2132
        %2984 = vmatprep.subr.mxu0 %v2142
        %2985 = vmatpush1.msra.mxu0 %v2141
        %2986 = vmatprep.subr.mxu0 %v2151
        %2987 = vmatpush1.msra.mxu0 %v2150
        %2988 = vmatprep.subr.mxu0 %v2160
        %2989 = vmatpush1.msra.mxu0 %v2159
        %2990 = vmatprep.subr.mxu0 %v2169
        %2991 = vmatpush1.msra.mxu0 %v2168
        %2992 = vmatprep.subr.mxu0 %v2178
        %2993 = vmatpush1.msra.mxu0 %v2177
        %2994 = vmatprep.subr.mxu0 %v2187
        %2995 = vmatpush1.msra.mxu0 %v2186
        %2996 = vmatprep.subr.mxu0 %v2196
        %2997 = vmatpush1.msra.mxu0 %v2195
        %2998 = vmatprep.subr.mxu0 %v2205
        %2999 = vmatpush1.msra.mxu0 %v2204
        %3000 = vmatprep.subr.mxu0 %v2214
        %3001 = vmatpush1.msra.mxu0 %v2213
        %3002 = vmatprep.subr.mxu0 %v2223
        %3003 = vmatpush1.msra.mxu0 %v2222
        %3004 = vmatprep.subr.mxu0 %v2232
        %3005 = vmatpush1.msra.mxu0 %v2231
        %3006 = vmatprep.subr.mxu0 %v2241
        %3007 = vmatpush1.msra.mxu0 %v2240
        %3008 = vmatprep.subr.mxu0 %v2250
        %3009 = vmatpush1.msra.mxu0 %v2249
        %3010 = vmatprep.subr.mxu0 %v2259
        %3011 = vmatpush1.msra.mxu0 %v2258
        %3012 = vmatprep.subr.mxu0 %v2268
        %3013 = vmatpush1.msra.mxu0 %v2267
        %3014 = vmatprep.subr.mxu0 %v2277
        %3015 = vmatpush1.msra.mxu0 %v2276
        %3016 = vmatprep.subr.mxu0 %v2286
        %3017 = vmatpush1.msra.mxu0 %v2285
        %3018 = vmatprep.subr.mxu0 %v2295
        %3019 = vmatpush1.msra.mxu0 %v2294
        %3020 = vmatprep.subr.mxu0 %v2304
        %3021 = vmatpush1.msra.mxu0 %v2303
        %3022 = vmatprep.subr.mxu0 %v2313
        %3023 = vmatpush1.msra.mxu0 %v2312
        %3024 = vmatprep.subr.mxu0 %v2322
        %3025 = vmatpush1.msra.mxu0 %v2321
        %3026 = vmatprep.subr.mxu0 %v2331
        %3027 = vmatpush1.msra.mxu0 %v2330
        %3028 = vmatprep.subr.mxu0 %v2340
        %3029 = vmatpush1.msra.mxu0 %v2339
        %3030 = vmatprep.subr.mxu0 %v2349
        %3031 = vmatpush1.msra.mxu0 %v2348
        %3032 = vmatprep.subr.mxu0 %v2358
        %3033 = vmatpush1.msra.mxu0 %v2357
        %3034 = vmatprep.subr.mxu0 %v2367
        %3035 = vmatpush1.msra.mxu0 %v2366
        %3036 = vmatprep.subr.mxu0 %v2376
        %3037 = vmatpush1.msra.mxu0 %v2375
        %3038 = vmatprep.subr.mxu0 %v2385
        %3039 = vmatpush1.msra.mxu0 %v2384
        %3040 = vmatprep.subr.mxu0 %v2394
        %3041 = vmatpush1.msra.mxu0 %v2393
        %3042 = vmatprep.subr.mxu0 %v2403
        %3043 = vmatpush1.msra.mxu0 %v2402
        %3044 = vmatprep.mubr.f32.mxu0 %v462
        %3045 = vmatmul.mubr.f32.gmra.mrb[0].mxu0 %v461
        %v3046 = vpop.f32.mrb[0].mxu0
        %v3047 = vadd.f32 %v2976, %v3046
        %v3048 = vpop.f32.mrb[0].mxu0
        %v3049 = vadd.f32 %v2978, %v3048
        %3050 = vdwg.mxu0
        %3051 = vmatprep.subr.mxu0 %v1550
        %3052 = vmatpush1.msra.mxu0 %v1549
        %3053 = vmatprep.subr.mxu0 %v1559
        %3054 = vmatpush1.msra.mxu0 %v1558
        %3055 = vmatprep.subr.mxu0 %v1568
        %3056 = vmatpush1.msra.mxu0 %v1567
        %3057 = vmatprep.subr.mxu0 %v1577
        %3058 = vmatpush1.msra.mxu0 %v1576
        %3059 = vmatprep.subr.mxu0 %v1586
        %3060 = vmatpush1.msra.mxu0 %v1585
        %3061 = vmatprep.subr.mxu0 %v1595
        %3062 = vmatpush1.msra.mxu0 %v1594
        %3063 = vmatprep.subr.mxu0 %v1604
        %3064 = vmatpush1.msra.mxu0 %v1603
        %3065 = vmatprep.subr.mxu0 %v1613
        %3066 = vmatpush1.msra.mxu0 %v1612
        %3067 = vmatprep.subr.mxu0 %v1622
        %3068 = vmatpush1.msra.mxu0 %v1621
        %3069 = vmatprep.subr.mxu0 %v1631
        %3070 = vmatpush1.msra.mxu0 %v1630
        %3071 = vmatprep.subr.mxu0 %v1640
        %3072 = vmatpush1.msra.mxu0 %v1639
        %3073 = vmatprep.subr.mxu0 %v1649
        %3074 = vmatpush1.msra.mxu0 %v1648
        %3075 = vmatprep.subr.mxu0 %v1658
        %3076 = vmatpush1.msra.mxu0 %v1657
        %3077 = vmatprep.subr.mxu0 %v1667
        %3078 = vmatpush1.msra.mxu0 %v1666
        %3079 = vmatprep.subr.mxu0 %v1676
        %3080 = vmatpush1.msra.mxu0 %v1675
        %3081 = vmatprep.subr.mxu0 %v1685
        %3082 = vmatpush1.msra.mxu0 %v1684
        %3083 = vmatprep.subr.mxu0 %v1694
        %3084 = vmatpush1.msra.mxu0 %v1693
        %3085 = vmatprep.subr.mxu0 %v1703
        %3086 = vmatpush1.msra.mxu0 %v1702
        %3087 = vmatprep.subr.mxu0 %v1712
        %3088 = vmatpush1.msra.mxu0 %v1711
        %3089 = vmatprep.subr.mxu0 %v1721
        %3090 = vmatpush1.msra.mxu0 %v1720
        %3091 = vmatprep.subr.mxu0 %v1730
        %3092 = vmatpush1.msra.mxu0 %v1729
        %3093 = vmatprep.subr.mxu0 %v1739
        %3094 = vmatpush1.msra.mxu0 %v1738
        %3095 = vmatprep.subr.mxu0 %v1748
        %3096 = vmatpush1.msra.mxu0 %v1747
        %3097 = vmatprep.subr.mxu0 %v1757
        %3098 = vmatpush1.msra.mxu0 %v1756
        %3099 = vmatprep.subr.mxu0 %v1766
        %3100 = vmatpush1.msra.mxu0 %v1765
        %3101 = vmatprep.subr.mxu0 %v1775
        %3102 = vmatpush1.msra.mxu0 %v1774
        %3103 = vmatprep.subr.mxu0 %v1784
        %3104 = vmatpush1.msra.mxu0 %v1783
        %3105 = vmatprep.subr.mxu0 %v1793
        %3106 = vmatpush1.msra.mxu0 %v1792
        %3107 = vmatprep.subr.mxu0 %v1802
        %3108 = vmatpush1.msra.mxu0 %v1801
        %3109 = vmatprep.subr.mxu0 %v1811
        %3110 = vmatpush1.msra.mxu0 %v1810
        %3111 = vmatprep.subr.mxu0 %v1820
        %3112 = vmatpush1.msra.mxu0 %v1819
        %3113 = vmatprep.subr.mxu0 %v1829
        %3114 = vmatpush1.msra.mxu0 %v1828
        %3115 = vmatprep.mubr.f32.mxu0 %v458
        %3116 = vmatmul.mubr.f32.gmra.mrb[0].mxu0 %v457
        %v3117 = vpop.f32.mrb[0].mxu0
        %v3118 = vadd.f32 0.0, %v3117
        %v3119 = vpop.f32.mrb[0].mxu0
        %v3120 = vadd.f32 0.0, %v3119
        %3121 = vdwg.mxu0
        %3122 = vmatprep.subr.mxu0 %v1838
        %3123 = vmatpush1.msra.mxu0 %v1837
        %3124 = vmatprep.subr.mxu0 %v1847
        %3125 = vmatpush1.msra.mxu0 %v1846
        %3126 = vmatprep.subr.mxu0 %v1856
        %3127 = vmatpush1.msra.mxu0 %v1855
        %3128 = vmatprep.subr.mxu0 %v1865
        %3129 = vmatpush1.msra.mxu0 %v1864
        %3130 = vmatprep.subr.mxu0 %v1874
        %3131 = vmatpush1.msra.mxu0 %v1873
        %3132 = vmatprep.subr.mxu0 %v1883
        %3133 = vmatpush1.msra.mxu0 %v1882
        %3134 = vmatprep.subr.mxu0 %v1892
        %3135 = vmatpush1.msra.mxu0 %v1891
        %3136 = vmatprep.subr.mxu0 %v1901
        %3137 = vmatpush1.msra.mxu0 %v1900
        %3138 = vmatprep.subr.mxu0 %v1910
        %3139 = vmatpush1.msra.mxu0 %v1909
        %3140 = vmatprep.subr.mxu0 %v1919
        %3141 = vmatpush1.msra.mxu0 %v1918
        %3142 = vmatprep.subr.mxu0 %v1928
        %3143 = vmatpush1.msra.mxu0 %v1927
        %3144 = vmatprep.subr.mxu0 %v1937
        %3145 = vmatpush1.msra.mxu0 %v1936
        %3146 = vmatprep.subr.mxu0 %v1946
        %3147 = vmatpush1.msra.mxu0 %v1945
        %3148 = vmatprep.subr.mxu0 %v1955
        %3149 = vmatpush1.msra.mxu0 %v1954
        %3150 = vmatprep.subr.mxu0 %v1964
        %3151 = vmatpush1.msra.mxu0 %v1963
        %3152 = vmatprep.subr.mxu0 %v1973
        %3153 = vmatpush1.msra.mxu0 %v1972
        %3154 = vmatprep.subr.mxu0 %v1982
        %3155 = vmatpush1.msra.mxu0 %v1981
        %3156 = vmatprep.subr.mxu0 %v1991
        %3157 = vmatpush1.msra.mxu0 %v1990
        %3158 = vmatprep.subr.mxu0 %v2000
        %3159 = vmatpush1.msra.mxu0 %v1999
        %3160 = vmatprep.subr.mxu0 %v2009
        %3161 = vmatpush1.msra.mxu0 %v2008
        %3162 = vmatprep.subr.mxu0 %v2018
        %3163 = vmatpush1.msra.mxu0 %v2017
        %3164 = vmatprep.subr.mxu0 %v2027
        %3165 = vmatpush1.msra.mxu0 %v2026
        %3166 = vmatprep.subr.mxu0 %v2036
        %3167 = vmatpush1.msra.mxu0 %v2035
        %3168 = vmatprep.subr.mxu0 %v2045
        %3169 = vmatpush1.msra.mxu0 %v2044
        %3170 = vmatprep.subr.mxu0 %v2054
        %3171 = vmatpush1.msra.mxu0 %v2053
        %3172 = vmatprep.subr.mxu0 %v2063
        %3173 = vmatpush1.msra.mxu0 %v2062
        %3174 = vmatprep.subr.mxu0 %v2072
        %3175 = vmatpush1.msra.mxu0 %v2071
        %3176 = vmatprep.subr.mxu0 %v2081
        %3177 = vmatpush1.msra.mxu0 %v2080
        %3178 = vmatprep.subr.mxu0 %v2090
        %3179 = vmatpush1.msra.mxu0 %v2089
        %3180 = vmatprep.subr.mxu0 %v2099
        %3181 = vmatpush1.msra.mxu0 %v2098
        %3182 = vmatprep.subr.mxu0 %v2108
        %3183 = vmatpush1.msra.mxu0 %v2107
        %3184 = vmatprep.subr.mxu0 %v2117
        %3185 = vmatpush1.msra.mxu0 %v2116
        %3186 = vmatprep.mubr.f32.mxu0 %v460
        %3187 = vmatmul.mubr.f32.gmra.mrb[0].mxu0 %v459
        %v3188 = vpop.f32.mrb[0].mxu0
        %v3189 = vadd.f32 %v3118, %v3188
        %v3190 = vpop.f32.mrb[0].mxu0
        %v3191 = vadd.f32 %v3120, %v3190
        %3192 = vdwg.mxu0
        %3193 = vmatprep.subr.mxu0 %v2126
        %3194 = vmatpush1.msra.mxu0 %v2125
        %3195 = vmatprep.subr.mxu0 %v2135
        %3196 = vmatpush1.msra.mxu0 %v2134
        %3197 = vmatprep.subr.mxu0 %v2144
        %3198 = vmatpush1.msra.mxu0 %v2143
        %3199 = vmatprep.subr.mxu0 %v2153
        %3200 = vmatpush1.msra.mxu0 %v2152
        %3201 = vmatprep.subr.mxu0 %v2162
        %3202 = vmatpush1.msra.mxu0 %v2161
        %3203 = vmatprep.subr.mxu0 %v2171
        %3204 = vmatpush1.msra.mxu0 %v2170
        %3205 = vmatprep.subr.mxu0 %v2180
        %3206 = vmatpush1.msra.mxu0 %v2179
        %3207 = vmatprep.subr.mxu0 %v2189
        %3208 = vmatpush1.msra.mxu0 %v2188
        %3209 = vmatprep.subr.mxu0 %v2198
        %3210 = vmatpush1.msra.mxu0 %v2197
        %3211 = vmatprep.subr.mxu0 %v2207
        %3212 = vmatpush1.msra.mxu0 %v2206
        %3213 = vmatprep.subr.mxu0 %v2216
        %3214 = vmatpush1.msra.mxu0 %v2215
        %3215 = vmatprep.subr.mxu0 %v2225
        %3216 = vmatpush1.msra.mxu0 %v2224
        %3217 = vmatprep.subr.mxu0 %v2234
        %3218 = vmatpush1.msra.mxu0 %v2233
        %3219 = vmatprep.subr.mxu0 %v2243
        %3220 = vmatpush1.msra.mxu0 %v2242
        %3221 = vmatprep.subr.mxu0 %v2252
        %3222 = vmatpush1.msra.mxu0 %v2251
        %3223 = vmatprep.subr.mxu0 %v2261
        %3224 = vmatpush1.msra.mxu0 %v2260
        %3225 = vmatprep.subr.mxu0 %v2270
        %3226 = vmatpush1.msra.mxu0 %v2269
        %3227 = vmatprep.subr.mxu0 %v2279
        %3228 = vmatpush1.msra.mxu0 %v2278
        %3229 = vmatprep.subr.mxu0 %v2288
        %3230 = vmatpush1.msra.mxu0 %v2287
        %3231 = vmatprep.subr.mxu0 %v2297
        %3232 = vmatpush1.msra.mxu0 %v2296
        %3233 = vmatprep.subr.mxu0 %v2306
        %3234 = vmatpush1.msra.mxu0 %v2305
        %3235 = vmatprep.subr.mxu0 %v2315
        %3236 = vmatpush1.msra.mxu0 %v2314
        %3237 = vmatprep.subr.mxu0 %v2324
        %3238 = vmatpush1.msra.mxu0 %v2323
        %3239 = vmatprep.subr.mxu0 %v2333
        %3240 = vmatpush1.msra.mxu0 %v2332
        %3241 = vmatprep.subr.mxu0 %v2342
        %3242 = vmatpush1.msra.mxu0 %v2341
        %3243 = vmatprep.subr.mxu0 %v2351
        %3244 = vmatpush1.msra.mxu0 %v2350
        %3245 = vmatprep.subr.mxu0 %v2360
        %3246 = vmatpush1.msra.mxu0 %v2359
        %3247 = vmatprep.subr.mxu0 %v2369
        %3248 = vmatpush1.msra.mxu0 %v2368
        %3249 = vmatprep.subr.mxu0 %v2378
        %3250 = vmatpush1.msra.mxu0 %v2377
        %3251 = vmatprep.subr.mxu0 %v2387
        %3252 = vmatpush1.msra.mxu0 %v2386
        %3253 = vmatprep.subr.mxu0 %v2396
        %3254 = vmatpush1.msra.mxu0 %v2395
        %3255 = vmatprep.subr.mxu0 %v2405
        %3256 = vmatpush1.msra.mxu0 %v2404
        %3257 = vmatprep.mubr.f32.mxu0 %v462
        %3258 = vmatmul.mubr.f32.gmra.mrb[0].mxu0 %v461
        %v3259 = vpop.f32.mrb[0].mxu0
        %v3260 = vadd.f32 %v3189, %v3259
        %v3261 = vpop.f32.mrb[0].mxu0
        %v3262 = vadd.f32 %v3191, %v3261
        %3263 = vdwg.mxu0
        %3264 = vmatprep.subr.mxu0 0.0
        %3265 = vmatpush1.msra.mxu0 %v1551
        %3266 = vmatprep.subr.mxu0 0.0
        %3267 = vmatpush1.msra.mxu0 %v1560
        %3268 = vmatprep.subr.mxu0 0.0
        %3269 = vmatpush1.msra.mxu0 %v1569
        %3270 = vmatprep.subr.mxu0 0.0
        %3271 = vmatpush1.msra.mxu0 %v1578
        %3272 = vmatprep.subr.mxu0 0.0
        %3273 = vmatpush1.msra.mxu0 %v1587
        %3274 = vmatprep.subr.mxu0 0.0
        %3275 = vmatpush1.msra.mxu0 %v1596
        %3276 = vmatprep.subr.mxu0 0.0
        %3277 = vmatpush1.msra.mxu0 %v1605
        %3278 = vmatprep.subr.mxu0 0.0
        %3279 = vmatpush1.msra.mxu0 %v1614
        %3280 = vmatprep.subr.mxu0 0.0
        %3281 = vmatpush1.msra.mxu0 %v1623
        %3282 = vmatprep.subr.mxu0 0.0
        %3283 = vmatpush1.msra.mxu0 %v1632
        %3284 = vmatprep.subr.mxu0 0.0
        %3285 = vmatpush1.msra.mxu0 %v1641
        %3286 = vmatprep.subr.mxu0 0.0
        %3287 = vmatpush1.msra.mxu0 %v1650
        %3288 = vmatprep.subr.mxu0 0.0
        %3289 = vmatpush1.msra.mxu0 %v1659
        %3290 = vmatprep.subr.mxu0 0.0
        %3291 = vmatpush1.msra.mxu0 %v1668
        %3292 = vmatprep.subr.mxu0 0.0
        %3293 = vmatpush1.msra.mxu0 %v1677
        %3294 = vmatprep.subr.mxu0 0.0
        %3295 = vmatpush1.msra.mxu0 %v1686
        %3296 = vmatprep.subr.mxu0 0.0
        %3297 = vmatpush1.msra.mxu0 %v1695
        %3298 = vmatprep.subr.mxu0 0.0
        %3299 = vmatpush1.msra.mxu0 %v1704
        %3300 = vmatprep.subr.mxu0 0.0
        %3301 = vmatpush1.msra.mxu0 %v1713
        %3302 = vmatprep.subr.mxu0 0.0
        %3303 = vmatpush1.msra.mxu0 %v1722
        %3304 = vmatprep.subr.mxu0 0.0
        %3305 = vmatpush1.msra.mxu0 %v1731
        %3306 = vmatprep.subr.mxu0 0.0
        %3307 = vmatpush1.msra.mxu0 %v1740
        %3308 = vmatprep.subr.mxu0 0.0
        %3309 = vmatpush1.msra.mxu0 %v1749
        %3310 = vmatprep.subr.mxu0 0.0
        %3311 = vmatpush1.msra.mxu0 %v1758
        %3312 = vmatprep.subr.mxu0 0.0
        %3313 = vmatpush1.msra.mxu0 %v1767
        %3314 = vmatprep.subr.mxu0 0.0
        %3315 = vmatpush1.msra.mxu0 %v1776
        %3316 = vmatprep.subr.mxu0 0.0
        %3317 = vmatpush1.msra.mxu0 %v1785
        %3318 = vmatprep.subr.mxu0 0.0
        %3319 = vmatpush1.msra.mxu0 %v1794
        %3320 = vmatprep.subr.mxu0 0.0
        %3321 = vmatpush1.msra.mxu0 %v1803
        %3322 = vmatprep.subr.mxu0 0.0
        %3323 = vmatpush1.msra.mxu0 %v1812
        %3324 = vmatprep.subr.mxu0 0.0
        %3325 = vmatpush1.msra.mxu0 %v1821
        %3326 = vmatprep.subr.mxu0 0.0
        %3327 = vmatpush1.msra.mxu0 %v1830
        %3328 = vmatprep.mubr.f32.mxu0 %v458
        %3329 = vmatmul.mubr.f32.gmra.mrb[0].mxu0 %v457
        %v3330 = vpop.f32.mrb[0].mxu0
        %v3331 = vadd.f32 0.0, %v3330
        %v3332 = vpop.f32.mrb[0].mxu0
        %3333 = vdwg.mxu0
        %3334 = vmatprep.subr.mxu0 0.0
        %3335 = vmatpush1.msra.mxu0 %v1839
        %3336 = vmatprep.subr.mxu0 0.0
        %3337 = vmatpush1.msra.mxu0 %v1848
        %3338 = vmatprep.subr.mxu0 0.0
        %3339 = vmatpush1.msra.mxu0 %v1857
        %3340 = vmatprep.subr.mxu0 0.0
        %3341 = vmatpush1.msra.mxu0 %v1866
        %3342 = vmatprep.subr.mxu0 0.0
        %3343 = vmatpush1.msra.mxu0 %v1875
        %3344 = vmatprep.subr.mxu0 0.0
        %3345 = vmatpush1.msra.mxu0 %v1884
        %3346 = vmatprep.subr.mxu0 0.0
        %3347 = vmatpush1.msra.mxu0 %v1893
        %3348 = vmatprep.subr.mxu0 0.0
        %3349 = vmatpush1.msra.mxu0 %v1902
        %3350 = vmatprep.subr.mxu0 0.0
        %3351 = vmatpush1.msra.mxu0 %v1911
        %3352 = vmatprep.subr.mxu0 0.0
        %3353 = vmatpush1.msra.mxu0 %v1920
        %3354 = vmatprep.subr.mxu0 0.0
        %3355 = vmatpush1.msra.mxu0 %v1929
        %3356 = vmatprep.subr.mxu0 0.0
        %3357 = vmatpush1.msra.mxu0 %v1938
        %3358 = vmatprep.subr.mxu0 0.0
        %3359 = vmatpush1.msra.mxu0 %v1947
        %3360 = vmatprep.subr.mxu0 0.0
        %3361 = vmatpush1.msra.mxu0 %v1956
        %3362 = vmatprep.subr.mxu0 0.0
        %3363 = vmatpush1.msra.mxu0 %v1965
        %3364 = vmatprep.subr.mxu0 0.0
        %3365 = vmatpush1.msra.mxu0 %v1974
        %3366 = vmatprep.subr.mxu0 0.0
        %3367 = vmatpush1.msra.mxu0 %v1983
        %3368 = vmatprep.subr.mxu0 0.0
        %3369 = vmatpush1.msra.mxu0 %v1992
        %3370 = vmatprep.subr.mxu0 0.0
        %3371 = vmatpush1.msra.mxu0 %v2001
        %3372 = vmatprep.subr.mxu0 0.0
        %3373 = vmatpush1.msra.mxu0 %v2010
        %3374 = vmatprep.subr.mxu0 0.0
        %3375 = vmatpush1.msra.mxu0 %v2019
        %3376 = vmatprep.subr.mxu0 0.0
        %3377 = vmatpush1.msra.mxu0 %v2028
        %3378 = vmatprep.subr.mxu0 0.0
        %3379 = vmatpush1.msra.mxu0 %v2037
        %3380 = vmatprep.subr.mxu0 0.0
        %3381 = vmatpush1.msra.mxu0 %v2046
        %3382 = vmatprep.subr.mxu0 0.0
        %3383 = vmatpush1.msra.mxu0 %v2055
        %3384 = vmatprep.subr.mxu0 0.0
        %3385 = vmatpush1.msra.mxu0 %v2064
        %3386 = vmatprep.subr.mxu0 0.0
        %3387 = vmatpush1.msra.mxu0 %v2073
        %3388 = vmatprep.subr.mxu0 0.0
        %3389 = vmatpush1.msra.mxu0 %v2082
        %3390 = vmatprep.subr.mxu0 0.0
        %3391 = vmatpush1.msra.mxu0 %v2091
        %3392 = vmatprep.subr.mxu0 0.0
        %3393 = vmatpush1.msra.mxu0 %v2100
        %3394 = vmatprep.subr.mxu0 0.0
        %3395 = vmatpush1.msra.mxu0 %v2109
        %3396 = vmatprep.subr.mxu0 0.0
        %3397 = vmatpush1.msra.mxu0 %v2118
        %3398 = vmatprep.mubr.f32.mxu0 %v460
        %3399 = vmatmul.mubr.f32.gmra.mrb[0].mxu0 %v459
        %v3400 = vpop.f32.mrb[0].mxu0
        %v3401 = vadd.f32 %v3331, %v3400
        %v3402 = vpop.f32.mrb[0].mxu0
        %3403 = vdwg.mxu0
        %3404 = vmatprep.subr.mxu0 0.0
        %3405 = vmatpush1.msra.mxu0 %v2127
        %3406 = vmatprep.subr.mxu0 0.0
        %3407 = vmatpush1.msra.mxu0 %v2136
        %3408 = vmatprep.subr.mxu0 0.0
        %3409 = vmatpush1.msra.mxu0 %v2145
        %3410 = vmatprep.subr.mxu0 0.0
        %3411 = vmatpush1.msra.mxu0 %v2154
        %3412 = vmatprep.subr.mxu0 0.0
        %3413 = vmatpush1.msra.mxu0 %v2163
        %3414 = vmatprep.subr.mxu0 0.0
        %3415 = vmatpush1.msra.mxu0 %v2172
        %3416 = vmatprep.subr.mxu0 0.0
        %3417 = vmatpush1.msra.mxu0 %v2181
        %3418 = vmatprep.subr.mxu0 0.0
        %3419 = vmatpush1.msra.mxu0 %v2190
        %3420 = vmatprep.subr.mxu0 0.0
        %3421 = vmatpush1.msra.mxu0 %v2199
        %3422 = vmatprep.subr.mxu0 0.0
        %3423 = vmatpush1.msra.mxu0 %v2208
        %3424 = vmatprep.subr.mxu0 0.0
        %3425 = vmatpush1.msra.mxu0 %v2217
        %3426 = vmatprep.subr.mxu0 0.0
        %3427 = vmatpush1.msra.mxu0 %v2226
        %3428 = vmatprep.subr.mxu0 0.0
        %3429 = vmatpush1.msra.mxu0 %v2235
        %3430 = vmatprep.subr.mxu0 0.0
        %3431 = vmatpush1.msra.mxu0 %v2244
        %3432 = vmatprep.subr.mxu0 0.0
        %3433 = vmatpush1.msra.mxu0 %v2253
        %3434 = vmatprep.subr.mxu0 0.0
        %3435 = vmatpush1.msra.mxu0 %v2262
        %3436 = vmatprep.subr.mxu0 0.0
        %3437 = vmatpush1.msra.mxu0 %v2271
        %3438 = vmatprep.subr.mxu0 0.0
        %3439 = vmatpush1.msra.mxu0 %v2280
        %3440 = vmatprep.subr.mxu0 0.0
        %3441 = vmatpush1.msra.mxu0 %v2289
        %3442 = vmatprep.subr.mxu0 0.0
        %3443 = vmatpush1.msra.mxu0 %v2298
        %3444 = vmatprep.subr.mxu0 0.0
        %3445 = vmatpush1.msra.mxu0 %v2307
        %3446 = vmatprep.subr.mxu0 0.0
        %3447 = vmatpush1.msra.mxu0 %v2316
        %3448 = vmatprep.subr.mxu0 0.0
        %3449 = vmatpush1.msra.mxu0 %v2325
        %3450 = vmatprep.subr.mxu0 0.0
        %3451 = vmatpush1.msra.mxu0 %v2334
        %3452 = vmatprep.subr.mxu0 0.0
        %3453 = vmatpush1.msra.mxu0 %v2343
        %3454 = vmatprep.subr.mxu0 0.0
        %3455 = vmatpush1.msra.mxu0 %v2352
        %3456 = vmatprep.subr.mxu0 0.0
        %3457 = vmatpush1.msra.mxu0 %v2361
        %3458 = vmatprep.subr.mxu0 0.0
        %3459 = vmatpush1.msra.mxu0 %v2370
        %3460 = vmatprep.subr.mxu0 0.0
        %3461 = vmatpush1.msra.mxu0 %v2379
        %3462 = vmatprep.subr.mxu0 0.0
        %3463 = vmatpush1.msra.mxu0 %v2388
        %3464 = vmatprep.subr.mxu0 0.0
        %3465 = vmatpush1.msra.mxu0 %v2397
        %3466 = vmatprep.subr.mxu0 0.0
        %3467 = vmatpush1.msra.mxu0 %v2406
        %3468 = vmatprep.mubr.f32.mxu0 %v462
        %3469 = vmatmul.mubr.f32.gmra.mrb[0].mxu0 %v461
        %v3470 = vpop.f32.mrb[0].mxu0
        %v3471 = vadd.f32 %v3401, %v3470
        %v3472 = vpop.f32.mrb[0].mxu0
        %3473 = vdwg.mxu0
        %v3482 = vcombine.low %v2621, %v2623
        %v3483 = vcombine.low %v2834, %v2836
        %v3484 = vcombine.low %v3047, %v3049
        %v3485 = vcombine.low %v3260, %v3262
        %v3490 = vadd.f32 %v2407, %v3482
        %v3491 = vadd.f32 %v2408, %v3483
        %v3492 = vadd.f32 %v2409, %v3484
        %v3493 = vadd.f32 %v2410, %v3485
        %v3494 = vadd.f32 %v2411, %v3471
        %3495 = vst [vmem:[#allocation2] sm:$0xff] %v3490
        %3496 = vst [vmem:[#allocation2 + $0x8] sm:$0xff] %v3491
        %3497 = vst [vmem:[#allocation2 + $0x10] sm:$0xff] %v3492
        %3498 = vst [vmem:[#allocation2 + $0x18] sm:$0xff] %v3493
        %3499 = vst [vmem:[#allocation2 + $0x20] sm:$0xf] %v3494
        // Predicated region
        $region65: #{tpu_custom_call.1} parent=39 // pred_check
          %p3500 = pneg %p376
        $region66: #{tpu_custom_call.1} parent=39 // pred_check_branch
          %3502 = sbr.rel (%p3500) target = $region68
        $region67: #{tpu_custom_call.1} parent=39 // pred_region
          %v3503 = vld [vmem:[#allocation2] sm:$0xff]
          %v3504 = vld [vmem:[#allocation2 + $0x8] sm:$0xff]
          %v3505 = vld [vmem:[#allocation2 + $0x10] sm:$0xff]
          %v3506 = vld [vmem:[#allocation2 + $0x18] sm:$0xff]
          %v3507 = vld [vmem:[#allocation2 + $0x20] sm:$0xf]
          %v3508 = vld [vmem:[%s323] sm:$0xff]
          %v3509 = vld [vmem:[%s323 + $0x8] sm:$0x1]
          %v3512 = vlaneseq
          %v3513 = vshrl.u32 %v3512, 7
          %v3514 = vsub.s32 0, %v3513
          %v3515 = vrot.slane %v3508, %v3514
          %v3516 = vlaneseq
          %v3517 = vshrl.u32 %v3516, 7
          %v3518 = vsub.s32 1, %v3517
          %v3519 = vrot.slane %v3508, %v3518
          %v3520 = vlaneseq
          %v3521 = vshrl.u32 %v3520, 7
          %v3522 = vsub.s32 2, %v3521
          %v3523 = vrot.slane %v3508, %v3522
          %v3524 = vlaneseq
          %v3525 = vshrl.u32 %v3524, 7
          %v3526 = vsub.s32 3, %v3525
          %v3527 = vrot.slane %v3508, %v3526
          %v3528 = vlaneseq
          %v3529 = vshrl.u32 %v3528, 7
          %v3530 = vsub.s32 4, %v3529
          %v3531 = vrot.slane %v3508, %v3530
          %v3532 = vlaneseq
          %v3533 = vshrl.u32 %v3532, 7
          %v3534 = vsub.s32 5, %v3533
          %v3535 = vrot.slane %v3508, %v3534
          %v3536 = vlaneseq
          %v3537 = vshrl.u32 %v3536, 7
          %v3538 = vsub.s32 6, %v3537
          %v3539 = vrot.slane %v3508, %v3538
          %v3540 = vlaneseq
          %v3541 = vshrl.u32 %v3540, 7
          %v3542 = vsub.s32 7, %v3541
          %v3543 = vrot.slane %v3508, %v3542
          %v3544 = vlaneseq
          %v3545 = vshrl.u32 %v3544, 7
          %v3546 = vsub.s32 0, %v3545
          %v3547 = vrot.slane %v3509, %v3546
          %v3549 = vcombine.low %v3515, %v3519
          %v3550 = vcombine.low %v3523, %v3527
          %v3551 = vcombine.low %v3531, %v3535
          %v3552 = vcombine.low %v3539, %v3543
          %v3557 = vmul.f32 %v3503, %v3549
          %v3558 = vmul.f32 %v3504, %v3550
          %v3559 = vmul.f32 %v3505, %v3551
          %v3560 = vmul.f32 %v3506, %v3552
          %v3561 = vmul.f32 %v3507, %v3547
          %v3562 = vld [vmem:[%s332] sm:$0xff]
          %v3563 = vld [vmem:[%s332 + $0x8] sm:$0x1]
          %v3566 = vlaneseq
          %v3567 = vshrl.u32 %v3566, 7
          %v3568 = vsub.s32 0, %v3567
          %v3569 = vrot.slane %v3562, %v3568
          %v3570 = vlaneseq
          %v3571 = vshrl.u32 %v3570, 7
          %v3572 = vsub.s32 1, %v3571
          %v3573 = vrot.slane %v3562, %v3572
          %v3574 = vlaneseq
          %v3575 = vshrl.u32 %v3574, 7
          %v3576 = vsub.s32 2, %v3575
          %v3577 = vrot.slane %v3562, %v3576
          %v3578 = vlaneseq
          %v3579 = vshrl.u32 %v3578, 7
          %v3580 = vsub.s32 3, %v3579
          %v3581 = vrot.slane %v3562, %v3580
          %v3582 = vlaneseq
          %v3583 = vshrl.u32 %v3582, 7
          %v3584 = vsub.s32 4, %v3583
          %v3585 = vrot.slane %v3562, %v3584
          %v3586 = vlaneseq
          %v3587 = vshrl.u32 %v3586, 7
          %v3588 = vsub.s32 5, %v3587
          %v3589 = vrot.slane %v3562, %v3588
          %v3590 = vlaneseq
          %v3591 = vshrl.u32 %v3590, 7
          %v3592 = vsub.s32 6, %v3591
          %v3593 = vrot.slane %v3562, %v3592
          %v3594 = vlaneseq
          %v3595 = vshrl.u32 %v3594, 7
          %v3596 = vsub.s32 7, %v3595
          %v3597 = vrot.slane %v3562, %v3596
          %v3598 = vlaneseq
          %v3599 = vshrl.u32 %v3598, 7
          %v3600 = vsub.s32 0, %v3599
          %v3601 = vrot.slane %v3563, %v3600
          %v3603 = vcombine.low %v3569, %v3573
          %v3604 = vcombine.low %v3577, %v3581
          %v3605 = vcombine.low %v3585, %v3589
          %v3606 = vcombine.low %v3593, %v3597
          %v3611 = vadd.f32 %v3557, %v3603
          %v3612 = vadd.f32 %v3558, %v3604
          %v3613 = vadd.f32 %v3559, %v3605
          %v3614 = vadd.f32 %v3560, %v3606
          %v3615 = vadd.f32 %v3561, %v3601
          %3616 = vst [vmem:[%s368] sm:$0xff] %v3611
          %3617 = vst [vmem:[%s368 + $0x8] sm:$0xff] %v3612
          %3618 = vst [vmem:[%s368 + $0x10] sm:$0xff] %v3613
          %3619 = vst [vmem:[%s368 + $0x18] sm:$0xff] %v3614
          %3620 = vst [vmem:[%s368 + $0x20] sm:$0xf] %v3615
        $region68: #{tpu_custom_call.1} parent=39 // pred_fallthru
          _
        %s3621 = sand.u32 %s173, 1
        %s3622 = scalar_lea.sflag [#allocation5], %s3621
        %s3623 = sand.u32 %s173, 1
        %s3624 = smul.addr %s3623, 36
        %s3625 = scalar_lea.vmem [#allocation11], %s3624
        // Predicated region
        $region69: #{tpu_custom_call.1} parent=39 // pred_check
          %p3626 = pneg %p183
        $region70: #{tpu_custom_call.1} parent=39 // pred_check_branch
          %3628 = sbr.rel (%p3626) target = $region72
        $region71: #{tpu_custom_call.1} parent=39 // pred_region
          %s3629 = smul.u32 9, %s25
          %s3631 = ssub.s32 576, 576
          %3632 = vsyncadd %s3622, %s3631
          %s3633 = smul.addr %s3629, 64
          %s3634 = scalar_lea.hbm %s5, %s3633
          %s3636 = sshll.u32 %s3625, 4
          %s3637 = int_to_ptr.vmem [resolvable:$true] %s3636
          %3639 = dma.vmem_to_hbm [thread:$0]  %s3637, 576, %s3634, %s3622
        $region72: #{tpu_custom_call.1} parent=39 // pred_fallthru
          _
      $region40: #{tpu_custom_call.1} parent=5 // pred_fallthru
        _
      %p3640 = scmp.le.s32.totalorder 2, %s16
      // Predicated region
      $region73: #{tpu_custom_call.1} parent=5 // pred_check
        %p3641 = pneg %p3640
      $region74: #{tpu_custom_call.1} parent=5 // pred_check_branch
        %3643 = sbr.rel (%p3641) target = $region76
      $region75: #{tpu_custom_call.1} parent=5 // pred_region
        %s3644 = ssub.s32 %s16, 2
        // Predicated region
        $region77: #{tpu_custom_call.1} parent=75 // pred_check
          %p3645 = pneg %p189
        $region78: #{tpu_custom_call.1} parent=75 // pred_check_branch
          %3647 = sbr.rel (%p3645) target = $region80
        $region79: #{tpu_custom_call.1} parent=75 // pred_region
          %s3648 = sand.u32 %s174, 1
          %s3649 = scalar_lea.sflag [#allocation5], %s3648
          %s3650 = sand.u32 %s174, 1
          %s3651 = smul.addr %s3650, 36
          %s3652 = scalar_lea.vmem [#allocation11], %s3651
          %3653 = dma.done %s3649, 576
        $region80: #{tpu_custom_call.1} parent=75 // pred_fallthru
          _
      $region76: #{tpu_custom_call.1} parent=5 // pred_fallthru
        _
    $region6: #{tpu_custom_call.1} parent=1 // loop_footer
      %s20 = sadd.s32 1, %s16
    $region7: #{tpu_custom_call.1} parent=1 // loop_footer_branch
      %15 = sbr.rel target = $region3
    $region8: #{tpu_custom_call.1} parent=1 // loop_exit
      _
    %3654 = vsyncpa [#allocation4], 1
    %s3655 = scalar_lea.sflag [#allocation4], 1
    %3656 = vsyncpa %s3655, 1
    %3657 = vsyncpa [#allocation7], 1
    %3658 = vsyncpa [#allocation5], 1
    %s3659 = scalar_lea.sflag [#allocation5], 1
    %3660 = vsyncpa %s3659, 1

</llo_original>
